<compile_context>
chip_gen: v7x
topology: tpu7x:2x2x1
jax: 0.10.0
libtpu: 0.0.40
codegen_flags: <defaults>
</compile_context>

<pallas_src>
import functools
import math

import jax
import jax.numpy as jnp
from jax.experimental import pallas as pl
from jax.experimental.pallas import tpu as pltpu

LANE = 128          # codebook (num_embeddings) lane padding
TM_CAP = 1024       # max row-tile; safe for v7x's 64 MiB VMEM at these widths


def _round_up(v, m):
    return ((v + m - 1) // m) * m


def _pick_tm(M):
    """Row tile: >=2 grid steps when M > 8 (v7x has 2 TensorCores), rows %8==0."""
    tm = _round_up(max((M + 1) // 2, 8), 8)
    return min(TM_CAP, tm)


# --------------------------------------------------------------------------
# Pallas kernel 1: matmul with fused affine (BN eval / bias) + optional ReLU.
# bf16 MXU operands, f32 accumulation + epilogue, cast at the store.
# --------------------------------------------------------------------------
def _mm_kernel(x_ref, w_ref, s_ref, b_ref, o_ref, *, relu_out):
    acc = jnp.dot(x_ref[...], w_ref[...], preferred_element_type=jnp.float32)
    y = acc * s_ref[...] + b_ref[...]
    if relu_out:
        y = jnp.maximum(y, 0.0)
    o_ref[...] = y.astype(o_ref.dtype)


def matmul_affine(x, w, scale, bias, *, relu_out=False, out_dtype=jnp.bfloat16):
    """y = relu?((x @ w) * scale + bias).  x:(M,K) w:(K,N) scale/bias:(1,N)."""
    M, K = x.shape
    K2, N = w.shape
    assert K == K2
    TM = _pick_tm(M)
    grid = pl.cdiv(M, TM)

    x = x.astype(jnp.bfloat16)
    w = w.astype(jnp.bfloat16)
    s2 = scale.reshape(1, N).astype(jnp.float32)
    b2 = bias.reshape(1, N).astype(jnp.float32)

    return pl.pallas_call(
        functools.partial(_mm_kernel, relu_out=relu_out),
        out_shape=jax.ShapeDtypeStruct((M, N), out_dtype),
        grid=(grid,),
        in_specs=[
            pl.BlockSpec((TM, K), lambda i: (i, 0)),
            pl.BlockSpec((K, N), lambda i: (0, 0)),
            pl.BlockSpec((1, N), lambda i: (0, 0)),
            pl.BlockSpec((1, N), lambda i: (0, 0)),
        ],
        out_specs=pl.BlockSpec((TM, N), lambda i: (i, 0)),
        compiler_params=pltpu.CompilerParams(dimension_semantics=("parallel",)),
    )(x, w, s2, b2)


# --------------------------------------------------------------------------
# Pallas kernel 2: fused residual block
#   y = x + BN2(Conv1x1(ReLU(BN1(Conv3x3(ReLU(x))))))
# The 3x3 conv consumes an im2col patch matrix (ReLU commutes with im2col);
# the intermediate activation stays in registers — no HBM round trip.
# --------------------------------------------------------------------------
def _resblock_kernel(cols_ref, w1_ref, s1_ref, b1_ref,
                     w2_ref, s2_ref, b2_ref, h_ref, o_ref):
    x = jnp.maximum(cols_ref[...], 0)                                   # ReLU(x) patches
    t = jnp.dot(x, w1_ref[...], preferred_element_type=jnp.float32)
    t = jnp.maximum(t * s1_ref[...] + b1_ref[...], 0.0)                 # BN1 + ReLU
    y = jnp.dot(t.astype(jnp.bfloat16), w2_ref[...],
                preferred_element_type=jnp.float32)
    y = y * s2_ref[...] + b2_ref[...] + h_ref[...].astype(jnp.float32)  # BN2 + skip
    o_ref[...] = y.astype(o_ref.dtype)


def residual_block(h, rp):
    B, H, W, C = h.shape
    cols, _ = _im2col(h, 3, 3, 1, 1)                 # (M, 9C) bf16
    M, K1 = cols.shape
    TM = _pick_tm(M)
    grid = pl.cdiv(M, TM)
    y = pl.pallas_call(
        _resblock_kernel,
        out_shape=jax.ShapeDtypeStruct((M, C), jnp.bfloat16),
        grid=(grid,),
        in_specs=[
            pl.BlockSpec((TM, K1), lambda i: (i, 0)),
            pl.BlockSpec((K1, C), lambda i: (0, 0)),
            pl.BlockSpec((1, C), lambda i: (0, 0)),
            pl.BlockSpec((1, C), lambda i: (0, 0)),
            pl.BlockSpec((C, C), lambda i: (0, 0)),
            pl.BlockSpec((1, C), lambda i: (0, 0)),
            pl.BlockSpec((1, C), lambda i: (0, 0)),
            pl.BlockSpec((TM, C), lambda i: (i, 0)),
        ],
        out_specs=pl.BlockSpec((TM, C), lambda i: (i, 0)),
        compiler_params=pltpu.CompilerParams(dimension_semantics=("parallel",)),
    )(cols, rp["w1"], rp["s1"], rp["b1"], rp["w2"], rp["s2"], rp["b2"],
      h.reshape(M, C))
    return y.reshape(B, H, W, C)


# --------------------------------------------------------------------------
# Pallas kernel 3: fused  enc_out(1x1 conv + bias) -> VQ codebook
#   (f32 distances, softmax, argmax one-hot, per-row KL) -> dec 1x1 conv + BN.
# Codebook axis padded to 128 lanes; pad entries get esq = 1e30.
# --------------------------------------------------------------------------
def _codebook_kernel(h_ref, we_ref, be_ref, et_ref, esq_ref, emb_ref,
                     wd_ref, sd_ref, bd_ref, o_ref, kl_ref, *, logM):
    h = h_ref[...]                                                      # (TM, C) bf16
    # --- encoder output 1x1 conv (+bias); z kept in f32 for the codebook ---
    z = jnp.dot(h, we_ref[...], preferred_element_type=jnp.float32) + be_ref[...]

    # --- squared distances -> logits = -dist (fully f32) ---
    xsq = jnp.sum(z * z, axis=-1, keepdims=True)                        # (TM, 1)
    xe = jnp.dot(z, et_ref[...], preferred_element_type=jnp.float32)    # (TM, Mcp)
    logits = 2.0 * xe - xsq - esq_ref[...]                              # pads ~ -1e30

    mx = jnp.max(logits, axis=-1, keepdims=True)
    ex = jnp.exp(logits - mx)
    denom = jnp.sum(ex, axis=-1, keepdims=True)
    p = ex * pl.reciprocal(denom, approx=True)                          # EUP, not VPU
    logp = (logits - mx) - jnp.log(denom)                               # log-softmax

    # per-row KL to uniform; 0*log0 guarded like torch's KL[probs==0]=0.
    # Rows beyond M (edge tile) are simply not written by the masked store.
    kl_row = jnp.sum(jnp.where(p == 0.0, 0.0, p * (logp + logM)),
                     axis=-1, keepdims=True)
    kl_ref[...] = kl_row.astype(jnp.float32)

    # hard one-hot of argmax(probs) (= argmax(logits)), first-index tie-break
    Mcp = et_ref.shape[1]
    col = jax.lax.broadcasted_iota(jnp.int32, logits.shape, 1)
    first = jnp.min(jnp.where(logits >= mx, col, Mcp), axis=-1, keepdims=True)
    onehot = (col == first).astype(jnp.float32)
    zq = jnp.dot(onehot, emb_ref[...], preferred_element_type=jnp.float32)  # f32 z_q

    # --- decoder head: 1x1 conv + BN (no ReLU) ---
    y = jnp.dot(zq.astype(jnp.bfloat16), wd_ref[...],
                preferred_element_type=jnp.float32)
    o_ref[...] = (y * sd_ref[...] + bd_ref[...]).astype(o_ref.dtype)


def codebook_fused(h_flat, cb, num_embeddings):
    """h_flat: (M, C) encoder features.  Returns (decoded (M, C), KL rows (M,1))."""
    M, C = h_flat.shape
    D = cb["we"].shape[1]
    Mcp = cb["esq"].shape[1]
    TM = _pick_tm(M)
    grid = pl.cdiv(M, TM)

    kern = functools.partial(_codebook_kernel, logM=float(math.log(num_embeddings)))
    dec_h, kl_rows = pl.pallas_call(
        kern,
        out_shape=(jax.ShapeDtypeStruct((M, C), jnp.bfloat16),
                   jax.ShapeDtypeStruct((M, 1), jnp.float32)),
        grid=(grid,),
        in_specs=[
            pl.BlockSpec((TM, C), lambda i: (i, 0)),
            pl.BlockSpec((C, D), lambda i: (0, 0)),
            pl.BlockSpec((1, D), lambda i: (0, 0)),
            pl.BlockSpec((D, Mcp), lambda i: (0, 0)),
            pl.BlockSpec((1, Mcp), lambda i: (0, 0)),
            pl.BlockSpec((Mcp, D), lambda i: (0, 0)),
            pl.BlockSpec((D, C), lambda i: (0, 0)),
            pl.BlockSpec((1, C), lambda i: (0, 0)),
            pl.BlockSpec((1, C), lambda i: (0, 0)),
        ],
        out_specs=(
            pl.BlockSpec((TM, C), lambda i: (i, 0)),
            pl.BlockSpec((TM, 1), lambda i: (i, 0)),
        ),
        compiler_params=pltpu.CompilerParams(dimension_semantics=("parallel",)),
    )(h_flat.astype(jnp.bfloat16), cb["we"], cb["be"], cb["et"], cb["esq"],
      cb["emb"], cb["wd"], cb["sd"], cb["bd"])
    return dec_h, kl_rows


# --------------------------------------------------------------------------
# Glue: patch extraction (im2col), layer wrappers, sub-pixel conv-transpose
# --------------------------------------------------------------------------
def _im2col(x, kh, kw, stride, pad):
    # TODO(synk): fuse this tap loop into the matmul kernels (halo'd tiles) to
    #             remove the patch-matrix HBM amplification entirely.
    B, H, W, C = x.shape
    xp = jnp.pad(x, ((0, 0), (pad, pad), (pad, pad), (0, 0)))
    Ho = (H + 2 * pad - kh) // stride + 1
    Wo = (W + 2 * pad - kw) // stride + 1
    cols = []
    for i in range(kh):
        for j in range(kw):
            cols.append(xp[:, i:i + Ho * stride:stride, j:j + Wo * stride:stride, :])
    patches = jnp.concatenate(cols, axis=-1)
    return patches.reshape(B * Ho * Wo, kh * kw * C), (B, Ho, Wo)


def conv_bn(x, w2d, s, b, kh, kw, stride, pad, relu, out_dtype=jnp.bfloat16):
    B, H, W, C = x.shape
    if kh == 1 and kw == 1 and stride == 1 and pad == 0:
        cols, Ho, Wo = x.reshape(B * H * W, C), H, W
    else:
        cols, (B, Ho, Wo) = _im2col(x, kh, kw, stride, pad)
    y = matmul_affine(cols, w2d, s, b, relu_out=relu, out_dtype=out_dtype)
    return y.reshape(B, Ho, Wo, w2d.shape[1])


def convT_bn_relu(h, w2d, s4, b4):
    """ConvTranspose2d(4,2,1)+BN+ReLU via sub-pixel decomposition: one stride-1
    3x3 matmul producing all 4 output parities, then depth-to-space."""
    B, H, W, C = h.shape
    cols, _ = _im2col(h, 3, 3, 1, 1)
    y = matmul_affine(cols, w2d, s4, b4, relu_out=True)   # (B*H*W, 4*C)
    y = y.reshape(B, H, W, 2, 2, C)
    # TODO(synk): fold this depth-to-space shuffle into the out BlockSpec.
    y = jnp.transpose(y, (0, 1, 3, 2, 4, 5))
    return y.reshape(B, 2 * H, 2 * W, C)


# --------------------------------------------------------------------------
# Full GSSOFT forward  (returns (f, KL), matching GSSOFT.forward(x))
# --------------------------------------------------------------------------
def gssoft_forward(x_nchw, pp, *, num_embeddings):
    B = x_nchw.shape[0]
    x = x_nchw.astype(jnp.float32) - 0.5                          # logit_transform == False
    x = jnp.transpose(x, (0, 2, 3, 1)).astype(jnp.bfloat16)       # NCHW -> NHWC

    # ---- Encoder ----
    h = conv_bn(x, pp["e1_w"], pp["e1_s"], pp["e1_b"], 4, 4, 2, 1, relu=True)
    h = conv_bn(h, pp["e2_w"], pp["e2_s"], pp["e2_b"], 4, 4, 2, 1, relu=False)
    h = residual_block(h, pp["er1"])
    h = residual_block(h, pp["er2"])

    # ---- enc_out 1x1 + Codebook (latent_dim == 1) + dec 1x1 + BN, fused ----
    Bz, Hq, Wq, C = h.shape
    dec_h, kl_rows = codebook_fused(h.reshape(Bz * Hq * Wq, C), pp["cb"],
                                    num_embeddings)
    KL = jnp.sum(kl_rows) / B                 # sum over (N,H,W,M), mean over B
    h = dec_h.reshape(Bz, Hq, Wq, C)

    # ---- Decoder ----
    h = residual_block(h, pp["dr1"])
    h = residual_block(h, pp["dr2"])
    h = convT_bn_relu(h, pp["t1_w"], pp["t1_s"], pp["t1_b"])
    h = convT_bn_relu(h, pp["t2_w"], pp["t2_s"], pp["t2_b"])
    f = conv_bn(h, pp["o_w"], pp["o_s"], pp["o_b"], 1, 1, 1, 0, relu=False,
                out_dtype=jnp.float32)        # true 3-channel output, no slice
    return jnp.transpose(f, (0, 3, 1, 2)), KL  # NHWC -> NCHW


# --------------------------------------------------------------------------
# Parameter preparation: pack im2col weight matrices (bf16, TRUE widths —
# no K-side lane padding), fold BN(eval) into per-channel scale/bias (f32),
# build sub-pixel conv-transpose weights, pad the codebook axis to 128.
# --------------------------------------------------------------------------
def _conv_w2d(w_oihw):
    cout, cin, kh, kw = w_oihw.shape
    w = jnp.transpose(w_oihw, (2, 3, 1, 0))                       # (kh,kw,cin,cout)
    return w.reshape(kh * kw * cin, cout).astype(jnp.bfloat16)


def _convT_w2d(w_iohw):
    """ConvTranspose2d(4,2,1) -> (9*cin, 4*cout) sub-pixel weight.
    Output parity a (rows) / b (cols); 3x3 tap p maps to input offset p-1:
      parity 0: offset -1 -> k=3, offset 0 -> k=1
      parity 1: offset  0 -> k=2, offset +1 -> k=0
    """
    cin, cout, kh, kw = w_iohw.shape
    w = jnp.transpose(w_iohw, (2, 3, 0, 1))                       # (kh,kw,cin,cout)
    blocks = []
    for a in (0, 1):
        for b in (0, 1):
            rmap = {0: 3, 1: 1} if a == 0 else {1: 2, 2: 0}
            cmap = {0: 3, 1: 1} if b == 0 else {1: 2, 2: 0}
            w3 = jnp.zeros((3, 3, cin, cout), w.dtype)
            for p, kr in rmap.items():
                for q, kc in cmap.items():
                    w3 = w3.at[p, q].set(w[kr, kc])
            blocks.append(w3)
    wcat = jnp.concatenate(blocks, axis=-1)                       # (3,3,cin,4*cout)
    return wcat.reshape(9 * cin, 4 * cout).astype(jnp.bfloat16)


def prepare_params(p):
    D = p["embedding"].shape[1]
    Mc = p["embedding"].shape[0]
    Mcp = _round_up(Mc, LANE)

    def bn_sb(bn, eps=1e-5):
        s = bn["gamma"] * jax.lax.rsqrt(bn["rv"] + eps)
        b = bn["beta"] - bn["rm"] * s
        return (s.reshape(1, -1).astype(jnp.float32),
                b.reshape(1, -1).astype(jnp.float32))

    def res_prep(r):
        s1, b1 = bn_sb(r["bn1"]); s2, b2 = bn_sb(r["bn2"])
        return dict(w1=_conv_w2d(r["w1"]), s1=s1, b1=b1,
                    w2=_conv_w2d(r["w2"]), s2=s2, b2=b2)

    e1s, e1b = bn_sb(p["enc_bn1"]); e2s, e2b = bn_sb(p["enc_bn2"])
    t1s, t1b = bn_sb(p["dec_bnT1"]); t2s, t2b = bn_sb(p["dec_bnT2"])
    sd, bd = bn_sb(p["dec_bn1"])

    emb = p["embedding"].astype(jnp.float32)
    emb_p = jnp.pad(emb, ((0, Mcp - Mc), (0, 0)))                 # (Mcp, D) f32
    esq = jnp.sum(emb_p * emb_p, axis=1).reshape(1, Mcp)
    pad_mask = (jnp.arange(Mcp) >= Mc).reshape(1, Mcp)
    esq = jnp.where(pad_mask, jnp.float32(1e30), esq).astype(jnp.float32)

    cb = dict(
        we=_conv_w2d(p["enc_out_w"]),                             # (C, D) bf16
        be=p["enc_out_b"].reshape(1, D).astype(jnp.float32),
        et=emb_p.T,                                               # (D, Mcp) f32
        esq=esq,                                                  # (1, Mcp) f32
        emb=emb_p,                                                # (Mcp, D) f32
        wd=_conv_w2d(p["dec_conv1_w"]),                           # (D, C) bf16
        sd=sd, bd=bd,
    )

    return dict(
        e1_w=_conv_w2d(p["enc_conv1_w"]), e1_s=e1s, e1_b=e1b,
        e2_w=_conv_w2d(p["enc_conv2_w"]), e2_s=e2s, e2_b=e2b,
        er1=res_prep(p["enc_res1"]), er2=res_prep(p["enc_res2"]),
        cb=cb,
        dr1=res_prep(p["dec_res1"]), dr2=res_prep(p["dec_res2"]),
        t1_w=_convT_w2d(p["dec_convT1_w"]),
        t1_s=jnp.tile(t1s, (1, 4)), t1_b=jnp.tile(t1b, (1, 4)),
        t2_w=_convT_w2d(p["dec_convT2_w"]),
        t2_s=jnp.tile(t2s, (1, 4)), t2_b=jnp.tile(t2b, (1, 4)),
        o_w=_conv_w2d(p["dec_out_w"]),
        o_s=jnp.ones((1, 3), jnp.float32),
        o_b=p["dec_out_b"].reshape(1, 3).astype(jnp.float32),
    )


# --------------------------------------------------------------------------
# Deterministic parameter initialisation (shapes follow the nn.Module __init__)
# --------------------------------------------------------------------------
def _make_bn(key, c):
    k1, k2, k3, k4 = jax.random.split(key, 4)
    return dict(
        gamma=1.0 + 0.1 * jax.random.normal(k1, (c,), jnp.float32),
        beta=0.1 * jax.random.normal(k2, (c,), jnp.float32),
        rm=0.1 * jax.random.normal(k3, (c,), jnp.float32),
        rv=1.0 + 0.1 * jnp.abs(jax.random.normal(k4, (c,), jnp.float32)),
    )


def init_params(key, C, D, Mc):
    ks = iter(jax.random.split(key, 64))

    def w(shape):
        return 0.1 * jax.random.normal(next(ks), shape, jnp.float32)

    def bn(c):
        return _make_bn(next(ks), c)

    def res(c):
        return dict(w1=w((c, c, 3, 3)), bn1=bn(c), w2=w((c, c, 1, 1)), bn2=bn(c))

    return dict(
        # Encoder
        enc_conv1_w=w((C, 3, 4, 4)), enc_bn1=bn(C),
        enc_conv2_w=w((C, C, 4, 4)), enc_bn2=bn(C),
        enc_res1=res(C), enc_res2=res(C),
        enc_out_w=w((D, C, 1, 1)),
        enc_out_b=0.1 * jax.random.normal(next(ks), (D,), jnp.float32),
        # Codebook (latent_dim=1, num_embeddings=Mc, embedding_dim=D)
        embedding=jax.random.uniform(next(ks), (Mc, D), jnp.float32,
                                     minval=-1.0 / Mc, maxval=1.0 / Mc),
        # Decoder
        dec_conv1_w=w((C, D, 1, 1)), dec_bn1=bn(C),
        dec_res1=res(C), dec_res2=res(C),
        dec_convT1_w=w((C, C, 4, 4)), dec_bnT1=bn(C),
        dec_convT2_w=w((C, C, 4, 4)), dec_bnT2=bn(C),
        dec_out_w=w((3, C, 1, 1)),
        dec_out_b=0.1 * jax.random.normal(next(ks), (3,), jnp.float32),
    )


if __name__ == "__main__":
    key = jax.random.PRNGKey(0)
    k_param, k_x = jax.random.split(key)

    B = 2
    image_size = 16          # config.data.image_size
    C = 3                    # config.data.channels (also encoder/decoder width)
    D = 16                   # config.model.feature_size  (embedding_dim)
    Mc = 32                  # config.model.num_components (num_embeddings)

    raw_params = init_params(k_param, C, D, Mc)
    pp = prepare_params(raw_params)        # one-time prep, eager is fine
    x = jax.random.uniform(k_x, (B, C, image_size, image_size), jnp.float32)

    fwd = jax.jit(functools.partial(gssoft_forward, num_embeddings=Mc))
    f, KL = fwd(x, pp)
    jax.block_until_ready((f, KL))

    assert f.shape == (B, 3, image_size, image_size), f.shape
    assert KL.shape == (), KL.shape
    assert bool(jnp.all(jnp.isfinite(f))) and bool(jnp.isfinite(KL))
    print("KERNEL_OK")
</pallas_src>

<mosaic_0001>
module attributes {stable_mosaic.version = 11 : i64} {
  func.func @_mm_kernel(%arg0: i32, %arg1: memref<64x48xbf16, #tpu.memory_space<vmem>>, %arg2: memref<48x3xbf16, #tpu.memory_space<vmem>>, %arg3: memref<1x3xf32, #tpu.memory_space<vmem>>, %arg4: memref<1x3xf32, #tpu.memory_space<vmem>>, %arg5: memref<64x3xbf16, #tpu.memory_space<vmem>>) attributes {dimension_semantics = [#tpu.dimension_semantics<parallel>], iteration_bounds = array<i64: 2>, scalar_prefetch = 0 : i64, scratch_operands = 0 : i64, tpu.core_type = #tpu.core_type<tc>, window_params = [{transform_indices = @transform_0, window_bounds = array<i64: 64, 48>}, {pipeline_mode = #tpu.pipeline_mode<synchronous>, transform_indices = @transform_1, window_bounds = array<i64: 48, 3>}, {pipeline_mode = #tpu.pipeline_mode<synchronous>, transform_indices = @transform_2, window_bounds = array<i64: 1, 3>}, {pipeline_mode = #tpu.pipeline_mode<synchronous>, transform_indices = @transform_3, window_bounds = array<i64: 1, 3>}, {transform_indices = @transform_4, window_bounds = array<i64: 64, 3>}]} {
    %c0 = arith.constant 0 : index
    %c0_0 = arith.constant 0 : index
    %0 = vector.load %arg1[%c0, %c0_0] : memref<64x48xbf16, #tpu.memory_space<vmem>>, vector<64x48xbf16>
    %c0_1 = arith.constant 0 : index
    %c0_2 = arith.constant 0 : index
    %1 = vector.load %arg2[%c0_1, %c0_2] : memref<48x3xbf16, #tpu.memory_space<vmem>>, vector<48x3xbf16>
    %cst = arith.constant dense<0.000000e+00> : vector<64x3xf32>
    %2 = tpu.matmul %0, %1, %cst {dimension_numbers = #tpu.dot_dimension_numbers<[1], [0], [0], [1], [0, 0, 1, 1], [], []>} : vector<64x48xbf16>, vector<48x3xbf16>, vector<64x3xf32> -> vector<64x3xf32>
    %c0_3 = arith.constant 0 : index
    %c0_4 = arith.constant 0 : index
    %3 = vector.load %arg3[%c0_3, %c0_4] : memref<1x3xf32, #tpu.memory_space<vmem>>, vector<1x3xf32>
    %4 = vector.broadcast %3 : vector<1x3xf32> to vector<64x3xf32>
    %5 = arith.mulf %2, %4 : vector<64x3xf32>
    %c0_5 = arith.constant 0 : index
    %c0_6 = arith.constant 0 : index
    %6 = vector.load %arg4[%c0_5, %c0_6] : memref<1x3xf32, #tpu.memory_space<vmem>>, vector<1x3xf32>
    %7 = vector.broadcast %6 : vector<1x3xf32> to vector<64x3xf32>
    %8 = arith.addf %5, %7 : vector<64x3xf32>
    %cst_7 = arith.constant 0.000000e+00 : f32
    %9 = vector.broadcast %cst_7 : f32 to vector<64x3xf32>
    %10 = arith.maximumf %8, %9 : vector<64x3xf32>
    %11 = arith.truncf %10 : vector<64x3xf32> to vector<64x3xbf16>
    %c0_8 = arith.constant 0 : index
    %c0_9 = arith.constant 0 : index
    %12 = vector.load %arg5[%c0_8, %c0_9] : memref<64x3xbf16, #tpu.memory_space<vmem>>, vector<64x3xbf16>
    tpu.vector_store %arg5[%c0_8, %c0_9], %11 {strides = array<i32>} : memref<64x3xbf16, #tpu.memory_space<vmem>>, vector<64x3xbf16>,
    return
  }
  func.func @transform_0(%arg0: i32) -> (i32, i32) {
    %c0_i32 = arith.constant 0 : i32
    %c0_i32_0 = arith.constant 0 : i32
    return %arg0, %c0_i32 : i32, i32
  }
  func.func @transform_1(%arg0: i32) -> (i32, i32) {
    %c0_i32 = arith.constant 0 : i32
    %c0_i32_0 = arith.constant 0 : i32
    %c0_i32_1 = arith.constant 0 : i32
    return %c0_i32, %c0_i32_0 : i32, i32
  }
  func.func @transform_2(%arg0: i32) -> (i32, i32) {
    %c0_i32 = arith.constant 0 : i32
    %c0_i32_0 = arith.constant 0 : i32
    %c0_i32_1 = arith.constant 0 : i32
    return %c0_i32, %c0_i32_0 : i32, i32
  }
  func.func @transform_3(%arg0: i32) -> (i32, i32) {
    %c0_i32 = arith.constant 0 : i32
    %c0_i32_0 = arith.constant 0 : i32
    %c0_i32_1 = arith.constant 0 : i32
    return %c0_i32, %c0_i32_0 : i32, i32
  }
  func.func @transform_4(%arg0: i32) -> (i32, i32) {
    %c0_i32 = arith.constant 0 : i32
    %c0_i32_0 = arith.constant 0 : i32
    return %arg0, %c0_i32 : i32, i32
  }
}

module attributes {stable_mosaic.version = 11 : i64} {
  func.func @_mm_kernel(%arg0: i32, %arg1: memref<16x48xbf16, #tpu.memory_space<vmem>>, %arg2: memref<48x3xbf16, #tpu.memory_space<vmem>>, %arg3: memref<1x3xf32, #tpu.memory_space<vmem>>, %arg4: memref<1x3xf32, #tpu.memory_space<vmem>>, %arg5: memref<16x3xbf16, #tpu.memory_space<vmem>>) attributes {dimension_semantics = [#tpu.dimension_semantics<parallel>], iteration_bounds = array<i64: 2>, scalar_prefetch = 0 : i64, scratch_operands = 0 : i64, tpu.core_type = #tpu.core_type<tc>, window_params = [{transform_indices = @transform_0, window_bounds = array<i64: 16, 48>}, {pipeline_mode = #tpu.pipeline_mode<synchronous>, transform_indices = @transform_1, window_bounds = array<i64: 48, 3>}, {pipeline_mode = #tpu.pipeline_mode<synchronous>, transform_indices = @transform_2, window_bounds = array<i64: 1, 3>}, {pipeline_mode = #tpu.pipeline_mode<synchronous>, transform_indices = @transform_3, window_bounds = array<i64: 1, 3>}, {transform_indices = @transform_4, window_bounds = array<i64: 16, 3>}]} {
    %c0 = arith.constant 0 : index
    %c0_0 = arith.constant 0 : index
    %0 = vector.load %arg1[%c0, %c0_0] : memref<16x48xbf16, #tpu.memory_space<vmem>>, vector<16x48xbf16>
    %c0_1 = arith.constant 0 : index
    %c0_2 = arith.constant 0 : index
    %1 = vector.load %arg2[%c0_1, %c0_2] : memref<48x3xbf16, #tpu.memory_space<vmem>>, vector<48x3xbf16>
    %cst = arith.constant dense<0.000000e+00> : vector<16x3xf32>
    %2 = tpu.matmul %0, %1, %cst {dimension_numbers = #tpu.dot_dimension_numbers<[1], [0], [0], [1], [0, 0, 1, 1], [], []>} : vector<16x48xbf16>, vector<48x3xbf16>, vector<16x3xf32> -> vector<16x3xf32>
    %c0_3 = arith.constant 0 : index
    %c0_4 = arith.constant 0 : index
    %3 = vector.load %arg3[%c0_3, %c0_4] : memref<1x3xf32, #tpu.memory_space<vmem>>, vector<1x3xf32>
    %4 = vector.broadcast %3 : vector<1x3xf32> to vector<16x3xf32>
    %5 = arith.mulf %2, %4 : vector<16x3xf32>
    %c0_5 = arith.constant 0 : index
    %c0_6 = arith.constant 0 : index
    %6 = vector.load %arg4[%c0_5, %c0_6] : memref<1x3xf32, #tpu.memory_space<vmem>>, vector<1x3xf32>
    %7 = vector.broadcast %6 : vector<1x3xf32> to vector<16x3xf32>
    %8 = arith.addf %5, %7 : vector<16x3xf32>
    %9 = arith.truncf %8 : vector<16x3xf32> to vector<16x3xbf16>
    %c0_7 = arith.constant 0 : index
    %c0_8 = arith.constant 0 : index
    %10 = vector.load %arg5[%c0_7, %c0_8] : memref<16x3xbf16, #tpu.memory_space<vmem>>, vector<16x3xbf16>
    tpu.vector_store %arg5[%c0_7, %c0_8], %9 {strides = array<i32>} : memref<16x3xbf16, #tpu.memory_space<vmem>>, vector<16x3xbf16>,
    return
  }
  func.func @transform_0(%arg0: i32) -> (i32, i32) {
    %c0_i32 = arith.constant 0 : i32
    %c0_i32_0 = arith.constant 0 : i32
    return %arg0, %c0_i32 : i32, i32
  }
  func.func @transform_1(%arg0: i32) -> (i32, i32) {
    %c0_i32 = arith.constant 0 : i32
    %c0_i32_0 = arith.constant 0 : i32
    %c0_i32_1 = arith.constant 0 : i32
    return %c0_i32, %c0_i32_0 : i32, i32
  }
  func.func @transform_2(%arg0: i32) -> (i32, i32) {
    %c0_i32 = arith.constant 0 : i32
    %c0_i32_0 = arith.constant 0 : i32
    %c0_i32_1 = arith.constant 0 : i32
    return %c0_i32, %c0_i32_0 : i32, i32
  }
  func.func @transform_3(%arg0: i32) -> (i32, i32) {
    %c0_i32 = arith.constant 0 : i32
    %c0_i32_0 = arith.constant 0 : i32
    %c0_i32_1 = arith.constant 0 : i32
    return %c0_i32, %c0_i32_0 : i32, i32
  }
  func.func @transform_4(%arg0: i32) -> (i32, i32) {
    %c0_i32 = arith.constant 0 : i32
    %c0_i32_0 = arith.constant 0 : i32
    return %arg0, %c0_i32 : i32, i32
  }
}

module attributes {stable_mosaic.version = 11 : i64} {
  func.func @_resblock_kernel(%arg0: i32, %arg1: memref<16x27xbf16, #tpu.memory_space<vmem>>, %arg2: memref<27x3xbf16, #tpu.memory_space<vmem>>, %arg3: memref<1x3xf32, #tpu.memory_space<vmem>>, %arg4: memref<1x3xf32, #tpu.memory_space<vmem>>, %arg5: memref<3x3xbf16, #tpu.memory_space<vmem>>, %arg6: memref<1x3xf32, #tpu.memory_space<vmem>>, %arg7: memref<1x3xf32, #tpu.memory_space<vmem>>, %arg8: memref<16x3xbf16, #tpu.memory_space<vmem>>, %arg9: memref<16x3xbf16, #tpu.memory_space<vmem>>) attributes {dimension_semantics = [#tpu.dimension_semantics<parallel>], iteration_bounds = array<i64: 2>, scalar_prefetch = 0 : i64, scratch_operands = 0 : i64, tpu.core_type = #tpu.core_type<tc>, window_params = [{transform_indices = @transform_0, window_bounds = array<i64: 16, 27>}, {pipeline_mode = #tpu.pipeline_mode<synchronous>, transform_indices = @transform_1, window_bounds = array<i64: 27, 3>}, {pipeline_mode = #tpu.pipeline_mode<synchronous>, transform_indices = @transform_2, window_bounds = array<i64: 1, 3>}, {pipeline_mode = #tpu.pipeline_mode<synchronous>, transform_indices = @transform_3, window_bounds = array<i64: 1, 3>}, {pipeline_mode = #tpu.pipeline_mode<synchronous>, transform_indices = @transform_4, window_bounds = array<i64: 3, 3>}, {pipeline_mode = #tpu.pipeline_mode<synchronous>, transform_indices = @transform_5, window_bounds = array<i64: 1, 3>}, {pipeline_mode = #tpu.pipeline_mode<synchronous>, transform_indices = @transform_6, window_bounds = array<i64: 1, 3>}, {transform_indices = @transform_7, window_bounds = array<i64: 16, 3>}, {transform_indices = @transform_8, window_bounds = array<i64: 16, 3>}]} {
    %c0 = arith.constant 0 : index
    %c0_0 = arith.constant 0 : index
    %0 = vector.load %arg1[%c0, %c0_0] : memref<16x27xbf16, #tpu.memory_space<vmem>>, vector<16x27xbf16>
    %cst = arith.constant 0.000000e+00 : bf16
    %1 = vector.broadcast %cst : bf16 to vector<16x27xbf16>
    %2 = arith.maximumf %0, %1 : vector<16x27xbf16>
    %c0_1 = arith.constant 0 : index
    %c0_2 = arith.constant 0 : index
    %3 = vector.load %arg2[%c0_1, %c0_2] : memref<27x3xbf16, #tpu.memory_space<vmem>>, vector<27x3xbf16>
    %cst_3 = arith.constant dense<0.000000e+00> : vector<16x3xf32>
    %4 = tpu.matmul %2, %3, %cst_3 {dimension_numbers = #tpu.dot_dimension_numbers<[1], [0], [0], [1], [0, 0, 1, 1], [], []>} : vector<16x27xbf16>, vector<27x3xbf16>, vector<16x3xf32> -> vector<16x3xf32>
    %c0_4 = arith.constant 0 : index
    %c0_5 = arith.constant 0 : index
    %5 = vector.load %arg3[%c0_4, %c0_5] : memref<1x3xf32, #tpu.memory_space<vmem>>, vector<1x3xf32>
    %6 = vector.broadcast %5 : vector<1x3xf32> to vector<16x3xf32>
    %7 = arith.mulf %4, %6 : vector<16x3xf32>
    %c0_6 = arith.constant 0 : index
    %c0_7 = arith.constant 0 : index
    %8 = vector.load %arg4[%c0_6, %c0_7] : memref<1x3xf32, #tpu.memory_space<vmem>>, vector<1x3xf32>
    %9 = vector.broadcast %8 : vector<1x3xf32> to vector<16x3xf32>
    %10 = arith.addf %7, %9 : vector<16x3xf32>
    %cst_8 = arith.constant 0.000000e+00 : f32
    %11 = vector.broadcast %cst_8 : f32 to vector<16x3xf32>
    %12 = arith.maximumf %10, %11 : vector<16x3xf32>
    %13 = arith.truncf %12 : vector<16x3xf32> to vector<16x3xbf16>
    %c0_9 = arith.constant 0 : index
    %c0_10 = arith.constant 0 : index
    %14 = vector.load %arg5[%c0_9, %c0_10] : memref<3x3xbf16, #tpu.memory_space<vmem>>, vector<3x3xbf16>
    %cst_11 = arith.constant dense<0.000000e+00> : vector<16x3xf32>
    %15 = tpu.matmul %13, %14, %cst_11 {dimension_numbers = #tpu.dot_dimension_numbers<[1], [0], [0], [1], [0, 0, 1, 1], [], []>} : vector<16x3xbf16>, vector<3x3xbf16>, vector<16x3xf32> -> vector<16x3xf32>
    %c0_12 = arith.constant 0 : index
    %c0_13 = arith.constant 0 : index
    %16 = vector.load %arg6[%c0_12, %c0_13] : memref<1x3xf32, #tpu.memory_space<vmem>>, vector<1x3xf32>
    %17 = vector.broadcast %16 : vector<1x3xf32> to vector<16x3xf32>
    %18 = arith.mulf %15, %17 : vector<16x3xf32>
    %c0_14 = arith.constant 0 : index
    %c0_15 = arith.constant 0 : index
    %19 = vector.load %arg7[%c0_14, %c0_15] : memref<1x3xf32, #tpu.memory_space<vmem>>, vector<1x3xf32>
    %20 = vector.broadcast %19 : vector<1x3xf32> to vector<16x3xf32>
    %21 = arith.addf %18, %20 : vector<16x3xf32>
    %c0_16 = arith.constant 0 : index
    %c0_17 = arith.constant 0 : index
    %22 = vector.load %arg8[%c0_16, %c0_17] : memref<16x3xbf16, #tpu.memory_space<vmem>>, vector<16x3xbf16>
    %23 = arith.extf %22 : vector<16x3xbf16> to vector<16x3xf32>
    %24 = arith.addf %21, %23 : vector<16x3xf32>
    %25 = arith.truncf %24 : vector<16x3xf32> to vector<16x3xbf16>
    %c0_18 = arith.constant 0 : index
    %c0_19 = arith.constant 0 : index
    %26 = vector.load %arg9[%c0_18, %c0_19] : memref<16x3xbf16, #tpu.memory_space<vmem>>, vector<16x3xbf16>
    tpu.vector_store %arg9[%c0_18, %c0_19], %25 {strides = array<i32>} : memref<16x3xbf16, #tpu.memory_space<vmem>>, vector<16x3xbf16>,
    return
  }
  func.func @transform_0(%arg0: i32) -> (i32, i32) {
    %c0_i32 = arith.constant 0 : i32
    %c0_i32_0 = arith.constant 0 : i32
    return %arg0, %c0_i32 : i32, i32
  }
  func.func @transform_1(%arg0: i32) -> (i32, i32) {
    %c0_i32 = arith.constant 0 : i32
    %c0_i32_0 = arith.constant 0 : i32
    %c0_i32_1 = arith.constant 0 : i32
    return %c0_i32, %c0_i32_0 : i32, i32
  }
  func.func @transform_2(%arg0: i32) -> (i32, i32) {
    %c0_i32 = arith.constant 0 : i32
    %c0_i32_0 = arith.constant 0 : i32
    %c0_i32_1 = arith.constant 0 : i32
    return %c0_i32, %c0_i32_0 : i32, i32
  }
  func.func @transform_3(%arg0: i32) -> (i32, i32) {
    %c0_i32 = arith.constant 0 : i32
    %c0_i32_0 = arith.constant 0 : i32
    %c0_i32_1 = arith.constant 0 : i32
    return %c0_i32, %c0_i32_0 : i32, i32
  }
  func.func @transform_4(%arg0: i32) -> (i32, i32) {
    %c0_i32 = arith.constant 0 : i32
    %c0_i32_0 = arith.constant 0 : i32
    %c0_i32_1 = arith.constant 0 : i32
    return %c0_i32, %c0_i32_0 : i32, i32
  }
  func.func @transform_5(%arg0: i32) -> (i32, i32) {
    %c0_i32 = arith.constant 0 : i32
    %c0_i32_0 = arith.constant 0 : i32
    %c0_i32_1 = arith.constant 0 : i32
    return %c0_i32, %c0_i32_0 : i32, i32
  }
  func.func @transform_6(%arg0: i32) -> (i32, i32) {
    %c0_i32 = arith.constant 0 : i32
    %c0_i32_0 = arith.constant 0 : i32
    %c0_i32_1 = arith.constant 0 : i32
    return %c0_i32, %c0_i32_0 : i32, i32
  }
  func.func @transform_7(%arg0: i32) -> (i32, i32) {
    %c0_i32 = arith.constant 0 : i32
    %c0_i32_0 = arith.constant 0 : i32
    return %arg0, %c0_i32 : i32, i32
  }
  func.func @transform_8(%arg0: i32) -> (i32, i32) {
    %c0_i32 = arith.constant 0 : i32
    %c0_i32_0 = arith.constant 0 : i32
    return %arg0, %c0_i32 : i32, i32
  }
}

module attributes {stable_mosaic.version = 11 : i64} {
  func.func @_mm_kernel(%arg0: i32, %arg1: memref<16x27xbf16, #tpu.memory_space<vmem>>, %arg2: memref<27x12xbf16, #tpu.memory_space<vmem>>, %arg3: memref<1x12xf32, #tpu.memory_space<vmem>>, %arg4: memref<1x12xf32, #tpu.memory_space<vmem>>, %arg5: memref<16x12xbf16, #tpu.memory_space<vmem>>) attributes {dimension_semantics = [#tpu.dimension_semantics<parallel>], iteration_bounds = array<i64: 2>, scalar_prefetch = 0 : i64, scratch_operands = 0 : i64, tpu.core_type = #tpu.core_type<tc>, window_params = [{transform_indices = @transform_0, window_bounds = array<i64: 16, 27>}, {pipeline_mode = #tpu.pipeline_mode<synchronous>, transform_indices = @transform_1, window_bounds = array<i64: 27, 12>}, {pipeline_mode = #tpu.pipeline_mode<synchronous>, transform_indices = @transform_2, window_bounds = array<i64: 1, 12>}, {pipeline_mode = #tpu.pipeline_mode<synchronous>, transform_indices = @transform_3, window_bounds = array<i64: 1, 12>}, {transform_indices = @transform_4, window_bounds = array<i64: 16, 12>}]} {
    %c0 = arith.constant 0 : index
    %c0_0 = arith.constant 0 : index
    %0 = vector.load %arg1[%c0, %c0_0] : memref<16x27xbf16, #tpu.memory_space<vmem>>, vector<16x27xbf16>
    %c0_1 = arith.constant 0 : index
    %c0_2 = arith.constant 0 : index
    %1 = vector.load %arg2[%c0_1, %c0_2] : memref<27x12xbf16, #tpu.memory_space<vmem>>, vector<27x12xbf16>
    %cst = arith.constant dense<0.000000e+00> : vector<16x12xf32>
    %2 = tpu.matmul %0, %1, %cst {dimension_numbers = #tpu.dot_dimension_numbers<[1], [0], [0], [1], [0, 0, 1, 1], [], []>} : vector<16x27xbf16>, vector<27x12xbf16>, vector<16x12xf32> -> vector<16x12xf32>
    %c0_3 = arith.constant 0 : index
    %c0_4 = arith.constant 0 : index
    %3 = vector.load %arg3[%c0_3, %c0_4] : memref<1x12xf32, #tpu.memory_space<vmem>>, vector<1x12xf32>
    %4 = vector.broadcast %3 : vector<1x12xf32> to vector<16x12xf32>
    %5 = arith.mulf %2, %4 : vector<16x12xf32>
    %c0_5 = arith.constant 0 : index
    %c0_6 = arith.constant 0 : index
    %6 = vector.load %arg4[%c0_5, %c0_6] : memref<1x12xf32, #tpu.memory_space<vmem>>, vector<1x12xf32>
    %7 = vector.broadcast %6 : vector<1x12xf32> to vector<16x12xf32>
    %8 = arith.addf %5, %7 : vector<16x12xf32>
    %cst_7 = arith.constant 0.000000e+00 : f32
    %9 = vector.broadcast %cst_7 : f32 to vector<16x12xf32>
    %10 = arith.maximumf %8, %9 : vector<16x12xf32>
    %11 = arith.truncf %10 : vector<16x12xf32> to vector<16x12xbf16>
    %c0_8 = arith.constant 0 : index
    %c0_9 = arith.constant 0 : index
    %12 = vector.load %arg5[%c0_8, %c0_9] : memref<16x12xbf16, #tpu.memory_space<vmem>>, vector<16x12xbf16>
    tpu.vector_store %arg5[%c0_8, %c0_9], %11 {strides = array<i32>} : memref<16x12xbf16, #tpu.memory_space<vmem>>, vector<16x12xbf16>,
    return
  }
  func.func @transform_0(%arg0: i32) -> (i32, i32) {
    %c0_i32 = arith.constant 0 : i32
    %c0_i32_0 = arith.constant 0 : i32
    return %arg0, %c0_i32 : i32, i32
  }
  func.func @transform_1(%arg0: i32) -> (i32, i32) {
    %c0_i32 = arith.constant 0 : i32
    %c0_i32_0 = arith.constant 0 : i32
    %c0_i32_1 = arith.constant 0 : i32
    return %c0_i32, %c0_i32_0 : i32, i32
  }
  func.func @transform_2(%arg0: i32) -> (i32, i32) {
    %c0_i32 = arith.constant 0 : i32
    %c0_i32_0 = arith.constant 0 : i32
    %c0_i32_1 = arith.constant 0 : i32
    return %c0_i32, %c0_i32_0 : i32, i32
  }
  func.func @transform_3(%arg0: i32) -> (i32, i32) {
    %c0_i32 = arith.constant 0 : i32
    %c0_i32_0 = arith.constant 0 : i32
    %c0_i32_1 = arith.constant 0 : i32
    return %c0_i32, %c0_i32_0 : i32, i32
  }
  func.func @transform_4(%arg0: i32) -> (i32, i32) {
    %c0_i32 = arith.constant 0 : i32
    %c0_i32_0 = arith.constant 0 : i32
    return %arg0, %c0_i32 : i32, i32
  }
}

module attributes {stable_mosaic.version = 11 : i64} {
  func.func @_codebook_kernel(%arg0: i32, %arg1: memref<16x3xbf16, #tpu.memory_space<vmem>>, %arg2: memref<3x16xbf16, #tpu.memory_space<vmem>>, %arg3: memref<1x16xf32, #tpu.memory_space<vmem>>, %arg4: memref<16x128xf32, #tpu.memory_space<vmem>>, %arg5: memref<1x128xf32, #tpu.memory_space<vmem>>, %arg6: memref<128x16xf32, #tpu.memory_space<vmem>>, %arg7: memref<16x3xbf16, #tpu.memory_space<vmem>>, %arg8: memref<1x3xf32, #tpu.memory_space<vmem>>, %arg9: memref<1x3xf32, #tpu.memory_space<vmem>>, %arg10: memref<16x3xbf16, #tpu.memory_space<vmem>>, %arg11: memref<16x1xf32, #tpu.memory_space<vmem>>) attributes {dimension_semantics = [#tpu.dimension_semantics<parallel>], iteration_bounds = array<i64: 2>, scalar_prefetch = 0 : i64, scratch_operands = 0 : i64, tpu.core_type = #tpu.core_type<tc>, window_params = [{transform_indices = @transform_0, window_bounds = array<i64: 16, 3>}, {pipeline_mode = #tpu.pipeline_mode<synchronous>, transform_indices = @transform_1, window_bounds = array<i64: 3, 16>}, {pipeline_mode = #tpu.pipeline_mode<synchronous>, transform_indices = @transform_2, window_bounds = array<i64: 1, 16>}, {pipeline_mode = #tpu.pipeline_mode<synchronous>, transform_indices = @transform_3, window_bounds = array<i64: 16, 128>}, {pipeline_mode = #tpu.pipeline_mode<synchronous>, transform_indices = @transform_4, window_bounds = array<i64: 1, 128>}, {pipeline_mode = #tpu.pipeline_mode<synchronous>, transform_indices = @transform_5, window_bounds = array<i64: 128, 16>}, {pipeline_mode = #tpu.pipeline_mode<synchronous>, transform_indices = @transform_6, window_bounds = array<i64: 16, 3>}, {pipeline_mode = #tpu.pipeline_mode<synchronous>, transform_indices = @transform_7, window_bounds = array<i64: 1, 3>}, {pipeline_mode = #tpu.pipeline_mode<synchronous>, transform_indices = @transform_8, window_bounds = array<i64: 1, 3>}, {transform_indices = @transform_9, window_bounds = array<i64: 16, 3>}, {transform_indices = @transform_10, window_bounds = array<i64: 16, 1>}]} {
    %c0 = arith.constant 0 : index
    %c0_0 = arith.constant 0 : index
    %0 = vector.load %arg1[%c0, %c0_0] : memref<16x3xbf16, #tpu.memory_space<vmem>>, vector<16x3xbf16>
    %c0_1 = arith.constant 0 : index
    %c0_2 = arith.constant 0 : index
    %1 = vector.load %arg2[%c0_1, %c0_2] : memref<3x16xbf16, #tpu.memory_space<vmem>>, vector<3x16xbf16>
    %cst = arith.constant dense<0.000000e+00> : vector<16x16xf32>
    %2 = tpu.matmul %0, %1, %cst {dimension_numbers = #tpu.dot_dimension_numbers<[1], [0], [0], [1], [0, 0, 1, 1], [], []>} : vector<16x3xbf16>, vector<3x16xbf16>, vector<16x16xf32> -> vector<16x16xf32>
    %c0_3 = arith.constant 0 : index
    %c0_4 = arith.constant 0 : index
    %3 = vector.load %arg3[%c0_3, %c0_4] : memref<1x16xf32, #tpu.memory_space<vmem>>, vector<1x16xf32>
    %4 = vector.broadcast %3 : vector<1x16xf32> to vector<16x16xf32>
    %5 = arith.addf %2, %4 : vector<16x16xf32>
    %6 = arith.mulf %5, %5 : vector<16x16xf32>
    %cst_5 = arith.constant dense<0.000000e+00> : vector<16xf32>
    %7 = vector.multi_reduction <add>, %6, %cst_5 [1] : vector<16x16xf32> to vector<16xf32>
    %8 = vector.shape_cast %7 : vector<16xf32> to vector<16x1xf32>
    %c0_6 = arith.constant 0 : index
    %c0_7 = arith.constant 0 : index
    %9 = vector.load %arg4[%c0_6, %c0_7] : memref<16x128xf32, #tpu.memory_space<vmem>>, vector<16x128xf32>
    %cst_8 = arith.constant dense<0.000000e+00> : vector<16x128xf32>
    %10 = tpu.matmul %5, %9, %cst_8 {dimension_numbers = #tpu.dot_dimension_numbers<[1], [0], [0], [1], [0, 0, 1, 1], [], []>} : vector<16x16xf32>, vector<16x128xf32>, vector<16x128xf32> -> vector<16x128xf32>
    %cst_9 = arith.constant 2.000000e+00 : f32
    %11 = vector.broadcast %cst_9 : f32 to vector<16x128xf32>
    %12 = arith.mulf %11, %10 : vector<16x128xf32>
    %13 = vector.broadcast %8 : vector<16x1xf32> to vector<16x128xf32>
    %14 = arith.subf %12, %13 : vector<16x128xf32>
    %c0_10 = arith.constant 0 : index
    %c0_11 = arith.constant 0 : index
    %15 = vector.load %arg5[%c0_10, %c0_11] : memref<1x128xf32, #tpu.memory_space<vmem>>, vector<1x128xf32>
    %16 = vector.broadcast %15 : vector<1x128xf32> to vector<16x128xf32>
    %17 = arith.subf %14, %16 : vector<16x128xf32>
    %cst_12 = arith.constant dense<0xFF800000> : vector<16xf32>
    %18 = vector.multi_reduction <maximumf>, %17, %cst_12 [1] : vector<16x128xf32> to vector<16xf32>
    %19 = vector.shape_cast %18 : vector<16xf32> to vector<16x1xf32>
    %20 = vector.broadcast %19 : vector<16x1xf32> to vector<16x128xf32>
    %21 = arith.subf %17, %20 : vector<16x128xf32>
    %22 = math.exp %21 : vector<16x128xf32>
    %cst_13 = arith.constant dense<0.000000e+00> : vector<16xf32>
    %23 = vector.multi_reduction <add>, %22, %cst_13 [1] : vector<16x128xf32> to vector<16xf32>
    %24 = vector.shape_cast %23 : vector<16xf32> to vector<16x1xf32>
    %25 = tpu.reciprocal %24 {approx = true} : vector<16x1xf32> -> vector<16x1xf32>
    %26 = vector.broadcast %25 : vector<16x1xf32> to vector<16x128xf32>
    %27 = arith.mulf %22, %26 : vector<16x128xf32>
    %28 = vector.broadcast %19 : vector<16x1xf32> to vector<16x128xf32>
    %29 = arith.subf %17, %28 : vector<16x128xf32>
    %30 = math.log %24 : vector<16x1xf32>
    %31 = vector.broadcast %30 : vector<16x1xf32> to vector<16x128xf32>
    %32 = arith.subf %29, %31 : vector<16x128xf32>
    %cst_14 = arith.constant 0.000000e+00 : f32
    %33 = vector.broadcast %cst_14 : f32 to vector<16x128xf32>
    %34 = arith.cmpf oeq, %27, %33 : vector<16x128xf32>
    %cst_15 = arith.constant 3.46573591 : f32
    %35 = vector.broadcast %cst_15 : f32 to vector<16x128xf32>
    %36 = arith.addf %32, %35 : vector<16x128xf32>
    %37 = arith.mulf %27, %36 : vector<16x128xf32>
    %cst_16 = arith.constant 0.000000e+00 : f32
    %38 = vector.broadcast %cst_16 : f32 to vector<16x128xf32>
    %39 = arith.select %34, %38, %37 : vector<16x128xi1>, vector<16x128xf32>
    %cst_17 = arith.constant dense<0.000000e+00> : vector<16xf32>
    %40 = vector.multi_reduction <add>, %39, %cst_17 [1] : vector<16x128xf32> to vector<16xf32>
    %41 = vector.shape_cast %40 : vector<16xf32> to vector<16x1xf32>
    %c0_18 = arith.constant 0 : index
    %c0_19 = arith.constant 0 : index
    %42 = vector.load %arg11[%c0_18, %c0_19] : memref<16x1xf32, #tpu.memory_space<vmem>>, vector<16x1xf32>
    tpu.vector_store %arg11[%c0_18, %c0_19], %41 {strides = array<i32>} : memref<16x1xf32, #tpu.memory_space<vmem>>, vector<16x1xf32>,
    %43 = tpu.iota {dimensions = array<i32: 1>} : vector<16x128xi32>
    %44 = vector.broadcast %19 : vector<16x1xf32> to vector<16x128xf32>
    %45 = arith.cmpf oge, %17, %44 : vector<16x128xf32>
    %c128_i32 = arith.constant 128 : i32
    %46 = vector.broadcast %c128_i32 : i32 to vector<16x128xi32>
    %47 = arith.select %45, %43, %46 : vector<16x128xi1>, vector<16x128xi32>
    %cst_20 = arith.constant dense<2147483647> : vector<16xi32>
    %48 = vector.multi_reduction <minsi>, %47, %cst_20 [1] : vector<16x128xi32> to vector<16xi32>
    %49 = vector.shape_cast %48 : vector<16xi32> to vector<16x1xi32>
    %50 = vector.broadcast %49 : vector<16x1xi32> to vector<16x128xi32>
    %51 = arith.cmpi eq, %43, %50 : vector<16x128xi32>
    %52 = arith.extui %51 : vector<16x128xi1> to vector<16x128xi32>
    %53 = arith.sitofp %52 : vector<16x128xi32> to vector<16x128xf32>
    %c0_21 = arith.constant 0 : index
    %c0_22 = arith.constant 0 : index
    %54 = vector.load %arg6[%c0_21, %c0_22] : memref<128x16xf32, #tpu.memory_space<vmem>>, vector<128x16xf32>
    %cst_23 = arith.constant dense<0.000000e+00> : vector<16x16xf32>
    %55 = tpu.matmul %53, %54, %cst_23 {dimension_numbers = #tpu.dot_dimension_numbers<[1], [0], [0], [1], [0, 0, 1, 1], [], []>} : vector<16x128xf32>, vector<128x16xf32>, vector<16x16xf32> -> vector<16x16xf32>
    %56 = arith.truncf %55 : vector<16x16xf32> to vector<16x16xbf16>
    %c0_24 = arith.constant 0 : index
    %c0_25 = arith.constant 0 : index
    %57 = vector.load %arg7[%c0_24, %c0_25] : memref<16x3xbf16, #tpu.memory_space<vmem>>, vector<16x3xbf16>
    %cst_26 = arith.constant dense<0.000000e+00> : vector<16x3xf32>
    %58 = tpu.matmul %56, %57, %cst_26 {dimension_numbers = #tpu.dot_dimension_numbers<[1], [0], [0], [1], [0, 0, 1, 1], [], []>} : vector<16x16xbf16>, vector<16x3xbf16>, vector<16x3xf32> -> vector<16x3xf32>
    %c0_27 = arith.constant 0 : index
    %c0_28 = arith.constant 0 : index
    %59 = vector.load %arg8[%c0_27, %c0_28] : memref<1x3xf32, #tpu.memory_space<vmem>>, vector<1x3xf32>
    %60 = vector.broadcast %59 : vector<1x3xf32> to vector<16x3xf32>
    %61 = arith.mulf %58, %60 : vector<16x3xf32>
    %c0_29 = arith.constant 0 : index
    %c0_30 = arith.constant 0 : index
    %62 = vector.load %arg9[%c0_29, %c0_30] : memref<1x3xf32, #tpu.memory_space<vmem>>, vector<1x3xf32>
    %63 = vector.broadcast %62 : vector<1x3xf32> to vector<16x3xf32>
    %64 = arith.addf %61, %63 : vector<16x3xf32>
    %65 = arith.truncf %64 : vector<16x3xf32> to vector<16x3xbf16>
    %c0_31 = arith.constant 0 : index
    %c0_32 = arith.constant 0 : index
    %66 = vector.load %arg10[%c0_31, %c0_32] : memref<16x3xbf16, #tpu.memory_space<vmem>>, vector<16x3xbf16>
    tpu.vector_store %arg10[%c0_31, %c0_32], %65 {strides = array<i32>} : memref<16x3xbf16, #tpu.memory_space<vmem>>, vector<16x3xbf16>,
    return
  }
  func.func @transform_0(%arg0: i32) -> (i32, i32) {
    %c0_i32 = arith.constant 0 : i32
    %c0_i32_0 = arith.constant 0 : i32
    return %arg0, %c0_i32 : i32, i32
  }
  func.func @transform_1(%arg0: i32) -> (i32, i32) {
    %c0_i32 = arith.constant 0 : i32
    %c0_i32_0 = arith.constant 0 : i32
    %c0_i32_1 = arith.constant 0 : i32
    return %c0_i32, %c0_i32_0 : i32, i32
  }
  func.func @transform_2(%arg0: i32) -> (i32, i32) {
    %c0_i32 = arith.constant 0 : i32
    %c0_i32_0 = arith.constant 0 : i32
    %c0_i32_1 = arith.constant 0 : i32
    return %c0_i32, %c0_i32_0 : i32, i32
  }
  func.func @transform_3(%arg0: i32) -> (i32, i32) {
    %c0_i32 = arith.constant 0 : i32
    %c0_i32_0 = arith.constant 0 : i32
    %c0_i32_1 = arith.constant 0 : i32
    return %c0_i32, %c0_i32_0 : i32, i32
  }
  func.func @transform_4(%arg0: i32) -> (i32, i32) {
    %c0_i32 = arith.constant 0 : i32
    %c0_i32_0 = arith.constant 0 : i32
    %c0_i32_1 = arith.constant 0 : i32
    return %c0_i32, %c0_i32_0 : i32, i32
  }
  func.func @transform_5(%arg0: i32) -> (i32, i32) {
    %c0_i32 = arith.constant 0 : i32
    %c0_i32_0 = arith.constant 0 : i32
    %c0_i32_1 = arith.constant 0 : i32
    return %c0_i32, %c0_i32_0 : i32, i32
  }
  func.func @transform_6(%arg0: i32) -> (i32, i32) {
    %c0_i32 = arith.constant 0 : i32
    %c0_i32_0 = arith.constant 0 : i32
    %c0_i32_1 = arith.constant 0 : i32
    return %c0_i32, %c0_i32_0 : i32, i32
  }
  func.func @transform_7(%arg0: i32) -> (i32, i32) {
    %c0_i32 = arith.constant 0 : i32
    %c0_i32_0 = arith.constant 0 : i32
    %c0_i32_1 = arith.constant 0 : i32
    return %c0_i32, %c0_i32_0 : i32, i32
  }
  func.func @transform_8(%arg0: i32) -> (i32, i32) {
    %c0_i32 = arith.constant 0 : i32
    %c0_i32_0 = arith.constant 0 : i32
    %c0_i32_1 = arith.constant 0 : i32
    return %c0_i32, %c0_i32_0 : i32, i32
  }
  func.func @transform_9(%arg0: i32) -> (i32, i32) {
    %c0_i32 = arith.constant 0 : i32
    %c0_i32_0 = arith.constant 0 : i32
    return %arg0, %c0_i32 : i32, i32
  }
  func.func @transform_10(%arg0: i32) -> (i32, i32) {
    %c0_i32 = arith.constant 0 : i32
    %c0_i32_0 = arith.constant 0 : i32
    return %arg0, %c0_i32 : i32, i32
  }
}

module attributes {stable_mosaic.version = 11 : i64} {
  func.func @_mm_kernel(%arg0: i32, %arg1: memref<64x27xbf16, #tpu.memory_space<vmem>>, %arg2: memref<27x12xbf16, #tpu.memory_space<vmem>>, %arg3: memref<1x12xf32, #tpu.memory_space<vmem>>, %arg4: memref<1x12xf32, #tpu.memory_space<vmem>>, %arg5: memref<64x12xbf16, #tpu.memory_space<vmem>>) attributes {dimension_semantics = [#tpu.dimension_semantics<parallel>], iteration_bounds = array<i64: 2>, scalar_prefetch = 0 : i64, scratch_operands = 0 : i64, tpu.core_type = #tpu.core_type<tc>, window_params = [{transform_indices = @transform_0, window_bounds = array<i64: 64, 27>}, {pipeline_mode = #tpu.pipeline_mode<synchronous>, transform_indices = @transform_1, window_bounds = array<i64: 27, 12>}, {pipeline_mode = #tpu.pipeline_mode<synchronous>, transform_indices = @transform_2, window_bounds = array<i64: 1, 12>}, {pipeline_mode = #tpu.pipeline_mode<synchronous>, transform_indices = @transform_3, window_bounds = array<i64: 1, 12>}, {transform_indices = @transform_4, window_bounds = array<i64: 64, 12>}]} {
    %c0 = arith.constant 0 : index
    %c0_0 = arith.constant 0 : index
    %0 = vector.load %arg1[%c0, %c0_0] : memref<64x27xbf16, #tpu.memory_space<vmem>>, vector<64x27xbf16>
    %c0_1 = arith.constant 0 : index
    %c0_2 = arith.constant 0 : index
    %1 = vector.load %arg2[%c0_1, %c0_2] : memref<27x12xbf16, #tpu.memory_space<vmem>>, vector<27x12xbf16>
    %cst = arith.constant dense<0.000000e+00> : vector<64x12xf32>
    %2 = tpu.matmul %0, %1, %cst {dimension_numbers = #tpu.dot_dimension_numbers<[1], [0], [0], [1], [0, 0, 1, 1], [], []>} : vector<64x27xbf16>, vector<27x12xbf16>, vector<64x12xf32> -> vector<64x12xf32>
    %c0_3 = arith.constant 0 : index
    %c0_4 = arith.constant 0 : index
    %3 = vector.load %arg3[%c0_3, %c0_4] : memref<1x12xf32, #tpu.memory_space<vmem>>, vector<1x12xf32>
    %4 = vector.broadcast %3 : vector<1x12xf32> to vector<64x12xf32>
    %5 = arith.mulf %2, %4 : vector<64x12xf32>
    %c0_5 = arith.constant 0 : index
    %c0_6 = arith.constant 0 : index
    %6 = vector.load %arg4[%c0_5, %c0_6] : memref<1x12xf32, #tpu.memory_space<vmem>>, vector<1x12xf32>
    %7 = vector.broadcast %6 : vector<1x12xf32> to vector<64x12xf32>
    %8 = arith.addf %5, %7 : vector<64x12xf32>
    %cst_7 = arith.constant 0.000000e+00 : f32
    %9 = vector.broadcast %cst_7 : f32 to vector<64x12xf32>
    %10 = arith.maximumf %8, %9 : vector<64x12xf32>
    %11 = arith.truncf %10 : vector<64x12xf32> to vector<64x12xbf16>
    %c0_8 = arith.constant 0 : index
    %c0_9 = arith.constant 0 : index
    %12 = vector.load %arg5[%c0_8, %c0_9] : memref<64x12xbf16, #tpu.memory_space<vmem>>, vector<64x12xbf16>
    tpu.vector_store %arg5[%c0_8, %c0_9], %11 {strides = array<i32>} : memref<64x12xbf16, #tpu.memory_space<vmem>>, vector<64x12xbf16>,
    return
  }
  func.func @transform_0(%arg0: i32) -> (i32, i32) {
    %c0_i32 = arith.constant 0 : i32
    %c0_i32_0 = arith.constant 0 : i32
    return %arg0, %c0_i32 : i32, i32
  }
  func.func @transform_1(%arg0: i32) -> (i32, i32) {
    %c0_i32 = arith.constant 0 : i32
    %c0_i32_0 = arith.constant 0 : i32
    %c0_i32_1 = arith.constant 0 : i32
    return %c0_i32, %c0_i32_0 : i32, i32
  }
  func.func @transform_2(%arg0: i32) -> (i32, i32) {
    %c0_i32 = arith.constant 0 : i32
    %c0_i32_0 = arith.constant 0 : i32
    %c0_i32_1 = arith.constant 0 : i32
    return %c0_i32, %c0_i32_0 : i32, i32
  }
  func.func @transform_3(%arg0: i32) -> (i32, i32) {
    %c0_i32 = arith.constant 0 : i32
    %c0_i32_0 = arith.constant 0 : i32
    %c0_i32_1 = arith.constant 0 : i32
    return %c0_i32, %c0_i32_0 : i32, i32
  }
  func.func @transform_4(%arg0: i32) -> (i32, i32) {
    %c0_i32 = arith.constant 0 : i32
    %c0_i32_0 = arith.constant 0 : i32
    return %arg0, %c0_i32 : i32, i32
  }
}

module attributes {stable_mosaic.version = 11 : i64} {
  func.func @_mm_kernel(%arg0: i32, %arg1: memref<256x3xbf16, #tpu.memory_space<vmem>>, %arg2: memref<3x3xbf16, #tpu.memory_space<vmem>>, %arg3: memref<1x3xf32, #tpu.memory_space<vmem>>, %arg4: memref<1x3xf32, #tpu.memory_space<vmem>>, %arg5: memref<256x3xf32, #tpu.memory_space<vmem>>) attributes {dimension_semantics = [#tpu.dimension_semantics<parallel>], iteration_bounds = array<i64: 2>, scalar_prefetch = 0 : i64, scratch_operands = 0 : i64, tpu.core_type = #tpu.core_type<tc>, window_params = [{transform_indices = @transform_0, window_bounds = array<i64: 256, 3>}, {pipeline_mode = #tpu.pipeline_mode<synchronous>, transform_indices = @transform_1, window_bounds = array<i64: 3, 3>}, {pipeline_mode = #tpu.pipeline_mode<synchronous>, transform_indices = @transform_2, window_bounds = array<i64: 1, 3>}, {pipeline_mode = #tpu.pipeline_mode<synchronous>, transform_indices = @transform_3, window_bounds = array<i64: 1, 3>}, {transform_indices = @transform_4, window_bounds = array<i64: 256, 3>}]} {
    %c0 = arith.constant 0 : index
    %c0_0 = arith.constant 0 : index
    %0 = vector.load %arg1[%c0, %c0_0] : memref<256x3xbf16, #tpu.memory_space<vmem>>, vector<256x3xbf16>
    %c0_1 = arith.constant 0 : index
    %c0_2 = arith.constant 0 : index
    %1 = vector.load %arg2[%c0_1, %c0_2] : memref<3x3xbf16, #tpu.memory_space<vmem>>, vector<3x3xbf16>
    %cst = arith.constant dense<0.000000e+00> : vector<256x3xf32>
    %2 = tpu.matmul %0, %1, %cst {dimension_numbers = #tpu.dot_dimension_numbers<[1], [0], [0], [1], [0, 0, 1, 1], [], []>} : vector<256x3xbf16>, vector<3x3xbf16>, vector<256x3xf32> -> vector<256x3xf32>
    %c0_3 = arith.constant 0 : index
    %c0_4 = arith.constant 0 : index
    %3 = vector.load %arg3[%c0_3, %c0_4] : memref<1x3xf32, #tpu.memory_space<vmem>>, vector<1x3xf32>
    %4 = vector.broadcast %3 : vector<1x3xf32> to vector<256x3xf32>
    %5 = arith.mulf %2, %4 : vector<256x3xf32>
    %c0_5 = arith.constant 0 : index
    %c0_6 = arith.constant 0 : index
    %6 = vector.load %arg4[%c0_5, %c0_6] : memref<1x3xf32, #tpu.memory_space<vmem>>, vector<1x3xf32>
    %7 = vector.broadcast %6 : vector<1x3xf32> to vector<256x3xf32>
    %8 = arith.addf %5, %7 : vector<256x3xf32>
    %c0_7 = arith.constant 0 : index
    %c0_8 = arith.constant 0 : index
    %9 = vector.load %arg5[%c0_7, %c0_8] : memref<256x3xf32, #tpu.memory_space<vmem>>, vector<256x3xf32>
    tpu.vector_store %arg5[%c0_7, %c0_8], %8 {strides = array<i32>} : memref<256x3xf32, #tpu.memory_space<vmem>>, vector<256x3xf32>,
    return
  }
  func.func @transform_0(%arg0: i32) -> (i32, i32) {
    %c0_i32 = arith.constant 0 : i32
    %c0_i32_0 = arith.constant 0 : i32
    return %arg0, %c0_i32 : i32, i32
  }
  func.func @transform_1(%arg0: i32) -> (i32, i32) {
    %c0_i32 = arith.constant 0 : i32
    %c0_i32_0 = arith.constant 0 : i32
    %c0_i32_1 = arith.constant 0 : i32
    return %c0_i32, %c0_i32_0 : i32, i32
  }
  func.func @transform_2(%arg0: i32) -> (i32, i32) {
    %c0_i32 = arith.constant 0 : i32
    %c0_i32_0 = arith.constant 0 : i32
    %c0_i32_1 = arith.constant 0 : i32
    return %c0_i32, %c0_i32_0 : i32, i32
  }
  func.func @transform_3(%arg0: i32) -> (i32, i32) {
    %c0_i32 = arith.constant 0 : i32
    %c0_i32_0 = arith.constant 0 : i32
    %c0_i32_1 = arith.constant 0 : i32
    return %c0_i32, %c0_i32_0 : i32, i32
  }
  func.func @transform_4(%arg0: i32) -> (i32, i32) {
    %c0_i32 = arith.constant 0 : i32
    %c0_i32_0 = arith.constant 0 : i32
    return %arg0, %c0_i32 : i32, i32
  }
}

</mosaic_0001>

<llo_original>
// kernel: gssoft_forward.10
$region0: #{gssoft_forward.10}
  #allocation0 [shape = 'u32[]', space=smem, size = 0x4, offset = 0x4, fixed_abs, tag = 'smem constant byte address 0x4 - core index']
  #allocation1 [shape = 'u32[144,128]{1,0:T(1,128)}', space=vmem, size = 0x12000, scoped, tag = 'internal scratch']
  %s0 = inlined_call_operand.vmem [shape: bf16[128,48], index: 0, kind: input, shape index: {}]
  %s1 = inlined_call_operand.vmem [shape: bf16[48,3], index: 1, kind: input, shape index: {}]
  %s2 = inlined_call_operand.vmem [shape: f32[1,3], index: 2, kind: input, shape index: {}]
  %s3 = inlined_call_operand.vmem [shape: f32[1,3], index: 3, kind: input, shape index: {}]
  %s4 = inlined_call_operand.vmem [shape: bf16[128,3], index: 4, kind: output, shape index: {}]
  %s5 = sld [smem:[#allocation0]]
  $region49: #{gssoft_forward.10} parent=0
    _
  %s7 = ssub.s32 1, %s5
  %s8 = scalar_select 0, %s7, %s5
  loop: start=0, step=1, limit=4
  $region2: #{gssoft_forward.10} parent=0 // loop_pre_header
    _
  $region3: #{gssoft_forward.10} parent=0 // loop_header
    %s10 = sphi 0, %s14
    %p11 = scmp.ge.s32.totalorder %s10, 4
    %s20 = sphi 0, %s22
    %s23 = sphi 0, %s20
    %s24 = sphi 0, %s23
    %s40 = sphi 0, %s24
    %s44 = sphi 0, %s44
    %s46 = sphi 0, %s44
    %s47 = sphi 0, %s46
    %s61 = sphi 0, %s47
    %s65 = sphi 0, %s65
    %s67 = sphi 0, %s65
    %s68 = sphi 0, %s67
    %s82 = sphi 0, %s68
    %s86 = sphi 0, %s86
    %s88 = sphi 0, %s86
    %s89 = sphi 0, %s88
    %s103 = sphi 0, %s89
    %s109 = sphi 0, %s111
    %s112 = sphi 0, %s109
    %s113 = sphi 0, %s112
    %s129 = sphi 0, %s113
  $region4: #{gssoft_forward.10} parent=0 // loop_header_branch
    %13 = sbr.rel (%p11) target = $region8
  $region5: #{gssoft_forward.10} parent=0 // loop_body
    %s15 = ssub.s32 %s10, 1
    %s16 = ssub.s32 %s10, 2
    %s17 = sadd.s32 %s10, 1
    %s18 = ssub.s32 %s10, %s17
    %p19 = scmp.eq.s32.totalorder %s18, 0
    %s21 = sadd.s32 %s20, 1
    %s22 = scalar_select %p19, %s20, %s21
    %p25 = pneg %p19
    %p26 = scmp.eq.s32.totalorder %s10, 1
    %p27 = por %p25, %p26
    %p28 = scmp.ne.s32.totalorder %s20, %s23
    %p29 = scmp.eq.s32.totalorder %s10, 0
    %p30 = por %p28, %p29
    %p31 = scmp.ne.s32.totalorder %s20, %s23
    %p32 = scmp.eq.s32.totalorder %s15, 1
    %p33 = por %p31, %p32
    %p34 = scmp.ne.s32.totalorder %s23, %s24
    %p35 = scmp.eq.s32.totalorder %s15, 0
    %p36 = por %p34, %p35
    %p37 = scmp.ne.s32.totalorder %s23, %s24
    %p38 = scmp.eq.s32.totalorder %s16, 1
    %p39 = por %p37, %p38
    %p41 = scmp.ne.s32.totalorder %s24, %s40
    %p42 = scmp.eq.s32.totalorder %s16, 0
    %p43 = por %p41, %p42
    %s45 = sadd.s32 %s44, 1
    %p48 = scmp.eq.s32.totalorder %s10, 1
    %p49 = scmp.ne.s32.totalorder %s44, %s46
    %p50 = scmp.eq.s32.totalorder %s10, 0
    %p51 = por %p49, %p50
    %p52 = scmp.ne.s32.totalorder %s44, %s46
    %p53 = scmp.eq.s32.totalorder %s15, 1
    %p54 = por %p52, %p53
    %p55 = scmp.ne.s32.totalorder %s46, %s47
    %p56 = scmp.eq.s32.totalorder %s15, 0
    %p57 = por %p55, %p56
    %p58 = scmp.ne.s32.totalorder %s46, %s47
    %p59 = scmp.eq.s32.totalorder %s16, 1
    %p60 = por %p58, %p59
    %p62 = scmp.ne.s32.totalorder %s47, %s61
    %p63 = scmp.eq.s32.totalorder %s16, 0
    %p64 = por %p62, %p63
    %s66 = sadd.s32 %s65, 1
    %p69 = scmp.eq.s32.totalorder %s10, 1
    %p70 = scmp.ne.s32.totalorder %s65, %s67
    %p71 = scmp.eq.s32.totalorder %s10, 0
    %p72 = por %p70, %p71
    %p73 = scmp.ne.s32.totalorder %s65, %s67
    %p74 = scmp.eq.s32.totalorder %s15, 1
    %p75 = por %p73, %p74
    %p76 = scmp.ne.s32.totalorder %s67, %s68
    %p77 = scmp.eq.s32.totalorder %s15, 0
    %p78 = por %p76, %p77
    %p79 = scmp.ne.s32.totalorder %s67, %s68
    %p80 = scmp.eq.s32.totalorder %s16, 1
    %p81 = por %p79, %p80
    %p83 = scmp.ne.s32.totalorder %s68, %s82
    %p84 = scmp.eq.s32.totalorder %s16, 0
    %p85 = por %p83, %p84
    %s87 = sadd.s32 %s86, 1
    %p90 = scmp.eq.s32.totalorder %s10, 1
    %p91 = scmp.ne.s32.totalorder %s86, %s88
    %p92 = scmp.eq.s32.totalorder %s10, 0
    %p93 = por %p91, %p92
    %p94 = scmp.ne.s32.totalorder %s86, %s88
    %p95 = scmp.eq.s32.totalorder %s15, 1
    %p96 = por %p94, %p95
    %p97 = scmp.ne.s32.totalorder %s88, %s89
    %p98 = scmp.eq.s32.totalorder %s15, 0
    %p99 = por %p97, %p98
    %p100 = scmp.ne.s32.totalorder %s88, %s89
    %p101 = scmp.eq.s32.totalorder %s16, 1
    %p102 = por %p100, %p101
    %p104 = scmp.ne.s32.totalorder %s89, %s103
    %p105 = scmp.eq.s32.totalorder %s16, 0
    %p106 = por %p104, %p105
    %s107 = ssub.s32 %s10, %s17
    %p108 = scmp.eq.s32.totalorder %s107, 0
    %s110 = sadd.s32 %s109, 1
    %s111 = scalar_select %p108, %s109, %s110
    %p114 = pneg %p108
    %p115 = scmp.eq.s32.totalorder %s10, 1
    %p116 = por %p114, %p115
    %p117 = scmp.ne.s32.totalorder %s109, %s112
    %p118 = scmp.eq.s32.totalorder %s10, 0
    %p119 = por %p117, %p118
    %p120 = scmp.ne.s32.totalorder %s109, %s112
    %p121 = scmp.eq.s32.totalorder %s15, 1
    %p122 = por %p120, %p121
    %p123 = scmp.ne.s32.totalorder %s112, %s113
    %p124 = scmp.eq.s32.totalorder %s15, 0
    %p125 = por %p123, %p124
    %p126 = scmp.ne.s32.totalorder %s112, %s113
    %p127 = scmp.eq.s32.totalorder %s16, 1
    %p128 = por %p126, %p127
    %p130 = scmp.ne.s32.totalorder %s113, %s129
    %p131 = scmp.eq.s32.totalorder %s16, 0
    %p132 = por %p130, %p131
    %p133 = scmp.le.s32.totalorder 1, %s10
    %p134 = scmp.lt.s32.totalorder %s10, 3
    %p135 = pnand %p133, %p134
    %p136 = pneg %p135
    // Predicated region
    $region9: #{gssoft_forward.10} parent=5 // pred_check
      _
    $region10: #{gssoft_forward.10} parent=5 // pred_check_branch
      %138 = sbr.rel (%p135) target = $region12
    $region11: #{gssoft_forward.10} parent=5 // pred_region
      %s139 = ssub.s32 %s10, 1
      // Predicated region
      $region13: #{gssoft_forward.10} parent=11 // pred_check
        %p140 = pneg %p57
      $region14: #{gssoft_forward.10} parent=11 // pred_check_branch
        %142 = sbr.rel (%p140) target = $region16
      $region15: #{gssoft_forward.10} parent=11 // pred_region
        _
      $region16: #{gssoft_forward.10} parent=11 // pred_fallthru
        _
      // Predicated region
      $region17: #{gssoft_forward.10} parent=11 // pred_check
        %p143 = pneg %p78
      $region18: #{gssoft_forward.10} parent=11 // pred_check_branch
        %145 = sbr.rel (%p143) target = $region20
      $region19: #{gssoft_forward.10} parent=11 // pred_region
        _
      $region20: #{gssoft_forward.10} parent=11 // pred_fallthru
        _
      // Predicated region
      $region21: #{gssoft_forward.10} parent=11 // pred_check
        %p146 = pneg %p99
      $region22: #{gssoft_forward.10} parent=11 // pred_check_branch
        %148 = sbr.rel (%p146) target = $region24
      $region23: #{gssoft_forward.10} parent=11 // pred_region
        _
      $region24: #{gssoft_forward.10} parent=11 // pred_fallthru
        _
    $region12: #{gssoft_forward.10} parent=5 // pred_fallthru
      _
    %p149 = scmp.lt.s32.totalorder %s10, 2
    // Predicated region
    $region25: #{gssoft_forward.10} parent=5 // pred_check
      %p150 = pneg %p149
    $region26: #{gssoft_forward.10} parent=5 // pred_check_branch
      %152 = sbr.rel (%p150) target = $region28
    $region27: #{gssoft_forward.10} parent=5 // pred_region
      // Predicated region
      $region29: #{gssoft_forward.10} parent=27 // pred_check
        %p153 = pneg %p30
      $region30: #{gssoft_forward.10} parent=27 // pred_check_branch
        %155 = sbr.rel (%p153) target = $region32
      $region31: #{gssoft_forward.10} parent=27 // pred_region
        %s156 = smul.u32 8, %s10
        %p157 = scmp.lt.s32.totalorder %s156, 15
        %s158 = scalar_select %p157, %s156, 15
        %s159 = smul.addr %s158, 4
        %s160 = scalar_lea.vmem %s0, %s159
        %s161 = smul.u32 8, %s10
      $region32: #{gssoft_forward.10} parent=27 // pred_fallthru
        _
    $region28: #{gssoft_forward.10} parent=5 // pred_fallthru
      _
    %p162 = scmp.le.s32.totalorder 1, %s10
    %p163 = scmp.lt.s32.totalorder %s10, 3
    %p164 = pnand %p162, %p163
    %p165 = pneg %p164
    // Predicated region
    $region33: #{gssoft_forward.10} parent=5 // pred_check
      _
    $region34: #{gssoft_forward.10} parent=5 // pred_check_branch
      %167 = sbr.rel (%p164) target = $region36
    $region35: #{gssoft_forward.10} parent=5 // pred_region
      %s168 = ssub.s32 %s10, 1
      %s169 = smul.u32 8, %s15
      %p170 = scmp.lt.s32.totalorder %s169, 15
      %s171 = scalar_select %p170, %s169, 15
      %s172 = smul.addr %s171, 4
      %s173 = scalar_lea.vmem %s0, %s172
      %p174 = pneg %p36
      %p175 = pneg %p33
      %p176 = pneg %p57
      %p177 = pneg %p54
      %p178 = pneg %p78
      %p179 = pneg %p75
      %p180 = pneg %p99
      %p181 = pneg %p96
      %p182 = pneg %p125
      %p183 = pneg %p122
      %s184 = smul.u32 8, %s15
      %p185 = scmp.lt.s32.totalorder %s184, 15
      %s186 = scalar_select %p185, %s184, 15
      %s187 = smul.addr %s186, 4
      %s188 = scalar_lea.vmem %s4, %s187
      %s189 = smul.u32 8, %s15
      %p190 = scmp.lt.s32.totalorder %s189, 15
      %s191 = scalar_select %p190, %s189, 15
      %s192 = smul.addr %s191, 4
      %s193 = scalar_lea.vmem %s0, %s192
      %s194 = smul.u32 8, %s15
      %s195 = smul.u32 8, %s15
      %p196 = scmp.lt.s32.totalorder %s195, 15
      %s197 = scalar_select %p196, %s195, 15
      %s198 = smul.addr %s197, 4
      %s199 = scalar_lea.vmem %s4, %s198
      %s200 = smul.u32 8, %s15
      %v202 = vld [vmem:[%s193] sm:$0xf]
      %v203 = vld [vmem:[%s193 + $0x4] sm:$0xf]
      %v204 = vld [vmem:[%s193 + $0x8] sm:$0xf]
      %v205 = vld [vmem:[%s193 + $0xc] sm:$0xf]
      %v206 = vld [vmem:[%s193 + $0x10] sm:$0xf]
      %v207 = vld [vmem:[%s193 + $0x14] sm:$0xf]
      %v208 = vld [vmem:[%s193 + $0x18] sm:$0xf]
      %v209 = vld [vmem:[%s193 + $0x1c] sm:$0xf]
      %v210 = vld [vmem:[%s1] sm:$0xf]
      %v211 = vld [vmem:[%s1 + $0x4] sm:$0xf]
      %v212 = vld [vmem:[%s1 + $0x8] sm:$0xf]
      %v213 = vld [vmem:[%s1 + $0xc] sm:$0xf]
      %v214 = vld [vmem:[%s1 + $0x10] sm:$0xf]
      %v215 = vld [vmem:[%s1 + $0x14] sm:$0xf]
      %v224 = vunpack.c.l.b16 %v202
      %v225 = vunpack.c.l.b16 %v203
      %v226 = vunpack.c.l.b16 %v204
      %v227 = vunpack.c.l.b16 %v205
      %v228 = vunpack.c.l.b16 %v206
      %v229 = vunpack.c.l.b16 %v207
      %v230 = vunpack.c.l.b16 %v208
      %v231 = vunpack.c.l.b16 %v209
      %v232 = vpack.c.b16 %v225, %v224
      %v233 = vpack.c.b16 %v227, %v226
      %v234 = vpack.c.b16 %v229, %v228
      %v235 = vpack.c.b16 %v231, %v230
      %v242 = vunpack.c.l.b16 %v210
      %v243 = vunpack.c.l.b16 %v211
      %v244 = vunpack.c.l.b16 %v212
      %v245 = vunpack.c.l.b16 %v213
      %v246 = vunpack.c.l.b16 %v214
      %v247 = vunpack.c.l.b16 %v215
      %v248 = vpack.c.b16 %v243, %v242
      %v249 = vpack.c.b16 %v245, %v244
      %v250 = vpack.c.b16 %v247, %v246
      %vm254 = vcmask 392192
      %v256 = vsel %vm254, %v232, 0
      %v259 = vsel %vm254, %v233, 0
      %v262 = vsel %vm254, %v234, 0
      %v265 = vsel %vm254, %v235, 0
      %267 = vmatprep.subr.bf16.mxu0 0
      %268 = vmatpush1.bf16.msra.mxu0 %v248
      %269 = vmatprep.subr.bf16.mxu0 0
      %270 = vmatpush1.bf16.msra.mxu0 %v249
      %271 = vmatprep.subr.bf16.mxu0 0
      %272 = vmatpush1.bf16.msra.mxu0 %v250
      %273 = vmatprep.subr.bf16.mxu0 0
      %274 = vmatpush1.bf16.msra.mxu0 0
      %275 = vmatprep.subr.bf16.mxu0 0
      %276 = vmatpush1.bf16.msra.mxu0 0
      %277 = vmatprep.subr.bf16.mxu0 0
      %278 = vmatpush1.bf16.msra.mxu0 0
      %279 = vmatprep.subr.bf16.mxu0 0
      %280 = vmatpush1.bf16.msra.mxu0 0
      %281 = vmatprep.subr.bf16.mxu0 0
      %282 = vmatpush1.bf16.msra.mxu0 0
      %283 = vmatprep.subr.bf16.mxu0 0
      %284 = vmatpush1.bf16.msra.mxu0 0
      %285 = vmatprep.subr.bf16.mxu0 0
      %286 = vmatpush1.bf16.msra.mxu0 0
      %287 = vmatprep.subr.bf16.mxu0 0
      %288 = vmatpush1.bf16.msra.mxu0 0
      %289 = vmatprep.subr.bf16.mxu0 0
      %290 = vmatpush1.bf16.msra.mxu0 0
      %291 = vmatprep.subr.bf16.mxu0 0
      %292 = vmatpush1.bf16.msra.mxu0 0
      %293 = vmatprep.subr.bf16.mxu0 0
      %294 = vmatpush1.bf16.msra.mxu0 0
      %295 = vmatprep.subr.bf16.mxu0 0
      %296 = vmatpush1.bf16.msra.mxu0 0
      %297 = vmatprep.subr.bf16.mxu0 0
      %298 = vmatpush1.bf16.msra.mxu0 0
      %299 = vmatprep.mubr.bf16.mxu0 0
      %300 = vmatmul.mubr.bf16.gmra.mrb[0].mxu0 %v256
      %v301 = vpop.f32.mrb[0].mxu0
      %v302 = vadd.f32 0.0, %v301
      %v303 = vpop.f32.mrb[0].mxu0
      %v304 = vpop.f32.mrb[0].mxu0
      %v305 = vadd.f32 0.0, %v304
      %v306 = vpop.f32.mrb[0].mxu0
      %307 = vmatprep.mubr.bf16.mxu0 0
      %308 = vmatmul.mubr.bf16.gmra.mrb[0].mxu0 %v259
      %v309 = vpop.f32.mrb[0].mxu0
      %v310 = vadd.f32 0.0, %v309
      %v311 = vpop.f32.mrb[0].mxu0
      %v312 = vpop.f32.mrb[0].mxu0
      %v313 = vadd.f32 0.0, %v312
      %v314 = vpop.f32.mrb[0].mxu0
      %315 = vmatprep.mubr.bf16.mxu0 0
      %316 = vmatmul.mubr.bf16.gmra.mrb[0].mxu0 %v262
      %v317 = vpop.f32.mrb[0].mxu0
      %v318 = vadd.f32 0.0, %v317
      %v319 = vpop.f32.mrb[0].mxu0
      %v320 = vpop.f32.mrb[0].mxu0
      %v321 = vadd.f32 0.0, %v320
      %v322 = vpop.f32.mrb[0].mxu0
      %323 = vmatprep.mubr.bf16.mxu0 0
      %324 = vmatmul.mubr.bf16.gmra.mrb[0].mxu0 %v265
      %v325 = vpop.f32.mrb[0].mxu0
      %v326 = vadd.f32 0.0, %v325
      %v327 = vpop.f32.mrb[0].mxu0
      %v328 = vpop.f32.mrb[0].mxu0
      %v329 = vadd.f32 0.0, %v328
      %v330 = vpop.f32.mrb[0].mxu0
      %331 = vdwg.mxu0
      %v332 = vld [vmem:[%s2] sm:$0x1]
      %v334 = vlaneseq
      %v335 = vshrl.u32 %v334, 7
      %v336 = vsub.s32 0, %v335
      %v337 = vrot.slane %v332, %v336
      %v339 = vmul.f32 %v302, %v337
      %v340 = vmul.f32 %v305, %v337
      %v341 = vmul.f32 %v310, %v337
      %v342 = vmul.f32 %v313, %v337
      %v343 = vmul.f32 %v318, %v337
      %v344 = vmul.f32 %v321, %v337
      %v345 = vmul.f32 %v326, %v337
      %v346 = vmul.f32 %v329, %v337
      %v347 = vld [vmem:[%s3] sm:$0x1]
      %v349 = vlaneseq
      %v350 = vshrl.u32 %v349, 7
      %v351 = vsub.s32 0, %v350
      %v352 = vrot.slane %v347, %v351
      %v354 = vadd.f32 %v339, %v352
      %v355 = vadd.f32 %v340, %v352
      %v356 = vadd.f32 %v341, %v352
      %v357 = vadd.f32 %v342, %v352
      %v358 = vadd.f32 %v343, %v352
      %v359 = vadd.f32 %v344, %v352
      %v360 = vadd.f32 %v345, %v352
      %v361 = vadd.f32 %v346, %v352
      %v362 = vmax.f32 %v354, 0.0
      %v363 = vmax.f32 %v355, 0.0
      %v364 = vmax.f32 %v356, 0.0
      %v365 = vmax.f32 %v357, 0.0
      %v366 = vmax.f32 %v358, 0.0
      %v367 = vmax.f32 %v359, 0.0
      %v368 = vmax.f32 %v360, 0.0
      %v369 = vmax.f32 %v361, 0.0
      %v370 = vpack.c.bf16 %v363, %v362
      %v371 = vpack.c.bf16 %v365, %v364
      %v372 = vpack.c.bf16 %v367, %v366
      %v373 = vpack.c.bf16 %v369, %v368
      %v378 = vunpack.c.l.b16 %v370
      %v379 = vunpack.c.h.b16 %v370
      %v380 = vunpack.c.l.b16 %v371
      %v381 = vunpack.c.h.b16 %v371
      %v382 = vunpack.c.l.b16 %v372
      %v383 = vunpack.c.h.b16 %v372
      %v384 = vunpack.c.l.b16 %v373
      %v385 = vunpack.c.h.b16 %v373
      %v386 = vpack.c.b16 %v378, %v378
      %v387 = vpack.c.b16 %v379, %v379
      %v388 = vpack.c.b16 %v380, %v380
      %v389 = vpack.c.b16 %v381, %v381
      %v390 = vpack.c.b16 %v382, %v382
      %v391 = vpack.c.b16 %v383, %v383
      %v392 = vpack.c.b16 %v384, %v384
      %v393 = vpack.c.b16 %v385, %v385
      %vm402 = vcmask 19456
      %403 = vst.msk [vmem:[%s199] sm:$0xf] %vm402, %v386
      %404 = vst.msk [vmem:[%s199 + $0x4] sm:$0xf] %vm402, %v387
      %405 = vst.msk [vmem:[%s199 + $0x8] sm:$0xf] %vm402, %v388
      %406 = vst.msk [vmem:[%s199 + $0xc] sm:$0xf] %vm402, %v389
      %407 = vst.msk [vmem:[%s199 + $0x10] sm:$0xf] %vm402, %v390
      %408 = vst.msk [vmem:[%s199 + $0x14] sm:$0xf] %vm402, %v391
      %409 = vst.msk [vmem:[%s199 + $0x18] sm:$0xf] %vm402, %v392
      %410 = vst.msk [vmem:[%s199 + $0x1c] sm:$0xf] %vm402, %v393
      %s411 = smul.u32 8, %s15
      %p412 = scmp.lt.s32.totalorder %s411, 15
      %s413 = scalar_select %p412, %s411, 15
      %s414 = smul.addr %s413, 4
      %s415 = scalar_lea.vmem %s4, %s414
      // Predicated region
      $region37: #{gssoft_forward.10} parent=35 // pred_check
        %p416 = pneg %p122
      $region38: #{gssoft_forward.10} parent=35 // pred_check_branch
        %418 = sbr.rel (%p416) target = $region40
      $region39: #{gssoft_forward.10} parent=35 // pred_region
        %s419 = smul.u32 8, %s15
      $region40: #{gssoft_forward.10} parent=35 // pred_fallthru
        _
    $region36: #{gssoft_forward.10} parent=5 // pred_fallthru
      _
    %p420 = scmp.le.s32.totalorder 2, %s10
    // Predicated region
    $region41: #{gssoft_forward.10} parent=5 // pred_check
      %p421 = pneg %p420
    $region42: #{gssoft_forward.10} parent=5 // pred_check_branch
      %423 = sbr.rel (%p421) target = $region44
    $region43: #{gssoft_forward.10} parent=5 // pred_region
      %s424 = ssub.s32 %s10, 2
      // Predicated region
      $region45: #{gssoft_forward.10} parent=43 // pred_check
        %p425 = pneg %p128
      $region46: #{gssoft_forward.10} parent=43 // pred_check_branch
        %427 = sbr.rel (%p425) target = $region48
      $region47: #{gssoft_forward.10} parent=43 // pred_region
        %s428 = smul.u32 8, %s16
        %p429 = scmp.lt.s32.totalorder %s428, 15
        %s430 = scalar_select %p429, %s428, 15
        %s431 = smul.addr %s430, 4
        %s432 = scalar_lea.vmem %s4, %s431
      $region48: #{gssoft_forward.10} parent=43 // pred_fallthru
        _
    $region44: #{gssoft_forward.10} parent=5 // pred_fallthru
      _
  $region6: #{gssoft_forward.10} parent=0 // loop_footer
    %s14 = sadd.s32 1, %s10
  $region7: #{gssoft_forward.10} parent=0 // loop_footer_branch
    %9 = sbr.rel target = $region3
  $region8: #{gssoft_forward.10} parent=0 // loop_exit
    _

// kernel: gssoft_forward.11
$region0: #{gssoft_forward.11}
  #allocation0 [shape = 'u32[]', space=smem, size = 0x4, offset = 0x4, fixed_abs, tag = 'smem constant byte address 0x4 - core index']
  #allocation1 [shape = 'u32[144,128]{1,0:T(1,128)}', space=vmem, size = 0x12000, scoped, tag = 'internal scratch']
  %s0 = inlined_call_operand.vmem [shape: bf16[32,48], index: 0, kind: input, shape index: {}]
  %s1 = inlined_call_operand.vmem [shape: bf16[48,3], index: 1, kind: input, shape index: {}]
  %s2 = inlined_call_operand.vmem [shape: f32[1,3], index: 2, kind: input, shape index: {}]
  %s3 = inlined_call_operand.vmem [shape: f32[1,3], index: 3, kind: input, shape index: {}]
  %s4 = inlined_call_operand.vmem [shape: bf16[32,3], index: 4, kind: output, shape index: {}]
  %s5 = sld [smem:[#allocation0]]
  $region49: #{gssoft_forward.11} parent=0
    _
  %s7 = ssub.s32 1, %s5
  %s8 = scalar_select 0, %s7, %s5
  loop: start=0, step=1, limit=4
  $region2: #{gssoft_forward.11} parent=0 // loop_pre_header
    _
  $region3: #{gssoft_forward.11} parent=0 // loop_header
    %s10 = sphi 0, %s14
    %p11 = scmp.ge.s32.totalorder %s10, 4
    %s20 = sphi 0, %s22
    %s23 = sphi 0, %s20
    %s24 = sphi 0, %s23
    %s40 = sphi 0, %s24
    %s44 = sphi 0, %s44
    %s46 = sphi 0, %s44
    %s47 = sphi 0, %s46
    %s61 = sphi 0, %s47
    %s65 = sphi 0, %s65
    %s67 = sphi 0, %s65
    %s68 = sphi 0, %s67
    %s82 = sphi 0, %s68
    %s86 = sphi 0, %s86
    %s88 = sphi 0, %s86
    %s89 = sphi 0, %s88
    %s103 = sphi 0, %s89
    %s109 = sphi 0, %s111
    %s112 = sphi 0, %s109
    %s113 = sphi 0, %s112
    %s129 = sphi 0, %s113
  $region4: #{gssoft_forward.11} parent=0 // loop_header_branch
    %13 = sbr.rel (%p11) target = $region8
  $region5: #{gssoft_forward.11} parent=0 // loop_body
    %s15 = ssub.s32 %s10, 1
    %s16 = ssub.s32 %s10, 2
    %s17 = sadd.s32 %s10, 1
    %s18 = ssub.s32 %s10, %s17
    %p19 = scmp.eq.s32.totalorder %s18, 0
    %s21 = sadd.s32 %s20, 1
    %s22 = scalar_select %p19, %s20, %s21
    %p25 = pneg %p19
    %p26 = scmp.eq.s32.totalorder %s10, 1
    %p27 = por %p25, %p26
    %p28 = scmp.ne.s32.totalorder %s20, %s23
    %p29 = scmp.eq.s32.totalorder %s10, 0
    %p30 = por %p28, %p29
    %p31 = scmp.ne.s32.totalorder %s20, %s23
    %p32 = scmp.eq.s32.totalorder %s15, 1
    %p33 = por %p31, %p32
    %p34 = scmp.ne.s32.totalorder %s23, %s24
    %p35 = scmp.eq.s32.totalorder %s15, 0
    %p36 = por %p34, %p35
    %p37 = scmp.ne.s32.totalorder %s23, %s24
    %p38 = scmp.eq.s32.totalorder %s16, 1
    %p39 = por %p37, %p38
    %p41 = scmp.ne.s32.totalorder %s24, %s40
    %p42 = scmp.eq.s32.totalorder %s16, 0
    %p43 = por %p41, %p42
    %s45 = sadd.s32 %s44, 1
    %p48 = scmp.eq.s32.totalorder %s10, 1
    %p49 = scmp.ne.s32.totalorder %s44, %s46
    %p50 = scmp.eq.s32.totalorder %s10, 0
    %p51 = por %p49, %p50
    %p52 = scmp.ne.s32.totalorder %s44, %s46
    %p53 = scmp.eq.s32.totalorder %s15, 1
    %p54 = por %p52, %p53
    %p55 = scmp.ne.s32.totalorder %s46, %s47
    %p56 = scmp.eq.s32.totalorder %s15, 0
    %p57 = por %p55, %p56
    %p58 = scmp.ne.s32.totalorder %s46, %s47
    %p59 = scmp.eq.s32.totalorder %s16, 1
    %p60 = por %p58, %p59
    %p62 = scmp.ne.s32.totalorder %s47, %s61
    %p63 = scmp.eq.s32.totalorder %s16, 0
    %p64 = por %p62, %p63
    %s66 = sadd.s32 %s65, 1
    %p69 = scmp.eq.s32.totalorder %s10, 1
    %p70 = scmp.ne.s32.totalorder %s65, %s67
    %p71 = scmp.eq.s32.totalorder %s10, 0
    %p72 = por %p70, %p71
    %p73 = scmp.ne.s32.totalorder %s65, %s67
    %p74 = scmp.eq.s32.totalorder %s15, 1
    %p75 = por %p73, %p74
    %p76 = scmp.ne.s32.totalorder %s67, %s68
    %p77 = scmp.eq.s32.totalorder %s15, 0
    %p78 = por %p76, %p77
    %p79 = scmp.ne.s32.totalorder %s67, %s68
    %p80 = scmp.eq.s32.totalorder %s16, 1
    %p81 = por %p79, %p80
    %p83 = scmp.ne.s32.totalorder %s68, %s82
    %p84 = scmp.eq.s32.totalorder %s16, 0
    %p85 = por %p83, %p84
    %s87 = sadd.s32 %s86, 1
    %p90 = scmp.eq.s32.totalorder %s10, 1
    %p91 = scmp.ne.s32.totalorder %s86, %s88
    %p92 = scmp.eq.s32.totalorder %s10, 0
    %p93 = por %p91, %p92
    %p94 = scmp.ne.s32.totalorder %s86, %s88
    %p95 = scmp.eq.s32.totalorder %s15, 1
    %p96 = por %p94, %p95
    %p97 = scmp.ne.s32.totalorder %s88, %s89
    %p98 = scmp.eq.s32.totalorder %s15, 0
    %p99 = por %p97, %p98
    %p100 = scmp.ne.s32.totalorder %s88, %s89
    %p101 = scmp.eq.s32.totalorder %s16, 1
    %p102 = por %p100, %p101
    %p104 = scmp.ne.s32.totalorder %s89, %s103
    %p105 = scmp.eq.s32.totalorder %s16, 0
    %p106 = por %p104, %p105
    %s107 = ssub.s32 %s10, %s17
    %p108 = scmp.eq.s32.totalorder %s107, 0
    %s110 = sadd.s32 %s109, 1
    %s111 = scalar_select %p108, %s109, %s110
    %p114 = pneg %p108
    %p115 = scmp.eq.s32.totalorder %s10, 1
    %p116 = por %p114, %p115
    %p117 = scmp.ne.s32.totalorder %s109, %s112
    %p118 = scmp.eq.s32.totalorder %s10, 0
    %p119 = por %p117, %p118
    %p120 = scmp.ne.s32.totalorder %s109, %s112
    %p121 = scmp.eq.s32.totalorder %s15, 1
    %p122 = por %p120, %p121
    %p123 = scmp.ne.s32.totalorder %s112, %s113
    %p124 = scmp.eq.s32.totalorder %s15, 0
    %p125 = por %p123, %p124
    %p126 = scmp.ne.s32.totalorder %s112, %s113
    %p127 = scmp.eq.s32.totalorder %s16, 1
    %p128 = por %p126, %p127
    %p130 = scmp.ne.s32.totalorder %s113, %s129
    %p131 = scmp.eq.s32.totalorder %s16, 0
    %p132 = por %p130, %p131
    %p133 = scmp.le.s32.totalorder 1, %s10
    %p134 = scmp.lt.s32.totalorder %s10, 3
    %p135 = pnand %p133, %p134
    %p136 = pneg %p135
    // Predicated region
    $region9: #{gssoft_forward.11} parent=5 // pred_check
      _
    $region10: #{gssoft_forward.11} parent=5 // pred_check_branch
      %138 = sbr.rel (%p135) target = $region12
    $region11: #{gssoft_forward.11} parent=5 // pred_region
      %s139 = ssub.s32 %s10, 1
      // Predicated region
      $region13: #{gssoft_forward.11} parent=11 // pred_check
        %p140 = pneg %p57
      $region14: #{gssoft_forward.11} parent=11 // pred_check_branch
        %142 = sbr.rel (%p140) target = $region16
      $region15: #{gssoft_forward.11} parent=11 // pred_region
        _
      $region16: #{gssoft_forward.11} parent=11 // pred_fallthru
        _
      // Predicated region
      $region17: #{gssoft_forward.11} parent=11 // pred_check
        %p143 = pneg %p78
      $region18: #{gssoft_forward.11} parent=11 // pred_check_branch
        %145 = sbr.rel (%p143) target = $region20
      $region19: #{gssoft_forward.11} parent=11 // pred_region
        _
      $region20: #{gssoft_forward.11} parent=11 // pred_fallthru
        _
      // Predicated region
      $region21: #{gssoft_forward.11} parent=11 // pred_check
        %p146 = pneg %p99
      $region22: #{gssoft_forward.11} parent=11 // pred_check_branch
        %148 = sbr.rel (%p146) target = $region24
      $region23: #{gssoft_forward.11} parent=11 // pred_region
        _
      $region24: #{gssoft_forward.11} parent=11 // pred_fallthru
        _
    $region12: #{gssoft_forward.11} parent=5 // pred_fallthru
      _
    %p149 = scmp.lt.s32.totalorder %s10, 2
    // Predicated region
    $region25: #{gssoft_forward.11} parent=5 // pred_check
      %p150 = pneg %p149
    $region26: #{gssoft_forward.11} parent=5 // pred_check_branch
      %152 = sbr.rel (%p150) target = $region28
    $region27: #{gssoft_forward.11} parent=5 // pred_region
      // Predicated region
      $region29: #{gssoft_forward.11} parent=27 // pred_check
        %p153 = pneg %p30
      $region30: #{gssoft_forward.11} parent=27 // pred_check_branch
        %155 = sbr.rel (%p153) target = $region32
      $region31: #{gssoft_forward.11} parent=27 // pred_region
        %s156 = smul.u32 2, %s10
        %p157 = scmp.lt.s32.totalorder %s156, 3
        %s158 = scalar_select %p157, %s156, 3
        %s159 = smul.addr %s158, 4
        %s160 = scalar_lea.vmem %s0, %s159
        %s161 = smul.u32 2, %s10
      $region32: #{gssoft_forward.11} parent=27 // pred_fallthru
        _
    $region28: #{gssoft_forward.11} parent=5 // pred_fallthru
      _
    %p162 = scmp.le.s32.totalorder 1, %s10
    %p163 = scmp.lt.s32.totalorder %s10, 3
    %p164 = pnand %p162, %p163
    %p165 = pneg %p164
    // Predicated region
    $region33: #{gssoft_forward.11} parent=5 // pred_check
      _
    $region34: #{gssoft_forward.11} parent=5 // pred_check_branch
      %167 = sbr.rel (%p164) target = $region36
    $region35: #{gssoft_forward.11} parent=5 // pred_region
      %s168 = ssub.s32 %s10, 1
      %s169 = smul.u32 2, %s15
      %p170 = scmp.lt.s32.totalorder %s169, 3
      %s171 = scalar_select %p170, %s169, 3
      %s172 = smul.addr %s171, 4
      %s173 = scalar_lea.vmem %s0, %s172
      %p174 = pneg %p36
      %p175 = pneg %p33
      %p176 = pneg %p57
      %p177 = pneg %p54
      %p178 = pneg %p78
      %p179 = pneg %p75
      %p180 = pneg %p99
      %p181 = pneg %p96
      %p182 = pneg %p125
      %p183 = pneg %p122
      %s184 = smul.u32 2, %s15
      %p185 = scmp.lt.s32.totalorder %s184, 3
      %s186 = scalar_select %p185, %s184, 3
      %s187 = smul.addr %s186, 4
      %s188 = scalar_lea.vmem %s4, %s187
      %s189 = smul.u32 2, %s15
      %p190 = scmp.lt.s32.totalorder %s189, 3
      %s191 = scalar_select %p190, %s189, 3
      %s192 = smul.addr %s191, 4
      %s193 = scalar_lea.vmem %s0, %s192
      %s194 = smul.u32 2, %s15
      %s195 = smul.u32 2, %s15
      %p196 = scmp.lt.s32.totalorder %s195, 3
      %s197 = scalar_select %p196, %s195, 3
      %s198 = smul.addr %s197, 4
      %s199 = scalar_lea.vmem %s4, %s198
      %s200 = smul.u32 2, %s15
      %v202 = vld [vmem:[%s193] sm:$0xf]
      %v203 = vld [vmem:[%s193 + $0x4] sm:$0xf]
      %v204 = vld [vmem:[%s1] sm:$0xf]
      %v205 = vld [vmem:[%s1 + $0x4] sm:$0xf]
      %v206 = vld [vmem:[%s1 + $0x8] sm:$0xf]
      %v207 = vld [vmem:[%s1 + $0xc] sm:$0xf]
      %v208 = vld [vmem:[%s1 + $0x10] sm:$0xf]
      %v209 = vld [vmem:[%s1 + $0x14] sm:$0xf]
      %v212 = vunpack.c.l.b16 %v202
      %v213 = vunpack.c.l.b16 %v203
      %v214 = vpack.c.b16 %v213, %v212
      %v221 = vunpack.c.l.b16 %v204
      %v222 = vunpack.c.l.b16 %v205
      %v223 = vunpack.c.l.b16 %v206
      %v224 = vunpack.c.l.b16 %v207
      %v225 = vunpack.c.l.b16 %v208
      %v226 = vunpack.c.l.b16 %v209
      %v227 = vpack.c.b16 %v222, %v221
      %v228 = vpack.c.b16 %v224, %v223
      %v229 = vpack.c.b16 %v226, %v225
      %vm233 = vcmask 392192
      %v235 = vsel %vm233, %v214, 0
      %237 = vmatprep.subr.bf16.mxu0 0
      %238 = vmatpush1.bf16.msra.mxu0 %v227
      %239 = vmatprep.subr.bf16.mxu0 0
      %240 = vmatpush1.bf16.msra.mxu0 %v228
      %241 = vmatprep.subr.bf16.mxu0 0
      %242 = vmatpush1.bf16.msra.mxu0 %v229
      %243 = vmatprep.subr.bf16.mxu0 0
      %244 = vmatpush1.bf16.msra.mxu0 0
      %245 = vmatprep.subr.bf16.mxu0 0
      %246 = vmatpush1.bf16.msra.mxu0 0
      %247 = vmatprep.subr.bf16.mxu0 0
      %248 = vmatpush1.bf16.msra.mxu0 0
      %249 = vmatprep.subr.bf16.mxu0 0
      %250 = vmatpush1.bf16.msra.mxu0 0
      %251 = vmatprep.subr.bf16.mxu0 0
      %252 = vmatpush1.bf16.msra.mxu0 0
      %253 = vmatprep.subr.bf16.mxu0 0
      %254 = vmatpush1.bf16.msra.mxu0 0
      %255 = vmatprep.subr.bf16.mxu0 0
      %256 = vmatpush1.bf16.msra.mxu0 0
      %257 = vmatprep.subr.bf16.mxu0 0
      %258 = vmatpush1.bf16.msra.mxu0 0
      %259 = vmatprep.subr.bf16.mxu0 0
      %260 = vmatpush1.bf16.msra.mxu0 0
      %261 = vmatprep.subr.bf16.mxu0 0
      %262 = vmatpush1.bf16.msra.mxu0 0
      %263 = vmatprep.subr.bf16.mxu0 0
      %264 = vmatpush1.bf16.msra.mxu0 0
      %265 = vmatprep.subr.bf16.mxu0 0
      %266 = vmatpush1.bf16.msra.mxu0 0
      %267 = vmatprep.subr.bf16.mxu0 0
      %268 = vmatpush1.bf16.msra.mxu0 0
      %269 = vmatprep.mubr.bf16.mxu0 0
      %270 = vmatmul.mubr.bf16.gmra.mrb[0].mxu0 %v235
      %v271 = vpop.f32.mrb[0].mxu0
      %v272 = vadd.f32 0.0, %v271
      %v273 = vpop.f32.mrb[0].mxu0
      %v274 = vpop.f32.mrb[0].mxu0
      %v275 = vadd.f32 0.0, %v274
      %v276 = vpop.f32.mrb[0].mxu0
      %277 = vdwg.mxu0
      %v278 = vld [vmem:[%s2] sm:$0x1]
      %v280 = vlaneseq
      %v281 = vshrl.u32 %v280, 7
      %v282 = vsub.s32 0, %v281
      %v283 = vrot.slane %v278, %v282
      %v285 = vmul.f32 %v272, %v283
      %v286 = vmul.f32 %v275, %v283
      %v287 = vld [vmem:[%s3] sm:$0x1]
      %v289 = vlaneseq
      %v290 = vshrl.u32 %v289, 7
      %v291 = vsub.s32 0, %v290
      %v292 = vrot.slane %v287, %v291
      %v294 = vadd.f32 %v285, %v292
      %v295 = vadd.f32 %v286, %v292
      %v296 = vpack.c.bf16 %v295, %v294
      %v298 = vunpack.c.l.b16 %v296
      %v299 = vunpack.c.h.b16 %v296
      %v300 = vpack.c.b16 %v298, %v298
      %v301 = vpack.c.b16 %v299, %v299
      %vm304 = vcmask 19456
      %305 = vst.msk [vmem:[%s199] sm:$0xf] %vm304, %v300
      %306 = vst.msk [vmem:[%s199 + $0x4] sm:$0xf] %vm304, %v301
      %s307 = smul.u32 2, %s15
      %p308 = scmp.lt.s32.totalorder %s307, 3
      %s309 = scalar_select %p308, %s307, 3
      %s310 = smul.addr %s309, 4
      %s311 = scalar_lea.vmem %s4, %s310
      // Predicated region
      $region37: #{gssoft_forward.11} parent=35 // pred_check
        %p312 = pneg %p122
      $region38: #{gssoft_forward.11} parent=35 // pred_check_branch
        %314 = sbr.rel (%p312) target = $region40
      $region39: #{gssoft_forward.11} parent=35 // pred_region
        %s315 = smul.u32 2, %s15
      $region40: #{gssoft_forward.11} parent=35 // pred_fallthru
        _
    $region36: #{gssoft_forward.11} parent=5 // pred_fallthru
      _
    %p316 = scmp.le.s32.totalorder 2, %s10
    // Predicated region
    $region41: #{gssoft_forward.11} parent=5 // pred_check
      %p317 = pneg %p316
    $region42: #{gssoft_forward.11} parent=5 // pred_check_branch
      %319 = sbr.rel (%p317) target = $region44
    $region43: #{gssoft_forward.11} parent=5 // pred_region
      %s320 = ssub.s32 %s10, 2
      // Predicated region
      $region45: #{gssoft_forward.11} parent=43 // pred_check
        %p321 = pneg %p128
      $region46: #{gssoft_forward.11} parent=43 // pred_check_branch
        %323 = sbr.rel (%p321) target = $region48
      $region47: #{gssoft_forward.11} parent=43 // pred_region
        %s324 = smul.u32 2, %s16
        %p325 = scmp.lt.s32.totalorder %s324, 3
        %s326 = scalar_select %p325, %s324, 3
        %s327 = smul.addr %s326, 4
        %s328 = scalar_lea.vmem %s4, %s327
      $region48: #{gssoft_forward.11} parent=43 // pred_fallthru
        _
    $region44: #{gssoft_forward.11} parent=5 // pred_fallthru
      _
  $region6: #{gssoft_forward.11} parent=0 // loop_footer
    %s14 = sadd.s32 1, %s10
  $region7: #{gssoft_forward.11} parent=0 // loop_footer_branch
    %9 = sbr.rel target = $region3
  $region8: #{gssoft_forward.11} parent=0 // loop_exit
    _

// kernel: gssoft_forward.17
$region0: #{gssoft_forward.17}
  #allocation0 [shape = 'u32[]', space=smem, size = 0x4, offset = 0x4, fixed_abs, tag = 'smem constant byte address 0x4 - core index']
  #allocation1 [shape = 'u32[144,128]{1,0:T(1,128)}', space=vmem, size = 0x12000, scoped, tag = 'internal scratch']
  %s0 = inlined_call_operand.vmem [shape: bf16[32,27], index: 0, kind: input, shape index: {}]
  %s1 = inlined_call_operand.vmem [shape: bf16[27,12], index: 1, kind: input, shape index: {}]
  %s2 = inlined_call_operand.vmem [shape: f32[1,12], index: 2, kind: input, shape index: {}]
  %s3 = inlined_call_operand.vmem [shape: f32[1,12], index: 3, kind: input, shape index: {}]
  %s4 = inlined_call_operand.vmem [shape: bf16[32,12], index: 4, kind: output, shape index: {}]
  %s5 = sld [smem:[#allocation0]]
  $region49: #{gssoft_forward.17} parent=0
    _
  %s7 = ssub.s32 1, %s5
  %s8 = scalar_select 0, %s7, %s5
  loop: start=0, step=1, limit=4
  $region2: #{gssoft_forward.17} parent=0 // loop_pre_header
    _
  $region3: #{gssoft_forward.17} parent=0 // loop_header
    %s10 = sphi 0, %s14
    %p11 = scmp.ge.s32.totalorder %s10, 4
    %s20 = sphi 0, %s22
    %s23 = sphi 0, %s20
    %s24 = sphi 0, %s23
    %s40 = sphi 0, %s24
    %s44 = sphi 0, %s44
    %s46 = sphi 0, %s44
    %s47 = sphi 0, %s46
    %s61 = sphi 0, %s47
    %s65 = sphi 0, %s65
    %s67 = sphi 0, %s65
    %s68 = sphi 0, %s67
    %s82 = sphi 0, %s68
    %s86 = sphi 0, %s86
    %s88 = sphi 0, %s86
    %s89 = sphi 0, %s88
    %s103 = sphi 0, %s89
    %s109 = sphi 0, %s111
    %s112 = sphi 0, %s109
    %s113 = sphi 0, %s112
    %s129 = sphi 0, %s113
  $region4: #{gssoft_forward.17} parent=0 // loop_header_branch
    %13 = sbr.rel (%p11) target = $region8
  $region5: #{gssoft_forward.17} parent=0 // loop_body
    %s15 = ssub.s32 %s10, 1
    %s16 = ssub.s32 %s10, 2
    %s17 = sadd.s32 %s10, 1
    %s18 = ssub.s32 %s10, %s17
    %p19 = scmp.eq.s32.totalorder %s18, 0
    %s21 = sadd.s32 %s20, 1
    %s22 = scalar_select %p19, %s20, %s21
    %p25 = pneg %p19
    %p26 = scmp.eq.s32.totalorder %s10, 1
    %p27 = por %p25, %p26
    %p28 = scmp.ne.s32.totalorder %s20, %s23
    %p29 = scmp.eq.s32.totalorder %s10, 0
    %p30 = por %p28, %p29
    %p31 = scmp.ne.s32.totalorder %s20, %s23
    %p32 = scmp.eq.s32.totalorder %s15, 1
    %p33 = por %p31, %p32
    %p34 = scmp.ne.s32.totalorder %s23, %s24
    %p35 = scmp.eq.s32.totalorder %s15, 0
    %p36 = por %p34, %p35
    %p37 = scmp.ne.s32.totalorder %s23, %s24
    %p38 = scmp.eq.s32.totalorder %s16, 1
    %p39 = por %p37, %p38
    %p41 = scmp.ne.s32.totalorder %s24, %s40
    %p42 = scmp.eq.s32.totalorder %s16, 0
    %p43 = por %p41, %p42
    %s45 = sadd.s32 %s44, 1
    %p48 = scmp.eq.s32.totalorder %s10, 1
    %p49 = scmp.ne.s32.totalorder %s44, %s46
    %p50 = scmp.eq.s32.totalorder %s10, 0
    %p51 = por %p49, %p50
    %p52 = scmp.ne.s32.totalorder %s44, %s46
    %p53 = scmp.eq.s32.totalorder %s15, 1
    %p54 = por %p52, %p53
    %p55 = scmp.ne.s32.totalorder %s46, %s47
    %p56 = scmp.eq.s32.totalorder %s15, 0
    %p57 = por %p55, %p56
    %p58 = scmp.ne.s32.totalorder %s46, %s47
    %p59 = scmp.eq.s32.totalorder %s16, 1
    %p60 = por %p58, %p59
    %p62 = scmp.ne.s32.totalorder %s47, %s61
    %p63 = scmp.eq.s32.totalorder %s16, 0
    %p64 = por %p62, %p63
    %s66 = sadd.s32 %s65, 1
    %p69 = scmp.eq.s32.totalorder %s10, 1
    %p70 = scmp.ne.s32.totalorder %s65, %s67
    %p71 = scmp.eq.s32.totalorder %s10, 0
    %p72 = por %p70, %p71
    %p73 = scmp.ne.s32.totalorder %s65, %s67
    %p74 = scmp.eq.s32.totalorder %s15, 1
    %p75 = por %p73, %p74
    %p76 = scmp.ne.s32.totalorder %s67, %s68
    %p77 = scmp.eq.s32.totalorder %s15, 0
    %p78 = por %p76, %p77
    %p79 = scmp.ne.s32.totalorder %s67, %s68
    %p80 = scmp.eq.s32.totalorder %s16, 1
    %p81 = por %p79, %p80
    %p83 = scmp.ne.s32.totalorder %s68, %s82
    %p84 = scmp.eq.s32.totalorder %s16, 0
    %p85 = por %p83, %p84
    %s87 = sadd.s32 %s86, 1
    %p90 = scmp.eq.s32.totalorder %s10, 1
    %p91 = scmp.ne.s32.totalorder %s86, %s88
    %p92 = scmp.eq.s32.totalorder %s10, 0
    %p93 = por %p91, %p92
    %p94 = scmp.ne.s32.totalorder %s86, %s88
    %p95 = scmp.eq.s32.totalorder %s15, 1
    %p96 = por %p94, %p95
    %p97 = scmp.ne.s32.totalorder %s88, %s89
    %p98 = scmp.eq.s32.totalorder %s15, 0
    %p99 = por %p97, %p98
    %p100 = scmp.ne.s32.totalorder %s88, %s89
    %p101 = scmp.eq.s32.totalorder %s16, 1
    %p102 = por %p100, %p101
    %p104 = scmp.ne.s32.totalorder %s89, %s103
    %p105 = scmp.eq.s32.totalorder %s16, 0
    %p106 = por %p104, %p105
    %s107 = ssub.s32 %s10, %s17
    %p108 = scmp.eq.s32.totalorder %s107, 0
    %s110 = sadd.s32 %s109, 1
    %s111 = scalar_select %p108, %s109, %s110
    %p114 = pneg %p108
    %p115 = scmp.eq.s32.totalorder %s10, 1
    %p116 = por %p114, %p115
    %p117 = scmp.ne.s32.totalorder %s109, %s112
    %p118 = scmp.eq.s32.totalorder %s10, 0
    %p119 = por %p117, %p118
    %p120 = scmp.ne.s32.totalorder %s109, %s112
    %p121 = scmp.eq.s32.totalorder %s15, 1
    %p122 = por %p120, %p121
    %p123 = scmp.ne.s32.totalorder %s112, %s113
    %p124 = scmp.eq.s32.totalorder %s15, 0
    %p125 = por %p123, %p124
    %p126 = scmp.ne.s32.totalorder %s112, %s113
    %p127 = scmp.eq.s32.totalorder %s16, 1
    %p128 = por %p126, %p127
    %p130 = scmp.ne.s32.totalorder %s113, %s129
    %p131 = scmp.eq.s32.totalorder %s16, 0
    %p132 = por %p130, %p131
    %p133 = scmp.le.s32.totalorder 1, %s10
    %p134 = scmp.lt.s32.totalorder %s10, 3
    %p135 = pnand %p133, %p134
    %p136 = pneg %p135
    // Predicated region
    $region9: #{gssoft_forward.17} parent=5 // pred_check
      _
    $region10: #{gssoft_forward.17} parent=5 // pred_check_branch
      %138 = sbr.rel (%p135) target = $region12
    $region11: #{gssoft_forward.17} parent=5 // pred_region
      %s139 = ssub.s32 %s10, 1
      // Predicated region
      $region13: #{gssoft_forward.17} parent=11 // pred_check
        %p140 = pneg %p57
      $region14: #{gssoft_forward.17} parent=11 // pred_check_branch
        %142 = sbr.rel (%p140) target = $region16
      $region15: #{gssoft_forward.17} parent=11 // pred_region
        _
      $region16: #{gssoft_forward.17} parent=11 // pred_fallthru
        _
      // Predicated region
      $region17: #{gssoft_forward.17} parent=11 // pred_check
        %p143 = pneg %p78
      $region18: #{gssoft_forward.17} parent=11 // pred_check_branch
        %145 = sbr.rel (%p143) target = $region20
      $region19: #{gssoft_forward.17} parent=11 // pred_region
        _
      $region20: #{gssoft_forward.17} parent=11 // pred_fallthru
        _
      // Predicated region
      $region21: #{gssoft_forward.17} parent=11 // pred_check
        %p146 = pneg %p99
      $region22: #{gssoft_forward.17} parent=11 // pred_check_branch
        %148 = sbr.rel (%p146) target = $region24
      $region23: #{gssoft_forward.17} parent=11 // pred_region
        _
      $region24: #{gssoft_forward.17} parent=11 // pred_fallthru
        _
    $region12: #{gssoft_forward.17} parent=5 // pred_fallthru
      _
    %p149 = scmp.lt.s32.totalorder %s10, 2
    // Predicated region
    $region25: #{gssoft_forward.17} parent=5 // pred_check
      %p150 = pneg %p149
    $region26: #{gssoft_forward.17} parent=5 // pred_check_branch
      %152 = sbr.rel (%p150) target = $region28
    $region27: #{gssoft_forward.17} parent=5 // pred_region
      // Predicated region
      $region29: #{gssoft_forward.17} parent=27 // pred_check
        %p153 = pneg %p30
      $region30: #{gssoft_forward.17} parent=27 // pred_check_branch
        %155 = sbr.rel (%p153) target = $region32
      $region31: #{gssoft_forward.17} parent=27 // pred_region
        %s156 = smul.u32 2, %s10
        %p157 = scmp.lt.s32.totalorder %s156, 3
        %s158 = scalar_select %p157, %s156, 3
        %s159 = smul.addr %s158, 4
        %s160 = scalar_lea.vmem %s0, %s159
        %s161 = smul.u32 2, %s10
      $region32: #{gssoft_forward.17} parent=27 // pred_fallthru
        _
    $region28: #{gssoft_forward.17} parent=5 // pred_fallthru
      _
    %p162 = scmp.le.s32.totalorder 1, %s10
    %p163 = scmp.lt.s32.totalorder %s10, 3
    %p164 = pnand %p162, %p163
    %p165 = pneg %p164
    // Predicated region
    $region33: #{gssoft_forward.17} parent=5 // pred_check
      _
    $region34: #{gssoft_forward.17} parent=5 // pred_check_branch
      %167 = sbr.rel (%p164) target = $region36
    $region35: #{gssoft_forward.17} parent=5 // pred_region
      %s168 = ssub.s32 %s10, 1
      %s169 = smul.u32 2, %s15
      %p170 = scmp.lt.s32.totalorder %s169, 3
      %s171 = scalar_select %p170, %s169, 3
      %s172 = smul.addr %s171, 4
      %s173 = scalar_lea.vmem %s0, %s172
      %p174 = pneg %p36
      %p175 = pneg %p33
      %p176 = pneg %p57
      %p177 = pneg %p54
      %p178 = pneg %p78
      %p179 = pneg %p75
      %p180 = pneg %p99
      %p181 = pneg %p96
      %p182 = pneg %p125
      %p183 = pneg %p122
      %s184 = smul.u32 2, %s15
      %p185 = scmp.lt.s32.totalorder %s184, 3
      %s186 = scalar_select %p185, %s184, 3
      %s187 = smul.addr %s186, 4
      %s188 = scalar_lea.vmem %s4, %s187
      %s189 = smul.u32 2, %s15
      %p190 = scmp.lt.s32.totalorder %s189, 3
      %s191 = scalar_select %p190, %s189, 3
      %s192 = smul.addr %s191, 4
      %s193 = scalar_lea.vmem %s0, %s192
      %s194 = smul.u32 2, %s15
      %s195 = smul.u32 2, %s15
      %p196 = scmp.lt.s32.totalorder %s195, 3
      %s197 = scalar_select %p196, %s195, 3
      %s198 = smul.addr %s197, 4
      %s199 = scalar_lea.vmem %s4, %s198
      %s200 = smul.u32 2, %s15
      %v202 = vld [vmem:[%s193] sm:$0xf]
      %v203 = vld [vmem:[%s193 + $0x4] sm:$0xf]
      %v204 = vld [vmem:[%s1] sm:$0xf]
      %v205 = vld [vmem:[%s1 + $0x4] sm:$0xf]
      %v206 = vld [vmem:[%s1 + $0x8] sm:$0xf]
      %v207 = vld [vmem:[%s1 + $0xc] sm:$0x3]
      %v210 = vunpack.c.l.b16 %v202
      %v211 = vunpack.c.l.b16 %v203
      %v212 = vpack.c.b16 %v211, %v210
      %v217 = vunpack.c.l.b16 %v204
      %v218 = vunpack.c.l.b16 %v205
      %v219 = vunpack.c.l.b16 %v206
      %v220 = vunpack.c.l.b16 %v207
      %v221 = vpack.c.b16 %v218, %v217
      %v222 = vpack.c.b16 %v220, %v219
      %vm224 = vcmask 220160
      %v226 = vsel %vm224, %v212, 0
      %vm228 = vcmask 1044480
      %vm229 = vcmask 1045504
      %v230 = vsel %vm228, 4294967295, 65535
      %v231 = vsel %vm229, %v230, 0
      %v233 = vand.u32 %v222, %v231
      %235 = vmatprep.subr.bf16.mxu0 0
      %236 = vmatpush1.bf16.msra.mxu0 %v221
      %237 = vmatprep.subr.bf16.mxu0 0
      %238 = vmatpush1.bf16.msra.mxu0 %v233
      %239 = vmatprep.subr.bf16.mxu0 0
      %240 = vmatpush1.bf16.msra.mxu0 0
      %241 = vmatprep.subr.bf16.mxu0 0
      %242 = vmatpush1.bf16.msra.mxu0 0
      %243 = vmatprep.subr.bf16.mxu0 0
      %244 = vmatpush1.bf16.msra.mxu0 0
      %245 = vmatprep.subr.bf16.mxu0 0
      %246 = vmatpush1.bf16.msra.mxu0 0
      %247 = vmatprep.subr.bf16.mxu0 0
      %248 = vmatpush1.bf16.msra.mxu0 0
      %249 = vmatprep.subr.bf16.mxu0 0
      %250 = vmatpush1.bf16.msra.mxu0 0
      %251 = vmatprep.subr.bf16.mxu0 0
      %252 = vmatpush1.bf16.msra.mxu0 0
      %253 = vmatprep.subr.bf16.mxu0 0
      %254 = vmatpush1.bf16.msra.mxu0 0
      %255 = vmatprep.subr.bf16.mxu0 0
      %256 = vmatpush1.bf16.msra.mxu0 0
      %257 = vmatprep.subr.bf16.mxu0 0
      %258 = vmatpush1.bf16.msra.mxu0 0
      %259 = vmatprep.subr.bf16.mxu0 0
      %260 = vmatpush1.bf16.msra.mxu0 0
      %261 = vmatprep.subr.bf16.mxu0 0
      %262 = vmatpush1.bf16.msra.mxu0 0
      %263 = vmatprep.subr.bf16.mxu0 0
      %264 = vmatpush1.bf16.msra.mxu0 0
      %265 = vmatprep.subr.bf16.mxu0 0
      %266 = vmatpush1.bf16.msra.mxu0 0
      %267 = vmatprep.mubr.bf16.mxu0 0
      %268 = vmatmul.mubr.bf16.gmra.mrb[0].mxu0 %v226
      %v269 = vpop.f32.mrb[0].mxu0
      %v270 = vadd.f32 0.0, %v269
      %v271 = vpop.f32.mrb[0].mxu0
      %v272 = vpop.f32.mrb[0].mxu0
      %v273 = vadd.f32 0.0, %v272
      %v274 = vpop.f32.mrb[0].mxu0
      %275 = vdwg.mxu0
      %v276 = vld [vmem:[%s2] sm:$0x1]
      %v278 = vlaneseq
      %v279 = vshrl.u32 %v278, 7
      %v280 = vsub.s32 0, %v279
      %v281 = vrot.slane %v276, %v280
      %v283 = vmul.f32 %v270, %v281
      %v284 = vmul.f32 %v273, %v281
      %v285 = vld [vmem:[%s3] sm:$0x1]
      %v287 = vlaneseq
      %v288 = vshrl.u32 %v287, 7
      %v289 = vsub.s32 0, %v288
      %v290 = vrot.slane %v285, %v289
      %v292 = vadd.f32 %v283, %v290
      %v293 = vadd.f32 %v284, %v290
      %v294 = vmax.f32 %v292, 0.0
      %v295 = vmax.f32 %v293, 0.0
      %v296 = vpack.c.bf16 %v295, %v294
      %v298 = vunpack.c.l.b16 %v296
      %v299 = vunpack.c.h.b16 %v296
      %v300 = vpack.c.b16 %v298, %v298
      %v301 = vpack.c.b16 %v299, %v299
      %vm304 = vcmask 93184
      %305 = vst.msk [vmem:[%s199] sm:$0xf] %vm304, %v300
      %306 = vst.msk [vmem:[%s199 + $0x4] sm:$0xf] %vm304, %v301
      %s307 = smul.u32 2, %s15
      %p308 = scmp.lt.s32.totalorder %s307, 3
      %s309 = scalar_select %p308, %s307, 3
      %s310 = smul.addr %s309, 4
      %s311 = scalar_lea.vmem %s4, %s310
      // Predicated region
      $region37: #{gssoft_forward.17} parent=35 // pred_check
        %p312 = pneg %p122
      $region38: #{gssoft_forward.17} parent=35 // pred_check_branch
        %314 = sbr.rel (%p312) target = $region40
      $region39: #{gssoft_forward.17} parent=35 // pred_region
        %s315 = smul.u32 2, %s15
      $region40: #{gssoft_forward.17} parent=35 // pred_fallthru
        _
    $region36: #{gssoft_forward.17} parent=5 // pred_fallthru
      _
    %p316 = scmp.le.s32.totalorder 2, %s10
    // Predicated region
    $region41: #{gssoft_forward.17} parent=5 // pred_check
      %p317 = pneg %p316
    $region42: #{gssoft_forward.17} parent=5 // pred_check_branch
      %319 = sbr.rel (%p317) target = $region44
    $region43: #{gssoft_forward.17} parent=5 // pred_region
      %s320 = ssub.s32 %s10, 2
      // Predicated region
      $region45: #{gssoft_forward.17} parent=43 // pred_check
        %p321 = pneg %p128
      $region46: #{gssoft_forward.17} parent=43 // pred_check_branch
        %323 = sbr.rel (%p321) target = $region48
      $region47: #{gssoft_forward.17} parent=43 // pred_region
        %s324 = smul.u32 2, %s16
        %p325 = scmp.lt.s32.totalorder %s324, 3
        %s326 = scalar_select %p325, %s324, 3
        %s327 = smul.addr %s326, 4
        %s328 = scalar_lea.vmem %s4, %s327
      $region48: #{gssoft_forward.17} parent=43 // pred_fallthru
        _
    $region44: #{gssoft_forward.17} parent=5 // pred_fallthru
      _
  $region6: #{gssoft_forward.17} parent=0 // loop_footer
    %s14 = sadd.s32 1, %s10
  $region7: #{gssoft_forward.17} parent=0 // loop_footer_branch
    %9 = sbr.rel target = $region3
  $region8: #{gssoft_forward.17} parent=0 // loop_exit
    _

// kernel: gssoft_forward.12
$region0: #{gssoft_forward.12}
  #allocation0 [shape = 'u32[]', space=smem, size = 0x4, offset = 0x4, fixed_abs, tag = 'smem constant byte address 0x4 - core index']
  #allocation1 [shape = 'u32[144,128]{1,0:T(1,128)}', space=vmem, size = 0x12000, scoped, tag = 'internal scratch']
  %s0 = inlined_call_operand.vmem [shape: bf16[32,27], index: 0, kind: input, shape index: {}]
  %s1 = inlined_call_operand.vmem [shape: bf16[27,3], index: 1, kind: input, shape index: {}]
  %s2 = inlined_call_operand.vmem [shape: f32[1,3], index: 2, kind: input, shape index: {}]
  %s3 = inlined_call_operand.vmem [shape: f32[1,3], index: 3, kind: input, shape index: {}]
  %s4 = inlined_call_operand.vmem [shape: bf16[3,3], index: 4, kind: input, shape index: {}]
  %s5 = inlined_call_operand.vmem [shape: f32[1,3], index: 5, kind: input, shape index: {}]
  %s6 = inlined_call_operand.vmem [shape: f32[1,3], index: 6, kind: input, shape index: {}]
  %s7 = inlined_call_operand.vmem [shape: bf16[32,3], index: 7, kind: input, shape index: {}]
  %s8 = inlined_call_operand.vmem [shape: bf16[32,3], index: 8, kind: output, shape index: {}]
  %s9 = sld [smem:[#allocation0]]
  $region65: #{gssoft_forward.12} parent=0
    _
  %s11 = ssub.s32 1, %s9
  %s12 = scalar_select 0, %s11, %s9
  loop: start=0, step=1, limit=4
  $region2: #{gssoft_forward.12} parent=0 // loop_pre_header
    _
  $region3: #{gssoft_forward.12} parent=0 // loop_header
    %s14 = sphi 0, %s18
    %p15 = scmp.ge.s32.totalorder %s14, 4
    %s24 = sphi 0, %s26
    %s27 = sphi 0, %s24
    %s28 = sphi 0, %s27
    %s44 = sphi 0, %s28
    %s48 = sphi 0, %s48
    %s50 = sphi 0, %s48
    %s51 = sphi 0, %s50
    %s65 = sphi 0, %s51
    %s69 = sphi 0, %s69
    %s71 = sphi 0, %s69
    %s72 = sphi 0, %s71
    %s86 = sphi 0, %s72
    %s90 = sphi 0, %s90
    %s92 = sphi 0, %s90
    %s93 = sphi 0, %s92
    %s107 = sphi 0, %s93
    %s111 = sphi 0, %s111
    %s113 = sphi 0, %s111
    %s114 = sphi 0, %s113
    %s128 = sphi 0, %s114
    %s132 = sphi 0, %s132
    %s134 = sphi 0, %s132
    %s135 = sphi 0, %s134
    %s149 = sphi 0, %s135
    %s153 = sphi 0, %s153
    %s155 = sphi 0, %s153
    %s156 = sphi 0, %s155
    %s170 = sphi 0, %s156
    %s176 = sphi 0, %s178
    %s179 = sphi 0, %s176
    %s180 = sphi 0, %s179
    %s196 = sphi 0, %s180
    %s202 = sphi 0, %s204
    %s205 = sphi 0, %s202
    %s206 = sphi 0, %s205
    %s222 = sphi 0, %s206
  $region4: #{gssoft_forward.12} parent=0 // loop_header_branch
    %17 = sbr.rel (%p15) target = $region8
  $region5: #{gssoft_forward.12} parent=0 // loop_body
    %s19 = ssub.s32 %s14, 1
    %s20 = ssub.s32 %s14, 2
    %s21 = sadd.s32 %s14, 1
    %s22 = ssub.s32 %s14, %s21
    %p23 = scmp.eq.s32.totalorder %s22, 0
    %s25 = sadd.s32 %s24, 1
    %s26 = scalar_select %p23, %s24, %s25
    %p29 = pneg %p23
    %p30 = scmp.eq.s32.totalorder %s14, 1
    %p31 = por %p29, %p30
    %p32 = scmp.ne.s32.totalorder %s24, %s27
    %p33 = scmp.eq.s32.totalorder %s14, 0
    %p34 = por %p32, %p33
    %p35 = scmp.ne.s32.totalorder %s24, %s27
    %p36 = scmp.eq.s32.totalorder %s19, 1
    %p37 = por %p35, %p36
    %p38 = scmp.ne.s32.totalorder %s27, %s28
    %p39 = scmp.eq.s32.totalorder %s19, 0
    %p40 = por %p38, %p39
    %p41 = scmp.ne.s32.totalorder %s27, %s28
    %p42 = scmp.eq.s32.totalorder %s20, 1
    %p43 = por %p41, %p42
    %p45 = scmp.ne.s32.totalorder %s28, %s44
    %p46 = scmp.eq.s32.totalorder %s20, 0
    %p47 = por %p45, %p46
    %s49 = sadd.s32 %s48, 1
    %p52 = scmp.eq.s32.totalorder %s14, 1
    %p53 = scmp.ne.s32.totalorder %s48, %s50
    %p54 = scmp.eq.s32.totalorder %s14, 0
    %p55 = por %p53, %p54
    %p56 = scmp.ne.s32.totalorder %s48, %s50
    %p57 = scmp.eq.s32.totalorder %s19, 1
    %p58 = por %p56, %p57
    %p59 = scmp.ne.s32.totalorder %s50, %s51
    %p60 = scmp.eq.s32.totalorder %s19, 0
    %p61 = por %p59, %p60
    %p62 = scmp.ne.s32.totalorder %s50, %s51
    %p63 = scmp.eq.s32.totalorder %s20, 1
    %p64 = por %p62, %p63
    %p66 = scmp.ne.s32.totalorder %s51, %s65
    %p67 = scmp.eq.s32.totalorder %s20, 0
    %p68 = por %p66, %p67
    %s70 = sadd.s32 %s69, 1
    %p73 = scmp.eq.s32.totalorder %s14, 1
    %p74 = scmp.ne.s32.totalorder %s69, %s71
    %p75 = scmp.eq.s32.totalorder %s14, 0
    %p76 = por %p74, %p75
    %p77 = scmp.ne.s32.totalorder %s69, %s71
    %p78 = scmp.eq.s32.totalorder %s19, 1
    %p79 = por %p77, %p78
    %p80 = scmp.ne.s32.totalorder %s71, %s72
    %p81 = scmp.eq.s32.totalorder %s19, 0
    %p82 = por %p80, %p81
    %p83 = scmp.ne.s32.totalorder %s71, %s72
    %p84 = scmp.eq.s32.totalorder %s20, 1
    %p85 = por %p83, %p84
    %p87 = scmp.ne.s32.totalorder %s72, %s86
    %p88 = scmp.eq.s32.totalorder %s20, 0
    %p89 = por %p87, %p88
    %s91 = sadd.s32 %s90, 1
    %p94 = scmp.eq.s32.totalorder %s14, 1
    %p95 = scmp.ne.s32.totalorder %s90, %s92
    %p96 = scmp.eq.s32.totalorder %s14, 0
    %p97 = por %p95, %p96
    %p98 = scmp.ne.s32.totalorder %s90, %s92
    %p99 = scmp.eq.s32.totalorder %s19, 1
    %p100 = por %p98, %p99
    %p101 = scmp.ne.s32.totalorder %s92, %s93
    %p102 = scmp.eq.s32.totalorder %s19, 0
    %p103 = por %p101, %p102
    %p104 = scmp.ne.s32.totalorder %s92, %s93
    %p105 = scmp.eq.s32.totalorder %s20, 1
    %p106 = por %p104, %p105
    %p108 = scmp.ne.s32.totalorder %s93, %s107
    %p109 = scmp.eq.s32.totalorder %s20, 0
    %p110 = por %p108, %p109
    %s112 = sadd.s32 %s111, 1
    %p115 = scmp.eq.s32.totalorder %s14, 1
    %p116 = scmp.ne.s32.totalorder %s111, %s113
    %p117 = scmp.eq.s32.totalorder %s14, 0
    %p118 = por %p116, %p117
    %p119 = scmp.ne.s32.totalorder %s111, %s113
    %p120 = scmp.eq.s32.totalorder %s19, 1
    %p121 = por %p119, %p120
    %p122 = scmp.ne.s32.totalorder %s113, %s114
    %p123 = scmp.eq.s32.totalorder %s19, 0
    %p124 = por %p122, %p123
    %p125 = scmp.ne.s32.totalorder %s113, %s114
    %p126 = scmp.eq.s32.totalorder %s20, 1
    %p127 = por %p125, %p126
    %p129 = scmp.ne.s32.totalorder %s114, %s128
    %p130 = scmp.eq.s32.totalorder %s20, 0
    %p131 = por %p129, %p130
    %s133 = sadd.s32 %s132, 1
    %p136 = scmp.eq.s32.totalorder %s14, 1
    %p137 = scmp.ne.s32.totalorder %s132, %s134
    %p138 = scmp.eq.s32.totalorder %s14, 0
    %p139 = por %p137, %p138
    %p140 = scmp.ne.s32.totalorder %s132, %s134
    %p141 = scmp.eq.s32.totalorder %s19, 1
    %p142 = por %p140, %p141
    %p143 = scmp.ne.s32.totalorder %s134, %s135
    %p144 = scmp.eq.s32.totalorder %s19, 0
    %p145 = por %p143, %p144
    %p146 = scmp.ne.s32.totalorder %s134, %s135
    %p147 = scmp.eq.s32.totalorder %s20, 1
    %p148 = por %p146, %p147
    %p150 = scmp.ne.s32.totalorder %s135, %s149
    %p151 = scmp.eq.s32.totalorder %s20, 0
    %p152 = por %p150, %p151
    %s154 = sadd.s32 %s153, 1
    %p157 = scmp.eq.s32.totalorder %s14, 1
    %p158 = scmp.ne.s32.totalorder %s153, %s155
    %p159 = scmp.eq.s32.totalorder %s14, 0
    %p160 = por %p158, %p159
    %p161 = scmp.ne.s32.totalorder %s153, %s155
    %p162 = scmp.eq.s32.totalorder %s19, 1
    %p163 = por %p161, %p162
    %p164 = scmp.ne.s32.totalorder %s155, %s156
    %p165 = scmp.eq.s32.totalorder %s19, 0
    %p166 = por %p164, %p165
    %p167 = scmp.ne.s32.totalorder %s155, %s156
    %p168 = scmp.eq.s32.totalorder %s20, 1
    %p169 = por %p167, %p168
    %p171 = scmp.ne.s32.totalorder %s156, %s170
    %p172 = scmp.eq.s32.totalorder %s20, 0
    %p173 = por %p171, %p172
    %s174 = ssub.s32 %s14, %s21
    %p175 = scmp.eq.s32.totalorder %s174, 0
    %s177 = sadd.s32 %s176, 1
    %s178 = scalar_select %p175, %s176, %s177
    %p181 = pneg %p175
    %p182 = scmp.eq.s32.totalorder %s14, 1
    %p183 = por %p181, %p182
    %p184 = scmp.ne.s32.totalorder %s176, %s179
    %p185 = scmp.eq.s32.totalorder %s14, 0
    %p186 = por %p184, %p185
    %p187 = scmp.ne.s32.totalorder %s176, %s179
    %p188 = scmp.eq.s32.totalorder %s19, 1
    %p189 = por %p187, %p188
    %p190 = scmp.ne.s32.totalorder %s179, %s180
    %p191 = scmp.eq.s32.totalorder %s19, 0
    %p192 = por %p190, %p191
    %p193 = scmp.ne.s32.totalorder %s179, %s180
    %p194 = scmp.eq.s32.totalorder %s20, 1
    %p195 = por %p193, %p194
    %p197 = scmp.ne.s32.totalorder %s180, %s196
    %p198 = scmp.eq.s32.totalorder %s20, 0
    %p199 = por %p197, %p198
    %s200 = ssub.s32 %s14, %s21
    %p201 = scmp.eq.s32.totalorder %s200, 0
    %s203 = sadd.s32 %s202, 1
    %s204 = scalar_select %p201, %s202, %s203
    %p207 = pneg %p201
    %p208 = scmp.eq.s32.totalorder %s14, 1
    %p209 = por %p207, %p208
    %p210 = scmp.ne.s32.totalorder %s202, %s205
    %p211 = scmp.eq.s32.totalorder %s14, 0
    %p212 = por %p210, %p211
    %p213 = scmp.ne.s32.totalorder %s202, %s205
    %p214 = scmp.eq.s32.totalorder %s19, 1
    %p215 = por %p213, %p214
    %p216 = scmp.ne.s32.totalorder %s205, %s206
    %p217 = scmp.eq.s32.totalorder %s19, 0
    %p218 = por %p216, %p217
    %p219 = scmp.ne.s32.totalorder %s205, %s206
    %p220 = scmp.eq.s32.totalorder %s20, 1
    %p221 = por %p219, %p220
    %p223 = scmp.ne.s32.totalorder %s206, %s222
    %p224 = scmp.eq.s32.totalorder %s20, 0
    %p225 = por %p223, %p224
    %p226 = scmp.le.s32.totalorder 1, %s14
    %p227 = scmp.lt.s32.totalorder %s14, 3
    %p228 = pnand %p226, %p227
    %p229 = pneg %p228
    // Predicated region
    $region9: #{gssoft_forward.12} parent=5 // pred_check
      _
    $region10: #{gssoft_forward.12} parent=5 // pred_check_branch
      %231 = sbr.rel (%p228) target = $region12
    $region11: #{gssoft_forward.12} parent=5 // pred_region
      %s232 = ssub.s32 %s14, 1
      // Predicated region
      $region13: #{gssoft_forward.12} parent=11 // pred_check
        %p233 = pneg %p61
      $region14: #{gssoft_forward.12} parent=11 // pred_check_branch
        %235 = sbr.rel (%p233) target = $region16
      $region15: #{gssoft_forward.12} parent=11 // pred_region
        _
      $region16: #{gssoft_forward.12} parent=11 // pred_fallthru
        _
      // Predicated region
      $region17: #{gssoft_forward.12} parent=11 // pred_check
        %p236 = pneg %p82
      $region18: #{gssoft_forward.12} parent=11 // pred_check_branch
        %238 = sbr.rel (%p236) target = $region20
      $region19: #{gssoft_forward.12} parent=11 // pred_region
        _
      $region20: #{gssoft_forward.12} parent=11 // pred_fallthru
        _
      // Predicated region
      $region21: #{gssoft_forward.12} parent=11 // pred_check
        %p239 = pneg %p103
      $region22: #{gssoft_forward.12} parent=11 // pred_check_branch
        %241 = sbr.rel (%p239) target = $region24
      $region23: #{gssoft_forward.12} parent=11 // pred_region
        _
      $region24: #{gssoft_forward.12} parent=11 // pred_fallthru
        _
      // Predicated region
      $region25: #{gssoft_forward.12} parent=11 // pred_check
        %p242 = pneg %p124
      $region26: #{gssoft_forward.12} parent=11 // pred_check_branch
        %244 = sbr.rel (%p242) target = $region28
      $region27: #{gssoft_forward.12} parent=11 // pred_region
        _
      $region28: #{gssoft_forward.12} parent=11 // pred_fallthru
        _
      // Predicated region
      $region29: #{gssoft_forward.12} parent=11 // pred_check
        %p245 = pneg %p145
      $region30: #{gssoft_forward.12} parent=11 // pred_check_branch
        %247 = sbr.rel (%p245) target = $region32
      $region31: #{gssoft_forward.12} parent=11 // pred_region
        _
      $region32: #{gssoft_forward.12} parent=11 // pred_fallthru
        _
      // Predicated region
      $region33: #{gssoft_forward.12} parent=11 // pred_check
        %p248 = pneg %p166
      $region34: #{gssoft_forward.12} parent=11 // pred_check_branch
        %250 = sbr.rel (%p248) target = $region36
      $region35: #{gssoft_forward.12} parent=11 // pred_region
        _
      $region36: #{gssoft_forward.12} parent=11 // pred_fallthru
        _
    $region12: #{gssoft_forward.12} parent=5 // pred_fallthru
      _
    %p251 = scmp.lt.s32.totalorder %s14, 2
    // Predicated region
    $region37: #{gssoft_forward.12} parent=5 // pred_check
      %p252 = pneg %p251
    $region38: #{gssoft_forward.12} parent=5 // pred_check_branch
      %254 = sbr.rel (%p252) target = $region40
    $region39: #{gssoft_forward.12} parent=5 // pred_region
      // Predicated region
      $region41: #{gssoft_forward.12} parent=39 // pred_check
        %p255 = pneg %p34
      $region42: #{gssoft_forward.12} parent=39 // pred_check_branch
        %257 = sbr.rel (%p255) target = $region44
      $region43: #{gssoft_forward.12} parent=39 // pred_region
        %s258 = smul.u32 2, %s14
        %p259 = scmp.lt.s32.totalorder %s258, 3
        %s260 = scalar_select %p259, %s258, 3
        %s261 = smul.addr %s260, 4
        %s262 = scalar_lea.vmem %s0, %s261
        %s263 = smul.u32 2, %s14
      $region44: #{gssoft_forward.12} parent=39 // pred_fallthru
        _
      // Predicated region
      $region45: #{gssoft_forward.12} parent=39 // pred_check
        %p264 = pneg %p186
      $region46: #{gssoft_forward.12} parent=39 // pred_check_branch
        %266 = sbr.rel (%p264) target = $region48
      $region47: #{gssoft_forward.12} parent=39 // pred_region
        %s267 = smul.u32 2, %s14
        %p268 = scmp.lt.s32.totalorder %s267, 3
        %s269 = scalar_select %p268, %s267, 3
        %s270 = smul.addr %s269, 4
        %s271 = scalar_lea.vmem %s7, %s270
        %s272 = smul.u32 2, %s14
      $region48: #{gssoft_forward.12} parent=39 // pred_fallthru
        _
    $region40: #{gssoft_forward.12} parent=5 // pred_fallthru
      _
    %p273 = scmp.le.s32.totalorder 1, %s14
    %p274 = scmp.lt.s32.totalorder %s14, 3
    %p275 = pnand %p273, %p274
    %p276 = pneg %p275
    // Predicated region
    $region49: #{gssoft_forward.12} parent=5 // pred_check
      _
    $region50: #{gssoft_forward.12} parent=5 // pred_check_branch
      %278 = sbr.rel (%p275) target = $region52
    $region51: #{gssoft_forward.12} parent=5 // pred_region
      %s279 = ssub.s32 %s14, 1
      %s280 = smul.u32 2, %s19
      %p281 = scmp.lt.s32.totalorder %s280, 3
      %s282 = scalar_select %p281, %s280, 3
      %s283 = smul.addr %s282, 4
      %s284 = scalar_lea.vmem %s0, %s283
      %p285 = pneg %p40
      %p286 = pneg %p37
      %p287 = pneg %p61
      %p288 = pneg %p58
      %p289 = pneg %p82
      %p290 = pneg %p79
      %p291 = pneg %p103
      %p292 = pneg %p100
      %p293 = pneg %p124
      %p294 = pneg %p121
      %p295 = pneg %p145
      %p296 = pneg %p142
      %p297 = pneg %p166
      %p298 = pneg %p163
      %s299 = smul.u32 2, %s19
      %p300 = scmp.lt.s32.totalorder %s299, 3
      %s301 = scalar_select %p300, %s299, 3
      %s302 = smul.addr %s301, 4
      %s303 = scalar_lea.vmem %s7, %s302
      %p304 = pneg %p192
      %p305 = pneg %p189
      %p306 = pneg %p218
      %p307 = pneg %p215
      %s308 = smul.u32 2, %s19
      %p309 = scmp.lt.s32.totalorder %s308, 3
      %s310 = scalar_select %p309, %s308, 3
      %s311 = smul.addr %s310, 4
      %s312 = scalar_lea.vmem %s8, %s311
      %s313 = smul.u32 2, %s19
      %p314 = scmp.lt.s32.totalorder %s313, 3
      %s315 = scalar_select %p314, %s313, 3
      %s316 = smul.addr %s315, 4
      %s317 = scalar_lea.vmem %s0, %s316
      %s318 = smul.u32 2, %s19
      %s319 = smul.u32 2, %s19
      %p320 = scmp.lt.s32.totalorder %s319, 3
      %s321 = scalar_select %p320, %s319, 3
      %s322 = smul.addr %s321, 4
      %s323 = scalar_lea.vmem %s7, %s322
      %s324 = smul.u32 2, %s19
      %s325 = smul.u32 2, %s19
      %p326 = scmp.lt.s32.totalorder %s325, 3
      %s327 = scalar_select %p326, %s325, 3
      %s328 = smul.addr %s327, 4
      %s329 = scalar_lea.vmem %s8, %s328
      %s330 = smul.u32 2, %s19
      %v332 = vld [vmem:[%s317] sm:$0xf]
      %v333 = vld [vmem:[%s317 + $0x4] sm:$0xf]
      %v334 = vmax.bf16 %v332, 0
      %v335 = vmax.bf16 %v333, 0
      %v336 = vld [vmem:[%s1] sm:$0xf]
      %v337 = vld [vmem:[%s1 + $0x4] sm:$0xf]
      %v338 = vld [vmem:[%s1 + $0x8] sm:$0xf]
      %v339 = vld [vmem:[%s1 + $0xc] sm:$0x3]
      %v342 = vunpack.c.l.b16 %v334
      %v343 = vunpack.c.l.b16 %v335
      %v344 = vpack.c.b16 %v343, %v342
      %v349 = vunpack.c.l.b16 %v336
      %v350 = vunpack.c.l.b16 %v337
      %v351 = vunpack.c.l.b16 %v338
      %v352 = vunpack.c.l.b16 %v339
      %v353 = vpack.c.b16 %v350, %v349
      %v354 = vpack.c.b16 %v352, %v351
      %vm356 = vcmask 220160
      %v358 = vsel %vm356, %v344, 0
      %vm360 = vcmask 1044480
      %vm361 = vcmask 1045504
      %v362 = vsel %vm360, 4294967295, 65535
      %v363 = vsel %vm361, %v362, 0
      %v365 = vand.u32 %v354, %v363
      %367 = vmatprep.subr.bf16.mxu0 0
      %368 = vmatpush1.bf16.msra.mxu0 %v353
      %369 = vmatprep.subr.bf16.mxu0 0
      %370 = vmatpush1.bf16.msra.mxu0 %v365
      %371 = vmatprep.subr.bf16.mxu0 0
      %372 = vmatpush1.bf16.msra.mxu0 0
      %373 = vmatprep.subr.bf16.mxu0 0
      %374 = vmatpush1.bf16.msra.mxu0 0
      %375 = vmatprep.subr.bf16.mxu0 0
      %376 = vmatpush1.bf16.msra.mxu0 0
      %377 = vmatprep.subr.bf16.mxu0 0
      %378 = vmatpush1.bf16.msra.mxu0 0
      %379 = vmatprep.subr.bf16.mxu0 0
      %380 = vmatpush1.bf16.msra.mxu0 0
      %381 = vmatprep.subr.bf16.mxu0 0
      %382 = vmatpush1.bf16.msra.mxu0 0
      %383 = vmatprep.subr.bf16.mxu0 0
      %384 = vmatpush1.bf16.msra.mxu0 0
      %385 = vmatprep.subr.bf16.mxu0 0
      %386 = vmatpush1.bf16.msra.mxu0 0
      %387 = vmatprep.subr.bf16.mxu0 0
      %388 = vmatpush1.bf16.msra.mxu0 0
      %389 = vmatprep.subr.bf16.mxu0 0
      %390 = vmatpush1.bf16.msra.mxu0 0
      %391 = vmatprep.subr.bf16.mxu0 0
      %392 = vmatpush1.bf16.msra.mxu0 0
      %393 = vmatprep.subr.bf16.mxu0 0
      %394 = vmatpush1.bf16.msra.mxu0 0
      %395 = vmatprep.subr.bf16.mxu0 0
      %396 = vmatpush1.bf16.msra.mxu0 0
      %397 = vmatprep.subr.bf16.mxu0 0
      %398 = vmatpush1.bf16.msra.mxu0 0
      %399 = vmatprep.mubr.bf16.mxu0 0
      %400 = vmatmul.mubr.bf16.gmra.mrb[0].mxu0 %v358
      %v401 = vpop.f32.mrb[0].mxu0
      %v402 = vadd.f32 0.0, %v401
      %v403 = vpop.f32.mrb[0].mxu0
      %v404 = vpop.f32.mrb[0].mxu0
      %v405 = vadd.f32 0.0, %v404
      %v406 = vpop.f32.mrb[0].mxu0
      %407 = vdwg.mxu0
      %v408 = vld [vmem:[%s2] sm:$0x1]
      %v410 = vlaneseq
      %v411 = vshrl.u32 %v410, 7
      %v412 = vsub.s32 0, %v411
      %v413 = vrot.slane %v408, %v412
      %v415 = vmul.f32 %v402, %v413
      %v416 = vmul.f32 %v405, %v413
      %v417 = vld [vmem:[%s3] sm:$0x1]
      %v419 = vlaneseq
      %v420 = vshrl.u32 %v419, 7
      %v421 = vsub.s32 0, %v420
      %v422 = vrot.slane %v417, %v421
      %v424 = vadd.f32 %v415, %v422
      %v425 = vadd.f32 %v416, %v422
      %v426 = vmax.f32 %v424, 0.0
      %v427 = vmax.f32 %v425, 0.0
      %v428 = vpack.c.bf16 %v427, %v426
      %v429 = vld [vmem:[%s4] sm:$0x3]
      %vm430 = vcmask 23552
      %v432 = vsel %vm430, %v428, 0
      %vm434 = vcmask 1040384
      %vm435 = vcmask 1041408
      %v436 = vsel %vm434, 4294967295, 65535
      %v437 = vsel %vm435, %v436, 0
      %v439 = vand.u32 %v429, %v437
      %441 = vmatprep.subr.bf16.mxu0 0
      %442 = vmatpush1.bf16.msra.mxu0 %v439
      %443 = vmatprep.subr.bf16.mxu0 0
      %444 = vmatpush1.bf16.msra.mxu0 0
      %445 = vmatprep.subr.bf16.mxu0 0
      %446 = vmatpush1.bf16.msra.mxu0 0
      %447 = vmatprep.subr.bf16.mxu0 0
      %448 = vmatpush1.bf16.msra.mxu0 0
      %449 = vmatprep.subr.bf16.mxu0 0
      %450 = vmatpush1.bf16.msra.mxu0 0
      %451 = vmatprep.subr.bf16.mxu0 0
      %452 = vmatpush1.bf16.msra.mxu0 0
      %453 = vmatprep.subr.bf16.mxu0 0
      %454 = vmatpush1.bf16.msra.mxu0 0
      %455 = vmatprep.subr.bf16.mxu0 0
      %456 = vmatpush1.bf16.msra.mxu0 0
      %457 = vmatprep.subr.bf16.mxu0 0
      %458 = vmatpush1.bf16.msra.mxu0 0
      %459 = vmatprep.subr.bf16.mxu0 0
      %460 = vmatpush1.bf16.msra.mxu0 0
      %461 = vmatprep.subr.bf16.mxu0 0
      %462 = vmatpush1.bf16.msra.mxu0 0
      %463 = vmatprep.subr.bf16.mxu0 0
      %464 = vmatpush1.bf16.msra.mxu0 0
      %465 = vmatprep.subr.bf16.mxu0 0
      %466 = vmatpush1.bf16.msra.mxu0 0
      %467 = vmatprep.subr.bf16.mxu0 0
      %468 = vmatpush1.bf16.msra.mxu0 0
      %469 = vmatprep.subr.bf16.mxu0 0
      %470 = vmatpush1.bf16.msra.mxu0 0
      %471 = vmatprep.subr.bf16.mxu0 0
      %472 = vmatpush1.bf16.msra.mxu0 0
      %473 = vmatprep.mubr.bf16.mxu0 0
      %474 = vmatmul.mubr.bf16.gmra.mrb[0].mxu0 %v432
      %v475 = vpop.f32.mrb[0].mxu0
      %v476 = vadd.f32 0.0, %v475
      %v477 = vpop.f32.mrb[0].mxu0
      %v478 = vpop.f32.mrb[0].mxu0
      %v479 = vadd.f32 0.0, %v478
      %v480 = vpop.f32.mrb[0].mxu0
      %481 = vdwg.mxu0
      %v482 = vld [vmem:[%s5] sm:$0x1]
      %v484 = vlaneseq
      %v485 = vshrl.u32 %v484, 7
      %v486 = vsub.s32 0, %v485
      %v487 = vrot.slane %v482, %v486
      %v489 = vmul.f32 %v476, %v487
      %v490 = vmul.f32 %v479, %v487
      %v491 = vld [vmem:[%s6] sm:$0x1]
      %v493 = vlaneseq
      %v494 = vshrl.u32 %v493, 7
      %v495 = vsub.s32 0, %v494
      %v496 = vrot.slane %v491, %v495
      %v498 = vadd.f32 %v489, %v496
      %v499 = vadd.f32 %v490, %v496
      %v500 = vld [vmem:[%s323] sm:$0xf]
      %v501 = vld [vmem:[%s323 + $0x4] sm:$0xf]
      %v502 = vunpack.c.l.bf16 %v500
      %v503 = vunpack.c.l.bf16 %v501
      %v504 = vadd.f32 %v498, %v502
      %v505 = vadd.f32 %v499, %v503
      %v506 = vpack.c.bf16 %v505, %v504
      %v508 = vunpack.c.l.b16 %v506
      %v509 = vunpack.c.h.b16 %v506
      %v510 = vpack.c.b16 %v508, %v508
      %v511 = vpack.c.b16 %v509, %v509
      %vm514 = vcmask 19456
      %515 = vst.msk [vmem:[%s329] sm:$0xf] %vm514, %v510
      %516 = vst.msk [vmem:[%s329 + $0x4] sm:$0xf] %vm514, %v511
      %s517 = smul.u32 2, %s19
      %p518 = scmp.lt.s32.totalorder %s517, 3
      %s519 = scalar_select %p518, %s517, 3
      %s520 = smul.addr %s519, 4
      %s521 = scalar_lea.vmem %s8, %s520
      // Predicated region
      $region53: #{gssoft_forward.12} parent=51 // pred_check
        %p522 = pneg %p215
      $region54: #{gssoft_forward.12} parent=51 // pred_check_branch
        %524 = sbr.rel (%p522) target = $region56
      $region55: #{gssoft_forward.12} parent=51 // pred_region
        %s525 = smul.u32 2, %s19
      $region56: #{gssoft_forward.12} parent=51 // pred_fallthru
        _
    $region52: #{gssoft_forward.12} parent=5 // pred_fallthru
      _
    %p526 = scmp.le.s32.totalorder 2, %s14
    // Predicated region
    $region57: #{gssoft_forward.12} parent=5 // pred_check
      %p527 = pneg %p526
    $region58: #{gssoft_forward.12} parent=5 // pred_check_branch
      %529 = sbr.rel (%p527) target = $region60
    $region59: #{gssoft_forward.12} parent=5 // pred_region
      %s530 = ssub.s32 %s14, 2
      // Predicated region
      $region61: #{gssoft_forward.12} parent=59 // pred_check
        %p531 = pneg %p221
      $region62: #{gssoft_forward.12} parent=59 // pred_check_branch
        %533 = sbr.rel (%p531) target = $region64
      $region63: #{gssoft_forward.12} parent=59 // pred_region
        %s534 = smul.u32 2, %s20
        %p535 = scmp.lt.s32.totalorder %s534, 3
        %s536 = scalar_select %p535, %s534, 3
        %s537 = smul.addr %s536, 4
        %s538 = scalar_lea.vmem %s8, %s537
      $region64: #{gssoft_forward.12} parent=59 // pred_fallthru
        _
    $region60: #{gssoft_forward.12} parent=5 // pred_fallthru
      _
  $region6: #{gssoft_forward.12} parent=0 // loop_footer
    %s18 = sadd.s32 1, %s14
  $region7: #{gssoft_forward.12} parent=0 // loop_footer_branch
    %13 = sbr.rel target = $region3
  $region8: #{gssoft_forward.12} parent=0 // loop_exit
    _

// kernel: gssoft_forward.14
$region0: #{gssoft_forward.14}
  #allocation0 [shape = 'u32[]', space=smem, size = 0x4, offset = 0x4, fixed_abs, tag = 'smem constant byte address 0x4 - core index']
  #allocation1 [shape = 'u32[144,128]{1,0:T(1,128)}', space=vmem, size = 0x12000, scoped, tag = 'internal scratch']
  %s0 = inlined_call_operand.vmem [shape: bf16[32,3], index: 0, kind: input, shape index: {}]
  %s1 = inlined_call_operand.vmem [shape: bf16[3,16], index: 1, kind: input, shape index: {}]
  %s2 = inlined_call_operand.vmem [shape: f32[1,16], index: 2, kind: input, shape index: {}]
  %s3 = inlined_call_operand.vmem [shape: f32[16,128], index: 3, kind: input, shape index: {}]
  %s4 = inlined_call_operand.vmem [shape: f32[1,128], index: 4, kind: input, shape index: {}]
  %s5 = inlined_call_operand.vmem [shape: f32[128,16], index: 5, kind: input, shape index: {}]
  %s6 = inlined_call_operand.vmem [shape: bf16[16,3], index: 6, kind: input, shape index: {}]
  %s7 = inlined_call_operand.vmem [shape: f32[1,3], index: 7, kind: input, shape index: {}]
  %s8 = inlined_call_operand.vmem [shape: f32[1,3], index: 8, kind: input, shape index: {}]
  %s9 = inlined_call_operand.vmem [shape: bf16[32,3], index: 9, kind: output, shape index: {0}]
  %s10 = inlined_call_operand.vmem [shape: f32[32,1], index: 10, kind: output, shape index: {1}]
  %11 = xla_tuple %s9, %s10
  %s12 = sld [smem:[#allocation0]]
  $region77: #{gssoft_forward.14} parent=0
    _
  %s14 = ssub.s32 1, %s12
  %s15 = scalar_select 0, %s14, %s12
  loop: start=0, step=1, limit=4
  $region2: #{gssoft_forward.14} parent=0 // loop_pre_header
    _
  $region3: #{gssoft_forward.14} parent=0 // loop_header
    %s17 = sphi 0, %s21
    %p18 = scmp.ge.s32.totalorder %s17, 4
    %s27 = sphi 0, %s29
    %s30 = sphi 0, %s27
    %s31 = sphi 0, %s30
    %s47 = sphi 0, %s31
    %s51 = sphi 0, %s51
    %s53 = sphi 0, %s51
    %s54 = sphi 0, %s53
    %s68 = sphi 0, %s54
    %s72 = sphi 0, %s72
    %s74 = sphi 0, %s72
    %s75 = sphi 0, %s74
    %s89 = sphi 0, %s75
    %s93 = sphi 0, %s93
    %s95 = sphi 0, %s93
    %s96 = sphi 0, %s95
    %s110 = sphi 0, %s96
    %s114 = sphi 0, %s114
    %s116 = sphi 0, %s114
    %s117 = sphi 0, %s116
    %s131 = sphi 0, %s117
    %s135 = sphi 0, %s135
    %s137 = sphi 0, %s135
    %s138 = sphi 0, %s137
    %s152 = sphi 0, %s138
    %s156 = sphi 0, %s156
    %s158 = sphi 0, %s156
    %s159 = sphi 0, %s158
    %s173 = sphi 0, %s159
    %s177 = sphi 0, %s177
    %s179 = sphi 0, %s177
    %s180 = sphi 0, %s179
    %s194 = sphi 0, %s180
    %s198 = sphi 0, %s198
    %s200 = sphi 0, %s198
    %s201 = sphi 0, %s200
    %s215 = sphi 0, %s201
    %s221 = sphi 0, %s223
    %s224 = sphi 0, %s221
    %s225 = sphi 0, %s224
    %s241 = sphi 0, %s225
    %s247 = sphi 0, %s249
    %s250 = sphi 0, %s247
    %s251 = sphi 0, %s250
    %s267 = sphi 0, %s251
  $region4: #{gssoft_forward.14} parent=0 // loop_header_branch
    %20 = sbr.rel (%p18) target = $region8
  $region5: #{gssoft_forward.14} parent=0 // loop_body
    %s22 = ssub.s32 %s17, 1
    %s23 = ssub.s32 %s17, 2
    %s24 = sadd.s32 %s17, 1
    %s25 = ssub.s32 %s17, %s24
    %p26 = scmp.eq.s32.totalorder %s25, 0
    %s28 = sadd.s32 %s27, 1
    %s29 = scalar_select %p26, %s27, %s28
    %p32 = pneg %p26
    %p33 = scmp.eq.s32.totalorder %s17, 1
    %p34 = por %p32, %p33
    %p35 = scmp.ne.s32.totalorder %s27, %s30
    %p36 = scmp.eq.s32.totalorder %s17, 0
    %p37 = por %p35, %p36
    %p38 = scmp.ne.s32.totalorder %s27, %s30
    %p39 = scmp.eq.s32.totalorder %s22, 1
    %p40 = por %p38, %p39
    %p41 = scmp.ne.s32.totalorder %s30, %s31
    %p42 = scmp.eq.s32.totalorder %s22, 0
    %p43 = por %p41, %p42
    %p44 = scmp.ne.s32.totalorder %s30, %s31
    %p45 = scmp.eq.s32.totalorder %s23, 1
    %p46 = por %p44, %p45
    %p48 = scmp.ne.s32.totalorder %s31, %s47
    %p49 = scmp.eq.s32.totalorder %s23, 0
    %p50 = por %p48, %p49
    %s52 = sadd.s32 %s51, 1
    %p55 = scmp.eq.s32.totalorder %s17, 1
    %p56 = scmp.ne.s32.totalorder %s51, %s53
    %p57 = scmp.eq.s32.totalorder %s17, 0
    %p58 = por %p56, %p57
    %p59 = scmp.ne.s32.totalorder %s51, %s53
    %p60 = scmp.eq.s32.totalorder %s22, 1
    %p61 = por %p59, %p60
    %p62 = scmp.ne.s32.totalorder %s53, %s54
    %p63 = scmp.eq.s32.totalorder %s22, 0
    %p64 = por %p62, %p63
    %p65 = scmp.ne.s32.totalorder %s53, %s54
    %p66 = scmp.eq.s32.totalorder %s23, 1
    %p67 = por %p65, %p66
    %p69 = scmp.ne.s32.totalorder %s54, %s68
    %p70 = scmp.eq.s32.totalorder %s23, 0
    %p71 = por %p69, %p70
    %s73 = sadd.s32 %s72, 1
    %p76 = scmp.eq.s32.totalorder %s17, 1
    %p77 = scmp.ne.s32.totalorder %s72, %s74
    %p78 = scmp.eq.s32.totalorder %s17, 0
    %p79 = por %p77, %p78
    %p80 = scmp.ne.s32.totalorder %s72, %s74
    %p81 = scmp.eq.s32.totalorder %s22, 1
    %p82 = por %p80, %p81
    %p83 = scmp.ne.s32.totalorder %s74, %s75
    %p84 = scmp.eq.s32.totalorder %s22, 0
    %p85 = por %p83, %p84
    %p86 = scmp.ne.s32.totalorder %s74, %s75
    %p87 = scmp.eq.s32.totalorder %s23, 1
    %p88 = por %p86, %p87
    %p90 = scmp.ne.s32.totalorder %s75, %s89
    %p91 = scmp.eq.s32.totalorder %s23, 0
    %p92 = por %p90, %p91
    %s94 = sadd.s32 %s93, 1
    %p97 = scmp.eq.s32.totalorder %s17, 1
    %p98 = scmp.ne.s32.totalorder %s93, %s95
    %p99 = scmp.eq.s32.totalorder %s17, 0
    %p100 = por %p98, %p99
    %p101 = scmp.ne.s32.totalorder %s93, %s95
    %p102 = scmp.eq.s32.totalorder %s22, 1
    %p103 = por %p101, %p102
    %p104 = scmp.ne.s32.totalorder %s95, %s96
    %p105 = scmp.eq.s32.totalorder %s22, 0
    %p106 = por %p104, %p105
    %p107 = scmp.ne.s32.totalorder %s95, %s96
    %p108 = scmp.eq.s32.totalorder %s23, 1
    %p109 = por %p107, %p108
    %p111 = scmp.ne.s32.totalorder %s96, %s110
    %p112 = scmp.eq.s32.totalorder %s23, 0
    %p113 = por %p111, %p112
    %s115 = sadd.s32 %s114, 1
    %p118 = scmp.eq.s32.totalorder %s17, 1
    %p119 = scmp.ne.s32.totalorder %s114, %s116
    %p120 = scmp.eq.s32.totalorder %s17, 0
    %p121 = por %p119, %p120
    %p122 = scmp.ne.s32.totalorder %s114, %s116
    %p123 = scmp.eq.s32.totalorder %s22, 1
    %p124 = por %p122, %p123
    %p125 = scmp.ne.s32.totalorder %s116, %s117
    %p126 = scmp.eq.s32.totalorder %s22, 0
    %p127 = por %p125, %p126
    %p128 = scmp.ne.s32.totalorder %s116, %s117
    %p129 = scmp.eq.s32.totalorder %s23, 1
    %p130 = por %p128, %p129
    %p132 = scmp.ne.s32.totalorder %s117, %s131
    %p133 = scmp.eq.s32.totalorder %s23, 0
    %p134 = por %p132, %p133
    %s136 = sadd.s32 %s135, 1
    %p139 = scmp.eq.s32.totalorder %s17, 1
    %p140 = scmp.ne.s32.totalorder %s135, %s137
    %p141 = scmp.eq.s32.totalorder %s17, 0
    %p142 = por %p140, %p141
    %p143 = scmp.ne.s32.totalorder %s135, %s137
    %p144 = scmp.eq.s32.totalorder %s22, 1
    %p145 = por %p143, %p144
    %p146 = scmp.ne.s32.totalorder %s137, %s138
    %p147 = scmp.eq.s32.totalorder %s22, 0
    %p148 = por %p146, %p147
    %p149 = scmp.ne.s32.totalorder %s137, %s138
    %p150 = scmp.eq.s32.totalorder %s23, 1
    %p151 = por %p149, %p150
    %p153 = scmp.ne.s32.totalorder %s138, %s152
    %p154 = scmp.eq.s32.totalorder %s23, 0
    %p155 = por %p153, %p154
    %s157 = sadd.s32 %s156, 1
    %p160 = scmp.eq.s32.totalorder %s17, 1
    %p161 = scmp.ne.s32.totalorder %s156, %s158
    %p162 = scmp.eq.s32.totalorder %s17, 0
    %p163 = por %p161, %p162
    %p164 = scmp.ne.s32.totalorder %s156, %s158
    %p165 = scmp.eq.s32.totalorder %s22, 1
    %p166 = por %p164, %p165
    %p167 = scmp.ne.s32.totalorder %s158, %s159
    %p168 = scmp.eq.s32.totalorder %s22, 0
    %p169 = por %p167, %p168
    %p170 = scmp.ne.s32.totalorder %s158, %s159
    %p171 = scmp.eq.s32.totalorder %s23, 1
    %p172 = por %p170, %p171
    %p174 = scmp.ne.s32.totalorder %s159, %s173
    %p175 = scmp.eq.s32.totalorder %s23, 0
    %p176 = por %p174, %p175
    %s178 = sadd.s32 %s177, 1
    %p181 = scmp.eq.s32.totalorder %s17, 1
    %p182 = scmp.ne.s32.totalorder %s177, %s179
    %p183 = scmp.eq.s32.totalorder %s17, 0
    %p184 = por %p182, %p183
    %p185 = scmp.ne.s32.totalorder %s177, %s179
    %p186 = scmp.eq.s32.totalorder %s22, 1
    %p187 = por %p185, %p186
    %p188 = scmp.ne.s32.totalorder %s179, %s180
    %p189 = scmp.eq.s32.totalorder %s22, 0
    %p190 = por %p188, %p189
    %p191 = scmp.ne.s32.totalorder %s179, %s180
    %p192 = scmp.eq.s32.totalorder %s23, 1
    %p193 = por %p191, %p192
    %p195 = scmp.ne.s32.totalorder %s180, %s194
    %p196 = scmp.eq.s32.totalorder %s23, 0
    %p197 = por %p195, %p196
    %s199 = sadd.s32 %s198, 1
    %p202 = scmp.eq.s32.totalorder %s17, 1
    %p203 = scmp.ne.s32.totalorder %s198, %s200
    %p204 = scmp.eq.s32.totalorder %s17, 0
    %p205 = por %p203, %p204
    %p206 = scmp.ne.s32.totalorder %s198, %s200
    %p207 = scmp.eq.s32.totalorder %s22, 1
    %p208 = por %p206, %p207
    %p209 = scmp.ne.s32.totalorder %s200, %s201
    %p210 = scmp.eq.s32.totalorder %s22, 0
    %p211 = por %p209, %p210
    %p212 = scmp.ne.s32.totalorder %s200, %s201
    %p213 = scmp.eq.s32.totalorder %s23, 1
    %p214 = por %p212, %p213
    %p216 = scmp.ne.s32.totalorder %s201, %s215
    %p217 = scmp.eq.s32.totalorder %s23, 0
    %p218 = por %p216, %p217
    %s219 = ssub.s32 %s17, %s24
    %p220 = scmp.eq.s32.totalorder %s219, 0
    %s222 = sadd.s32 %s221, 1
    %s223 = scalar_select %p220, %s221, %s222
    %p226 = pneg %p220
    %p227 = scmp.eq.s32.totalorder %s17, 1
    %p228 = por %p226, %p227
    %p229 = scmp.ne.s32.totalorder %s221, %s224
    %p230 = scmp.eq.s32.totalorder %s17, 0
    %p231 = por %p229, %p230
    %p232 = scmp.ne.s32.totalorder %s221, %s224
    %p233 = scmp.eq.s32.totalorder %s22, 1
    %p234 = por %p232, %p233
    %p235 = scmp.ne.s32.totalorder %s224, %s225
    %p236 = scmp.eq.s32.totalorder %s22, 0
    %p237 = por %p235, %p236
    %p238 = scmp.ne.s32.totalorder %s224, %s225
    %p239 = scmp.eq.s32.totalorder %s23, 1
    %p240 = por %p238, %p239
    %p242 = scmp.ne.s32.totalorder %s225, %s241
    %p243 = scmp.eq.s32.totalorder %s23, 0
    %p244 = por %p242, %p243
    %s245 = ssub.s32 %s17, %s24
    %p246 = scmp.eq.s32.totalorder %s245, 0
    %s248 = sadd.s32 %s247, 1
    %s249 = scalar_select %p246, %s247, %s248
    %p252 = pneg %p246
    %p253 = scmp.eq.s32.totalorder %s17, 1
    %p254 = por %p252, %p253
    %p255 = scmp.ne.s32.totalorder %s247, %s250
    %p256 = scmp.eq.s32.totalorder %s17, 0
    %p257 = por %p255, %p256
    %p258 = scmp.ne.s32.totalorder %s247, %s250
    %p259 = scmp.eq.s32.totalorder %s22, 1
    %p260 = por %p258, %p259
    %p261 = scmp.ne.s32.totalorder %s250, %s251
    %p262 = scmp.eq.s32.totalorder %s22, 0
    %p263 = por %p261, %p262
    %p264 = scmp.ne.s32.totalorder %s250, %s251
    %p265 = scmp.eq.s32.totalorder %s23, 1
    %p266 = por %p264, %p265
    %p268 = scmp.ne.s32.totalorder %s251, %s267
    %p269 = scmp.eq.s32.totalorder %s23, 0
    %p270 = por %p268, %p269
    %p271 = scmp.le.s32.totalorder 1, %s17
    %p272 = scmp.lt.s32.totalorder %s17, 3
    %p273 = pnand %p271, %p272
    %p274 = pneg %p273
    // Predicated region
    $region9: #{gssoft_forward.14} parent=5 // pred_check
      _
    $region10: #{gssoft_forward.14} parent=5 // pred_check_branch
      %276 = sbr.rel (%p273) target = $region12
    $region11: #{gssoft_forward.14} parent=5 // pred_region
      %s277 = ssub.s32 %s17, 1
      // Predicated region
      $region13: #{gssoft_forward.14} parent=11 // pred_check
        %p278 = pneg %p64
      $region14: #{gssoft_forward.14} parent=11 // pred_check_branch
        %280 = sbr.rel (%p278) target = $region16
      $region15: #{gssoft_forward.14} parent=11 // pred_region
        _
      $region16: #{gssoft_forward.14} parent=11 // pred_fallthru
        _
      // Predicated region
      $region17: #{gssoft_forward.14} parent=11 // pred_check
        %p281 = pneg %p85
      $region18: #{gssoft_forward.14} parent=11 // pred_check_branch
        %283 = sbr.rel (%p281) target = $region20
      $region19: #{gssoft_forward.14} parent=11 // pred_region
        _
      $region20: #{gssoft_forward.14} parent=11 // pred_fallthru
        _
      // Predicated region
      $region21: #{gssoft_forward.14} parent=11 // pred_check
        %p284 = pneg %p106
      $region22: #{gssoft_forward.14} parent=11 // pred_check_branch
        %286 = sbr.rel (%p284) target = $region24
      $region23: #{gssoft_forward.14} parent=11 // pred_region
        _
      $region24: #{gssoft_forward.14} parent=11 // pred_fallthru
        _
      // Predicated region
      $region25: #{gssoft_forward.14} parent=11 // pred_check
        %p287 = pneg %p127
      $region26: #{gssoft_forward.14} parent=11 // pred_check_branch
        %289 = sbr.rel (%p287) target = $region28
      $region27: #{gssoft_forward.14} parent=11 // pred_region
        _
      $region28: #{gssoft_forward.14} parent=11 // pred_fallthru
        _
      // Predicated region
      $region29: #{gssoft_forward.14} parent=11 // pred_check
        %p290 = pneg %p148
      $region30: #{gssoft_forward.14} parent=11 // pred_check_branch
        %292 = sbr.rel (%p290) target = $region32
      $region31: #{gssoft_forward.14} parent=11 // pred_region
        _
      $region32: #{gssoft_forward.14} parent=11 // pred_fallthru
        _
      // Predicated region
      $region33: #{gssoft_forward.14} parent=11 // pred_check
        %p293 = pneg %p169
      $region34: #{gssoft_forward.14} parent=11 // pred_check_branch
        %295 = sbr.rel (%p293) target = $region36
      $region35: #{gssoft_forward.14} parent=11 // pred_region
        _
      $region36: #{gssoft_forward.14} parent=11 // pred_fallthru
        _
      // Predicated region
      $region37: #{gssoft_forward.14} parent=11 // pred_check
        %p296 = pneg %p190
      $region38: #{gssoft_forward.14} parent=11 // pred_check_branch
        %298 = sbr.rel (%p296) target = $region40
      $region39: #{gssoft_forward.14} parent=11 // pred_region
        _
      $region40: #{gssoft_forward.14} parent=11 // pred_fallthru
        _
      // Predicated region
      $region41: #{gssoft_forward.14} parent=11 // pred_check
        %p299 = pneg %p211
      $region42: #{gssoft_forward.14} parent=11 // pred_check_branch
        %301 = sbr.rel (%p299) target = $region44
      $region43: #{gssoft_forward.14} parent=11 // pred_region
        _
      $region44: #{gssoft_forward.14} parent=11 // pred_fallthru
        _
    $region12: #{gssoft_forward.14} parent=5 // pred_fallthru
      _
    %p302 = scmp.lt.s32.totalorder %s17, 2
    // Predicated region
    $region45: #{gssoft_forward.14} parent=5 // pred_check
      %p303 = pneg %p302
    $region46: #{gssoft_forward.14} parent=5 // pred_check_branch
      %305 = sbr.rel (%p303) target = $region48
    $region47: #{gssoft_forward.14} parent=5 // pred_region
      // Predicated region
      $region49: #{gssoft_forward.14} parent=47 // pred_check
        %p306 = pneg %p37
      $region50: #{gssoft_forward.14} parent=47 // pred_check_branch
        %308 = sbr.rel (%p306) target = $region52
      $region51: #{gssoft_forward.14} parent=47 // pred_region
        %s309 = smul.u32 2, %s17
        %p310 = scmp.lt.s32.totalorder %s309, 3
        %s311 = scalar_select %p310, %s309, 3
        %s312 = smul.addr %s311, 4
        %s313 = scalar_lea.vmem %s0, %s312
        %s314 = smul.u32 2, %s17
      $region52: #{gssoft_forward.14} parent=47 // pred_fallthru
        _
    $region48: #{gssoft_forward.14} parent=5 // pred_fallthru
      _
    %p315 = scmp.le.s32.totalorder 1, %s17
    %p316 = scmp.lt.s32.totalorder %s17, 3
    %p317 = pnand %p315, %p316
    %p318 = pneg %p317
    // Predicated region
    $region53: #{gssoft_forward.14} parent=5 // pred_check
      _
    $region54: #{gssoft_forward.14} parent=5 // pred_check_branch
      %320 = sbr.rel (%p317) target = $region56
    $region55: #{gssoft_forward.14} parent=5 // pred_region
      %s321 = ssub.s32 %s17, 1
      %s322 = smul.u32 2, %s22
      %p323 = scmp.lt.s32.totalorder %s322, 3
      %s324 = scalar_select %p323, %s322, 3
      %s325 = smul.addr %s324, 4
      %s326 = scalar_lea.vmem %s0, %s325
      %p327 = pneg %p43
      %p328 = pneg %p40
      %p329 = pneg %p64
      %p330 = pneg %p61
      %p331 = pneg %p85
      %p332 = pneg %p82
      %p333 = pneg %p106
      %p334 = pneg %p103
      %p335 = pneg %p127
      %p336 = pneg %p124
      %p337 = pneg %p148
      %p338 = pneg %p145
      %p339 = pneg %p169
      %p340 = pneg %p166
      %p341 = pneg %p190
      %p342 = pneg %p187
      %p343 = pneg %p211
      %p344 = pneg %p208
      %p345 = pneg %p237
      %p346 = pneg %p234
      %s347 = smul.u32 2, %s22
      %p348 = scmp.lt.s32.totalorder %s347, 3
      %s349 = scalar_select %p348, %s347, 3
      %s350 = smul.addr %s349, 4
      %s351 = scalar_lea.vmem %s9, %s350
      %p352 = pneg %p263
      %p353 = pneg %p260
      %s354 = smul.u32 2, %s22
      %p355 = scmp.lt.s32.totalorder %s354, 3
      %s356 = scalar_select %p355, %s354, 3
      %s357 = smul.addr %s356, 8
      %s358 = scalar_lea.vmem %s10, %s357
      %s359 = smul.u32 2, %s22
      %p360 = scmp.lt.s32.totalorder %s359, 3
      %s361 = scalar_select %p360, %s359, 3
      %s362 = smul.addr %s361, 4
      %s363 = scalar_lea.vmem %s0, %s362
      %s364 = smul.u32 2, %s22
      %s365 = smul.u32 2, %s22
      %p366 = scmp.lt.s32.totalorder %s365, 3
      %s367 = scalar_select %p366, %s365, 3
      %s368 = smul.addr %s367, 4
      %s369 = scalar_lea.vmem %s9, %s368
      %s370 = smul.u32 2, %s22
      %s371 = smul.u32 2, %s22
      %p372 = scmp.lt.s32.totalorder %s371, 3
      %s373 = scalar_select %p372, %s371, 3
      %s374 = smul.addr %s373, 8
      %s375 = scalar_lea.vmem %s10, %s374
      %s376 = smul.u32 2, %s22
      %v378 = vld [vmem:[%s363] sm:$0xf]
      %v379 = vld [vmem:[%s363 + $0x4] sm:$0xf]
      %v380 = vld [vmem:[%s1] sm:$0x3]
      %v381 = vld [vmem:[%s2] sm:$0x1]
      %v383 = vlaneseq
      %v384 = vshrl.u32 %v383, 7
      %v385 = vsub.s32 0, %v384
      %v386 = vrot.slane %v381, %v385
      %v390 = vunpack.c.l.b16 %v378
      %v391 = vunpack.c.l.b16 %v379
      %v392 = vpack.c.b16 %v391, %v390
      %vm393 = vcmask 23552
      %v395 = vsel %vm393, %v392, 0
      %vm397 = vcmask 1040384
      %vm398 = vcmask 1041408
      %v399 = vsel %vm397, 4294967295, 65535
      %v400 = vsel %vm398, %v399, 0
      %v402 = vand.u32 %v380, %v400
      %404 = vmatprep.subr.bf16.mxu0 0
      %405 = vmatpush1.bf16.msra.mxu0 %v402
      %406 = vmatprep.subr.bf16.mxu0 0
      %407 = vmatpush1.bf16.msra.mxu0 0
      %408 = vmatprep.subr.bf16.mxu0 0
      %409 = vmatpush1.bf16.msra.mxu0 0
      %410 = vmatprep.subr.bf16.mxu0 0
      %411 = vmatpush1.bf16.msra.mxu0 0
      %412 = vmatprep.subr.bf16.mxu0 0
      %413 = vmatpush1.bf16.msra.mxu0 0
      %414 = vmatprep.subr.bf16.mxu0 0
      %415 = vmatpush1.bf16.msra.mxu0 0
      %416 = vmatprep.subr.bf16.mxu0 0
      %417 = vmatpush1.bf16.msra.mxu0 0
      %418 = vmatprep.subr.bf16.mxu0 0
      %419 = vmatpush1.bf16.msra.mxu0 0
      %420 = vmatprep.subr.bf16.mxu0 0
      %421 = vmatpush1.bf16.msra.mxu0 0
      %422 = vmatprep.subr.bf16.mxu0 0
      %423 = vmatpush1.bf16.msra.mxu0 0
      %424 = vmatprep.subr.bf16.mxu0 0
      %425 = vmatpush1.bf16.msra.mxu0 0
      %426 = vmatprep.subr.bf16.mxu0 0
      %427 = vmatpush1.bf16.msra.mxu0 0
      %428 = vmatprep.subr.bf16.mxu0 0
      %429 = vmatpush1.bf16.msra.mxu0 0
      %430 = vmatprep.subr.bf16.mxu0 0
      %431 = vmatpush1.bf16.msra.mxu0 0
      %432 = vmatprep.subr.bf16.mxu0 0
      %433 = vmatpush1.bf16.msra.mxu0 0
      %434 = vmatprep.subr.bf16.mxu0 0
      %435 = vmatpush1.bf16.msra.mxu0 0
      %436 = vmatprep.mubr.bf16.mxu0 0
      %437 = vmatmul.mubr.bf16.gmra.mrb[0].mxu0 %v395
      %v438 = vpop.f32.mrb[0].mxu0
      %v439 = vadd.f32 %v386, %v438
      %v440 = vpop.f32.mrb[0].mxu0
      %v441 = vpop.f32.mrb[0].mxu0
      %v442 = vadd.f32 %v386, %v441
      %v443 = vpop.f32.mrb[0].mxu0
      %444 = vdwg.mxu0
      %v445 = vmul.f32 %v439, %v439
      %v446 = vmul.f32 %v442, %v442
      %vm447 = vcmask 130048
      %v448 = vsel %vm447, %v445, 0.0
      %449 = vadd.xlane.f32.xlu0 %v448
      %v450 = vpop.xlane.xlu0 %449
      %v451 = vsel %vm447, %v446, 0.0
      %452 = vadd.xlane.f32.xlu0 %v451
      %v453 = vpop.xlane.xlu0 %452
      %v454 = vld [vmem:[%s3] sm:$0xff]
      %v455 = vld [vmem:[%s3 + $0x8] sm:$0xff]
      %v457 = vsel %vm447, %v439, 0
      %v460 = vsel %vm447, %v442, 0
      %462 = vmatprep.subr.mxu0 0.0
      %463 = vmatpush1.msra.mxu0 %v454
      %464 = vmatprep.subr.mxu0 0.0
      %465 = vmatpush1.msra.mxu0 %v455
      %466 = vmatprep.subr.mxu0 0.0
      %467 = vmatpush1.msra.mxu0 0.0
      %468 = vmatprep.subr.mxu0 0.0
      %469 = vmatpush1.msra.mxu0 0.0
      %470 = vmatprep.subr.mxu0 0.0
      %471 = vmatpush1.msra.mxu0 0.0
      %472 = vmatprep.subr.mxu0 0.0
      %473 = vmatpush1.msra.mxu0 0.0
      %474 = vmatprep.subr.mxu0 0.0
      %475 = vmatpush1.msra.mxu0 0.0
      %476 = vmatprep.subr.mxu0 0.0
      %477 = vmatpush1.msra.mxu0 0.0
      %478 = vmatprep.subr.mxu0 0.0
      %479 = vmatpush1.msra.mxu0 0.0
      %480 = vmatprep.subr.mxu0 0.0
      %481 = vmatpush1.msra.mxu0 0.0
      %482 = vmatprep.subr.mxu0 0.0
      %483 = vmatpush1.msra.mxu0 0.0
      %484 = vmatprep.subr.mxu0 0.0
      %485 = vmatpush1.msra.mxu0 0.0
      %486 = vmatprep.subr.mxu0 0.0
      %487 = vmatpush1.msra.mxu0 0.0
      %488 = vmatprep.subr.mxu0 0.0
      %489 = vmatpush1.msra.mxu0 0.0
      %490 = vmatprep.subr.mxu0 0.0
      %491 = vmatpush1.msra.mxu0 0.0
      %492 = vmatprep.subr.mxu0 0.0
      %493 = vmatpush1.msra.mxu0 0.0
      %494 = vmatprep.subr.mxu0 0.0
      %495 = vmatpush1.msra.mxu0 0.0
      %496 = vmatprep.subr.mxu0 0.0
      %497 = vmatpush1.msra.mxu0 0.0
      %498 = vmatprep.subr.mxu0 0.0
      %499 = vmatpush1.msra.mxu0 0.0
      %500 = vmatprep.subr.mxu0 0.0
      %501 = vmatpush1.msra.mxu0 0.0
      %502 = vmatprep.subr.mxu0 0.0
      %503 = vmatpush1.msra.mxu0 0.0
      %504 = vmatprep.subr.mxu0 0.0
      %505 = vmatpush1.msra.mxu0 0.0
      %506 = vmatprep.subr.mxu0 0.0
      %507 = vmatpush1.msra.mxu0 0.0
      %508 = vmatprep.subr.mxu0 0.0
      %509 = vmatpush1.msra.mxu0 0.0
      %510 = vmatprep.subr.mxu0 0.0
      %511 = vmatpush1.msra.mxu0 0.0
      %512 = vmatprep.subr.mxu0 0.0
      %513 = vmatpush1.msra.mxu0 0.0
      %514 = vmatprep.subr.mxu0 0.0
      %515 = vmatpush1.msra.mxu0 0.0
      %516 = vmatprep.subr.mxu0 0.0
      %517 = vmatpush1.msra.mxu0 0.0
      %518 = vmatprep.subr.mxu0 0.0
      %519 = vmatpush1.msra.mxu0 0.0
      %520 = vmatprep.subr.mxu0 0.0
      %521 = vmatpush1.msra.mxu0 0.0
      %522 = vmatprep.subr.mxu0 0.0
      %523 = vmatpush1.msra.mxu0 0.0
      %524 = vmatprep.subr.mxu0 0.0
      %525 = vmatpush1.msra.mxu0 0.0
      %526 = vmatprep.mubr.f32.mxu0 0.0
      %527 = vmatmul.mubr.f32.gmra.mrb[0].mxu0 %v457
      %v528 = vpop.f32.mrb[0].mxu0
      %v529 = vadd.f32 0.0, %v528
      %v530 = vpop.f32.mrb[0].mxu0
      %531 = vmatprep.mubr.f32.mxu0 0.0
      %532 = vmatmul.mubr.f32.gmra.mrb[0].mxu0 %v460
      %v533 = vpop.f32.mrb[0].mxu0
      %v534 = vadd.f32 0.0, %v533
      %v535 = vpop.f32.mrb[0].mxu0
      %536 = vdwg.mxu0
      %v537 = vmul.f32 %v529, 2.0
      %v538 = vmul.f32 %v534, 2.0
      %v539 = vsub.f32 %v537, %v450
      %v540 = vsub.f32 %v538, %v453
      %v541 = vld [vmem:[%s4] sm:$0x1]
      %v543 = vlaneseq
      %v544 = vshrl.u32 %v543, 7
      %v545 = vsub.s32 0, %v544
      %v546 = vrot.slane %v541, %v545
      %v548 = vsub.f32 %v539, %v546
      %v549 = vsub.f32 %v540, %v546
      %550 = vmax.xlane.f32.xlu0 %v548
      %v551 = vpop.xlane.xlu0 %550
      %552 = vmax.xlane.f32.xlu0 %v549
      %v553 = vpop.xlane.xlu0 %552
      %v554 = vsub.f32 %v548, %v551
      %v555 = vsub.f32 %v549, %v553
      %v556 = vmul.f32 %v554, 1.442695
      %v557 = vpow.pop %v556
      %v558 = vmul.f32 %v555, 1.442695
      %v559 = vpow.pop %v558
      %560 = vadd.xlane.f32.xlu0 %v557
      %v561 = vpop.xlane.xlu0 %560
      %562 = vadd.xlane.f32.xlu0 %v559
      %v563 = vpop.xlane.xlu0 %562
      %v564 = vrcp.pop %v561
      %v565 = vrcp.pop %v563
      %v566 = vmul.f32 %v557, %v564
      %v567 = vmul.f32 %v559, %v565
      %v568 = vlog2.pop %v561
      %v569 = vmul.f32 %v568, 0.6931472
      %v570 = vlog2.pop %v563
      %v571 = vmul.f32 %v570, 0.6931472
      %v572 = vsub.f32 %v554, %v569
      %v573 = vsub.f32 %v555, %v571
      %vm574 = vcmp.eq.f32.partialorder %v566, 0.0
      %vm575 = vcmp.eq.f32.partialorder %v567, 0.0
      %v576 = vadd.f32 %v572, 3.465736
      %v577 = vadd.f32 %v573, 3.465736
      %v578 = vmul.f32 %v566, %v576
      %v579 = vmul.f32 %v567, %v577
      %v580 = vsel %vm574, 0.0, %v578
      %v581 = vsel %vm575, 0.0, %v579
      %582 = vadd.xlane.f32.xlu0 %v580
      %v583 = vpop.xlane.xlu0 %582
      %584 = vadd.xlane.f32.xlu0 %v581
      %v585 = vpop.xlane.xlu0 %584
      %vm586 = vcmask 7168
      %587 = vst.msk [vmem:[%s375] sm:$0xff] %vm586, %v583
      %588 = vst.msk [vmem:[%s375 + $0x8] sm:$0xff] %vm586, %v585
      %v589 = vlaneseq
      %v590 = vand.u32 %v589, 127
      %vm591 = vcmp.ge.f32.partialorder %v548, %v551
      %vm592 = vcmp.ge.f32.partialorder %v549, %v553
      %v593 = vsel %vm591, %v590, 128
      %v594 = vsel %vm592, %v590, 128
      %v595 = vand.u32 %v593, 65535
      %v596 = vshra.s32 %v593, 16
      %v597 = vcvt.s32.f32 %v595
      %v598 = vcvt.s32.f32 %v596
      %599 = vmin.xlane.f32.xlu0 %v598
      %v600 = vpop.xlane.xlu0 %599
      %vm601 = vcmp.eq.f32.partialorder %v598, %v600
      %v602 = vsel %vm601, %v597, inf
      %603 = vmin.xlane.f32.xlu0 %v602
      %v604 = vpop.xlane.xlu0 %603
      %v605 = vcvt.f32.s32 %v604
      %v606 = vcvt.f32.s32 %v600
      %v607 = vshll.u32 %v606, 16
      %v608 = vadd.s32 %v607, %v605
      %v609 = vand.u32 %v594, 65535
      %v610 = vshra.s32 %v594, 16
      %v611 = vcvt.s32.f32 %v609
      %v612 = vcvt.s32.f32 %v610
      %613 = vmin.xlane.f32.xlu0 %v612
      %v614 = vpop.xlane.xlu0 %613
      %vm615 = vcmp.eq.f32.partialorder %v612, %v614
      %v616 = vsel %vm615, %v611, inf
      %617 = vmin.xlane.f32.xlu0 %v616
      %v618 = vpop.xlane.xlu0 %617
      %v619 = vcvt.f32.s32 %v618
      %v620 = vcvt.f32.s32 %v614
      %v621 = vshll.u32 %v620, 16
      %v622 = vadd.s32 %v621, %v619
      %vm623 = vcmp.eq.s32.totalorder %v590, %v608
      %vm624 = vcmp.eq.s32.totalorder %v590, %v622
      %v625 = vsel %vm623, 1, 0
      %v626 = vsel %vm624, 1, 0
      %v627 = vcvt.s32.f32 %v625
      %v628 = vcvt.s32.f32 %v626
      %v629 = vld [vmem:[%s5] sm:$0xff]
      %v630 = vld [vmem:[%s5 + $0x8] sm:$0xff]
      %v631 = vld [vmem:[%s5 + $0x10] sm:$0xff]
      %v632 = vld [vmem:[%s5 + $0x18] sm:$0xff]
      %v633 = vld [vmem:[%s5 + $0x20] sm:$0xff]
      %v634 = vld [vmem:[%s5 + $0x28] sm:$0xff]
      %v635 = vld [vmem:[%s5 + $0x30] sm:$0xff]
      %v636 = vld [vmem:[%s5 + $0x38] sm:$0xff]
      %v637 = vld [vmem:[%s5 + $0x40] sm:$0xff]
      %v638 = vld [vmem:[%s5 + $0x48] sm:$0xff]
      %v639 = vld [vmem:[%s5 + $0x50] sm:$0xff]
      %v640 = vld [vmem:[%s5 + $0x58] sm:$0xff]
      %v641 = vld [vmem:[%s5 + $0x60] sm:$0xff]
      %v642 = vld [vmem:[%s5 + $0x68] sm:$0xff]
      %v643 = vld [vmem:[%s5 + $0x70] sm:$0xff]
      %v644 = vld [vmem:[%s5 + $0x78] sm:$0xff]
      %645 = vmatprep.subr.mxu0 0.0
      %646 = vmatpush1.msra.mxu0 %v629
      %647 = vmatprep.subr.mxu0 0.0
      %648 = vmatpush1.msra.mxu0 %v630
      %649 = vmatprep.subr.mxu0 0.0
      %650 = vmatpush1.msra.mxu0 %v631
      %651 = vmatprep.subr.mxu0 0.0
      %652 = vmatpush1.msra.mxu0 %v632
      %653 = vmatprep.subr.mxu0 0.0
      %654 = vmatpush1.msra.mxu0 %v633
      %655 = vmatprep.subr.mxu0 0.0
      %656 = vmatpush1.msra.mxu0 %v634
      %657 = vmatprep.subr.mxu0 0.0
      %658 = vmatpush1.msra.mxu0 %v635
      %659 = vmatprep.subr.mxu0 0.0
      %660 = vmatpush1.msra.mxu0 %v636
      %661 = vmatprep.subr.mxu0 0.0
      %662 = vmatpush1.msra.mxu0 %v637
      %663 = vmatprep.subr.mxu0 0.0
      %664 = vmatpush1.msra.mxu0 %v638
      %665 = vmatprep.subr.mxu0 0.0
      %666 = vmatpush1.msra.mxu0 %v639
      %667 = vmatprep.subr.mxu0 0.0
      %668 = vmatpush1.msra.mxu0 %v640
      %669 = vmatprep.subr.mxu0 0.0
      %670 = vmatpush1.msra.mxu0 %v641
      %671 = vmatprep.subr.mxu0 0.0
      %672 = vmatpush1.msra.mxu0 %v642
      %673 = vmatprep.subr.mxu0 0.0
      %674 = vmatpush1.msra.mxu0 %v643
      %675 = vmatprep.subr.mxu0 0.0
      %676 = vmatpush1.msra.mxu0 %v644
      %677 = vmatprep.subr.mxu0 0.0
      %678 = vmatpush1.msra.mxu0 0.0
      %679 = vmatprep.subr.mxu0 0.0
      %680 = vmatpush1.msra.mxu0 0.0
      %681 = vmatprep.subr.mxu0 0.0
      %682 = vmatpush1.msra.mxu0 0.0
      %683 = vmatprep.subr.mxu0 0.0
      %684 = vmatpush1.msra.mxu0 0.0
      %685 = vmatprep.subr.mxu0 0.0
      %686 = vmatpush1.msra.mxu0 0.0
      %687 = vmatprep.subr.mxu0 0.0
      %688 = vmatpush1.msra.mxu0 0.0
      %689 = vmatprep.subr.mxu0 0.0
      %690 = vmatpush1.msra.mxu0 0.0
      %691 = vmatprep.subr.mxu0 0.0
      %692 = vmatpush1.msra.mxu0 0.0
      %693 = vmatprep.subr.mxu0 0.0
      %694 = vmatpush1.msra.mxu0 0.0
      %695 = vmatprep.subr.mxu0 0.0
      %696 = vmatpush1.msra.mxu0 0.0
      %697 = vmatprep.subr.mxu0 0.0
      %698 = vmatpush1.msra.mxu0 0.0
      %699 = vmatprep.subr.mxu0 0.0
      %700 = vmatpush1.msra.mxu0 0.0
      %701 = vmatprep.subr.mxu0 0.0
      %702 = vmatpush1.msra.mxu0 0.0
      %703 = vmatprep.subr.mxu0 0.0
      %704 = vmatpush1.msra.mxu0 0.0
      %705 = vmatprep.subr.mxu0 0.0
      %706 = vmatpush1.msra.mxu0 0.0
      %707 = vmatprep.subr.mxu0 0.0
      %708 = vmatpush1.msra.mxu0 0.0
      %709 = vmatprep.mubr.f32.mxu0 0.0
      %710 = vmatmul.mubr.f32.gmra.mrb[0].mxu0 %v627
      %v711 = vpop.f32.mrb[0].mxu0
      %v712 = vadd.f32 0.0, %v711
      %v713 = vpop.f32.mrb[0].mxu0
      %714 = vmatprep.mubr.f32.mxu0 0.0
      %715 = vmatmul.mubr.f32.gmra.mrb[0].mxu0 %v628
      %v716 = vpop.f32.mrb[0].mxu0
      %v717 = vadd.f32 0.0, %v716
      %v718 = vpop.f32.mrb[0].mxu0
      %719 = vdwg.mxu0
      %v720 = vpack.c.bf16 %v717, %v712
      %v721 = vld [vmem:[%s6] sm:$0xf]
      %v722 = vld [vmem:[%s6 + $0x4] sm:$0xf]
      %v725 = vunpack.c.l.b16 %v721
      %v726 = vunpack.c.l.b16 %v722
      %v727 = vpack.c.b16 %v726, %v725
      %v730 = vsel %vm447, %v720, 0
      %732 = vmatprep.subr.bf16.mxu0 0
      %733 = vmatpush1.bf16.msra.mxu0 %v727
      %734 = vmatprep.subr.bf16.mxu0 0
      %735 = vmatpush1.bf16.msra.mxu0 0
      %736 = vmatprep.subr.bf16.mxu0 0
      %737 = vmatpush1.bf16.msra.mxu0 0
      %738 = vmatprep.subr.bf16.mxu0 0
      %739 = vmatpush1.bf16.msra.mxu0 0
      %740 = vmatprep.subr.bf16.mxu0 0
      %741 = vmatpush1.bf16.msra.mxu0 0
      %742 = vmatprep.subr.bf16.mxu0 0
      %743 = vmatpush1.bf16.msra.mxu0 0
      %744 = vmatprep.subr.bf16.mxu0 0
      %745 = vmatpush1.bf16.msra.mxu0 0
      %746 = vmatprep.subr.bf16.mxu0 0
      %747 = vmatpush1.bf16.msra.mxu0 0
      %748 = vmatprep.subr.bf16.mxu0 0
      %749 = vmatpush1.bf16.msra.mxu0 0
      %750 = vmatprep.subr.bf16.mxu0 0
      %751 = vmatpush1.bf16.msra.mxu0 0
      %752 = vmatprep.subr.bf16.mxu0 0
      %753 = vmatpush1.bf16.msra.mxu0 0
      %754 = vmatprep.subr.bf16.mxu0 0
      %755 = vmatpush1.bf16.msra.mxu0 0
      %756 = vmatprep.subr.bf16.mxu0 0
      %757 = vmatpush1.bf16.msra.mxu0 0
      %758 = vmatprep.subr.bf16.mxu0 0
      %759 = vmatpush1.bf16.msra.mxu0 0
      %760 = vmatprep.subr.bf16.mxu0 0
      %761 = vmatpush1.bf16.msra.mxu0 0
      %762 = vmatprep.subr.bf16.mxu0 0
      %763 = vmatpush1.bf16.msra.mxu0 0
      %764 = vmatprep.mubr.bf16.mxu0 0
      %765 = vmatmul.mubr.bf16.gmra.mrb[0].mxu0 %v730
      %v766 = vpop.f32.mrb[0].mxu0
      %v767 = vadd.f32 0.0, %v766
      %v768 = vpop.f32.mrb[0].mxu0
      %v769 = vpop.f32.mrb[0].mxu0
      %v770 = vadd.f32 0.0, %v769
      %v771 = vpop.f32.mrb[0].mxu0
      %772 = vdwg.mxu0
      %v773 = vld [vmem:[%s7] sm:$0x1]
      %v775 = vlaneseq
      %v776 = vshrl.u32 %v775, 7
      %v777 = vsub.s32 0, %v776
      %v778 = vrot.slane %v773, %v777
      %v780 = vmul.f32 %v767, %v778
      %v781 = vmul.f32 %v770, %v778
      %v782 = vld [vmem:[%s8] sm:$0x1]
      %v784 = vlaneseq
      %v785 = vshrl.u32 %v784, 7
      %v786 = vsub.s32 0, %v785
      %v787 = vrot.slane %v782, %v786
      %v789 = vadd.f32 %v780, %v787
      %v790 = vadd.f32 %v781, %v787
      %v791 = vpack.c.bf16 %v790, %v789
      %v793 = vunpack.c.l.b16 %v791
      %v794 = vunpack.c.h.b16 %v791
      %v795 = vpack.c.b16 %v793, %v793
      %v796 = vpack.c.b16 %v794, %v794
      %vm799 = vcmask 19456
      %800 = vst.msk [vmem:[%s369] sm:$0xf] %vm799, %v795
      %801 = vst.msk [vmem:[%s369 + $0x4] sm:$0xf] %vm799, %v796
      %s802 = smul.u32 2, %s22
      %p803 = scmp.lt.s32.totalorder %s802, 3
      %s804 = scalar_select %p803, %s802, 3
      %s805 = smul.addr %s804, 4
      %s806 = scalar_lea.vmem %s9, %s805
      %s807 = smul.u32 2, %s22
      %p808 = scmp.lt.s32.totalorder %s807, 3
      %s809 = scalar_select %p808, %s807, 3
      %s810 = smul.addr %s809, 8
      %s811 = scalar_lea.vmem %s10, %s810
      // Predicated region
      $region57: #{gssoft_forward.14} parent=55 // pred_check
        %p812 = pneg %p234
      $region58: #{gssoft_forward.14} parent=55 // pred_check_branch
        %814 = sbr.rel (%p812) target = $region60
      $region59: #{gssoft_forward.14} parent=55 // pred_region
        %s815 = smul.u32 2, %s22
      $region60: #{gssoft_forward.14} parent=55 // pred_fallthru
        _
      // Predicated region
      $region61: #{gssoft_forward.14} parent=55 // pred_check
        %p816 = pneg %p260
      $region62: #{gssoft_forward.14} parent=55 // pred_check_branch
        %818 = sbr.rel (%p816) target = $region64
      $region63: #{gssoft_forward.14} parent=55 // pred_region
        %s819 = smul.u32 2, %s22
      $region64: #{gssoft_forward.14} parent=55 // pred_fallthru
        _
    $region56: #{gssoft_forward.14} parent=5 // pred_fallthru
      _
    %p820 = scmp.le.s32.totalorder 2, %s17
    // Predicated region
    $region65: #{gssoft_forward.14} parent=5 // pred_check
      %p821 = pneg %p820
    $region66: #{gssoft_forward.14} parent=5 // pred_check_branch
      %823 = sbr.rel (%p821) target = $region68
    $region67: #{gssoft_forward.14} parent=5 // pred_region
      %s824 = ssub.s32 %s17, 2
      // Predicated region
      $region69: #{gssoft_forward.14} parent=67 // pred_check
        %p825 = pneg %p240
      $region70: #{gssoft_forward.14} parent=67 // pred_check_branch
        %827 = sbr.rel (%p825) target = $region72
      $region71: #{gssoft_forward.14} parent=67 // pred_region
        %s828 = smul.u32 2, %s23
        %p829 = scmp.lt.s32.totalorder %s828, 3
        %s830 = scalar_select %p829, %s828, 3
        %s831 = smul.addr %s830, 4
        %s832 = scalar_lea.vmem %s9, %s831
      $region72: #{gssoft_forward.14} parent=67 // pred_fallthru
        _
      // Predicated region
      $region73: #{gssoft_forward.14} parent=67 // pred_check
        %p833 = pneg %p266
      $region74: #{gssoft_forward.14} parent=67 // pred_check_branch
        %835 = sbr.rel (%p833) target = $region76
      $region75: #{gssoft_forward.14} parent=67 // pred_region
        %s836 = smul.u32 2, %s23
        %p837 = scmp.lt.s32.totalorder %s836, 3
        %s838 = scalar_select %p837, %s836, 3
        %s839 = smul.addr %s838, 8
        %s840 = scalar_lea.vmem %s10, %s839
      $region76: #{gssoft_forward.14} parent=67 // pred_fallthru
        _
    $region68: #{gssoft_forward.14} parent=5 // pred_fallthru
      _
  $region6: #{gssoft_forward.14} parent=0 // loop_footer
    %s21 = sadd.s32 1, %s17
  $region7: #{gssoft_forward.14} parent=0 // loop_footer_branch
    %16 = sbr.rel target = $region3
  $region8: #{gssoft_forward.14} parent=0 // loop_exit
    _

// kernel: gssoft_forward.18
$region0: #{gssoft_forward.18}
  #allocation0 [shape = 'u32[]', space=smem, size = 0x4, offset = 0x4, fixed_abs, tag = 'smem constant byte address 0x4 - core index']
  #allocation1 [shape = 'u32[144,128]{1,0:T(1,128)}', space=vmem, size = 0x12000, scoped, tag = 'internal scratch']
  %s0 = inlined_call_operand.vmem [shape: bf16[128,27], index: 0, kind: input, shape index: {}]
  %s1 = inlined_call_operand.vmem [shape: bf16[27,12], index: 1, kind: input, shape index: {}]
  %s2 = inlined_call_operand.vmem [shape: f32[1,12], index: 2, kind: input, shape index: {}]
  %s3 = inlined_call_operand.vmem [shape: f32[1,12], index: 3, kind: input, shape index: {}]
  %s4 = inlined_call_operand.vmem [shape: bf16[128,12], index: 4, kind: output, shape index: {}]
  %s5 = sld [smem:[#allocation0]]
  $region49: #{gssoft_forward.18} parent=0
    _
  %s7 = ssub.s32 1, %s5
  %s8 = scalar_select 0, %s7, %s5
  loop: start=0, step=1, limit=4
  $region2: #{gssoft_forward.18} parent=0 // loop_pre_header
    _
  $region3: #{gssoft_forward.18} parent=0 // loop_header
    %s10 = sphi 0, %s14
    %p11 = scmp.ge.s32.totalorder %s10, 4
    %s20 = sphi 0, %s22
    %s23 = sphi 0, %s20
    %s24 = sphi 0, %s23
    %s40 = sphi 0, %s24
    %s44 = sphi 0, %s44
    %s46 = sphi 0, %s44
    %s47 = sphi 0, %s46
    %s61 = sphi 0, %s47
    %s65 = sphi 0, %s65
    %s67 = sphi 0, %s65
    %s68 = sphi 0, %s67
    %s82 = sphi 0, %s68
    %s86 = sphi 0, %s86
    %s88 = sphi 0, %s86
    %s89 = sphi 0, %s88
    %s103 = sphi 0, %s89
    %s109 = sphi 0, %s111
    %s112 = sphi 0, %s109
    %s113 = sphi 0, %s112
    %s129 = sphi 0, %s113
  $region4: #{gssoft_forward.18} parent=0 // loop_header_branch
    %13 = sbr.rel (%p11) target = $region8
  $region5: #{gssoft_forward.18} parent=0 // loop_body
    %s15 = ssub.s32 %s10, 1
    %s16 = ssub.s32 %s10, 2
    %s17 = sadd.s32 %s10, 1
    %s18 = ssub.s32 %s10, %s17
    %p19 = scmp.eq.s32.totalorder %s18, 0
    %s21 = sadd.s32 %s20, 1
    %s22 = scalar_select %p19, %s20, %s21
    %p25 = pneg %p19
    %p26 = scmp.eq.s32.totalorder %s10, 1
    %p27 = por %p25, %p26
    %p28 = scmp.ne.s32.totalorder %s20, %s23
    %p29 = scmp.eq.s32.totalorder %s10, 0
    %p30 = por %p28, %p29
    %p31 = scmp.ne.s32.totalorder %s20, %s23
    %p32 = scmp.eq.s32.totalorder %s15, 1
    %p33 = por %p31, %p32
    %p34 = scmp.ne.s32.totalorder %s23, %s24
    %p35 = scmp.eq.s32.totalorder %s15, 0
    %p36 = por %p34, %p35
    %p37 = scmp.ne.s32.totalorder %s23, %s24
    %p38 = scmp.eq.s32.totalorder %s16, 1
    %p39 = por %p37, %p38
    %p41 = scmp.ne.s32.totalorder %s24, %s40
    %p42 = scmp.eq.s32.totalorder %s16, 0
    %p43 = por %p41, %p42
    %s45 = sadd.s32 %s44, 1
    %p48 = scmp.eq.s32.totalorder %s10, 1
    %p49 = scmp.ne.s32.totalorder %s44, %s46
    %p50 = scmp.eq.s32.totalorder %s10, 0
    %p51 = por %p49, %p50
    %p52 = scmp.ne.s32.totalorder %s44, %s46
    %p53 = scmp.eq.s32.totalorder %s15, 1
    %p54 = por %p52, %p53
    %p55 = scmp.ne.s32.totalorder %s46, %s47
    %p56 = scmp.eq.s32.totalorder %s15, 0
    %p57 = por %p55, %p56
    %p58 = scmp.ne.s32.totalorder %s46, %s47
    %p59 = scmp.eq.s32.totalorder %s16, 1
    %p60 = por %p58, %p59
    %p62 = scmp.ne.s32.totalorder %s47, %s61
    %p63 = scmp.eq.s32.totalorder %s16, 0
    %p64 = por %p62, %p63
    %s66 = sadd.s32 %s65, 1
    %p69 = scmp.eq.s32.totalorder %s10, 1
    %p70 = scmp.ne.s32.totalorder %s65, %s67
    %p71 = scmp.eq.s32.totalorder %s10, 0
    %p72 = por %p70, %p71
    %p73 = scmp.ne.s32.totalorder %s65, %s67
    %p74 = scmp.eq.s32.totalorder %s15, 1
    %p75 = por %p73, %p74
    %p76 = scmp.ne.s32.totalorder %s67, %s68
    %p77 = scmp.eq.s32.totalorder %s15, 0
    %p78 = por %p76, %p77
    %p79 = scmp.ne.s32.totalorder %s67, %s68
    %p80 = scmp.eq.s32.totalorder %s16, 1
    %p81 = por %p79, %p80
    %p83 = scmp.ne.s32.totalorder %s68, %s82
    %p84 = scmp.eq.s32.totalorder %s16, 0
    %p85 = por %p83, %p84
    %s87 = sadd.s32 %s86, 1
    %p90 = scmp.eq.s32.totalorder %s10, 1
    %p91 = scmp.ne.s32.totalorder %s86, %s88
    %p92 = scmp.eq.s32.totalorder %s10, 0
    %p93 = por %p91, %p92
    %p94 = scmp.ne.s32.totalorder %s86, %s88
    %p95 = scmp.eq.s32.totalorder %s15, 1
    %p96 = por %p94, %p95
    %p97 = scmp.ne.s32.totalorder %s88, %s89
    %p98 = scmp.eq.s32.totalorder %s15, 0
    %p99 = por %p97, %p98
    %p100 = scmp.ne.s32.totalorder %s88, %s89
    %p101 = scmp.eq.s32.totalorder %s16, 1
    %p102 = por %p100, %p101
    %p104 = scmp.ne.s32.totalorder %s89, %s103
    %p105 = scmp.eq.s32.totalorder %s16, 0
    %p106 = por %p104, %p105
    %s107 = ssub.s32 %s10, %s17
    %p108 = scmp.eq.s32.totalorder %s107, 0
    %s110 = sadd.s32 %s109, 1
    %s111 = scalar_select %p108, %s109, %s110
    %p114 = pneg %p108
    %p115 = scmp.eq.s32.totalorder %s10, 1
    %p116 = por %p114, %p115
    %p117 = scmp.ne.s32.totalorder %s109, %s112
    %p118 = scmp.eq.s32.totalorder %s10, 0
    %p119 = por %p117, %p118
    %p120 = scmp.ne.s32.totalorder %s109, %s112
    %p121 = scmp.eq.s32.totalorder %s15, 1
    %p122 = por %p120, %p121
    %p123 = scmp.ne.s32.totalorder %s112, %s113
    %p124 = scmp.eq.s32.totalorder %s15, 0
    %p125 = por %p123, %p124
    %p126 = scmp.ne.s32.totalorder %s112, %s113
    %p127 = scmp.eq.s32.totalorder %s16, 1
    %p128 = por %p126, %p127
    %p130 = scmp.ne.s32.totalorder %s113, %s129
    %p131 = scmp.eq.s32.totalorder %s16, 0
    %p132 = por %p130, %p131
    %p133 = scmp.le.s32.totalorder 1, %s10
    %p134 = scmp.lt.s32.totalorder %s10, 3
    %p135 = pnand %p133, %p134
    %p136 = pneg %p135
    // Predicated region
    $region9: #{gssoft_forward.18} parent=5 // pred_check
      _
    $region10: #{gssoft_forward.18} parent=5 // pred_check_branch
      %138 = sbr.rel (%p135) target = $region12
    $region11: #{gssoft_forward.18} parent=5 // pred_region
      %s139 = ssub.s32 %s10, 1
      // Predicated region
      $region13: #{gssoft_forward.18} parent=11 // pred_check
        %p140 = pneg %p57
      $region14: #{gssoft_forward.18} parent=11 // pred_check_branch
        %142 = sbr.rel (%p140) target = $region16
      $region15: #{gssoft_forward.18} parent=11 // pred_region
        _
      $region16: #{gssoft_forward.18} parent=11 // pred_fallthru
        _
      // Predicated region
      $region17: #{gssoft_forward.18} parent=11 // pred_check
        %p143 = pneg %p78
      $region18: #{gssoft_forward.18} parent=11 // pred_check_branch
        %145 = sbr.rel (%p143) target = $region20
      $region19: #{gssoft_forward.18} parent=11 // pred_region
        _
      $region20: #{gssoft_forward.18} parent=11 // pred_fallthru
        _
      // Predicated region
      $region21: #{gssoft_forward.18} parent=11 // pred_check
        %p146 = pneg %p99
      $region22: #{gssoft_forward.18} parent=11 // pred_check_branch
        %148 = sbr.rel (%p146) target = $region24
      $region23: #{gssoft_forward.18} parent=11 // pred_region
        _
      $region24: #{gssoft_forward.18} parent=11 // pred_fallthru
        _
    $region12: #{gssoft_forward.18} parent=5 // pred_fallthru
      _
    %p149 = scmp.lt.s32.totalorder %s10, 2
    // Predicated region
    $region25: #{gssoft_forward.18} parent=5 // pred_check
      %p150 = pneg %p149
    $region26: #{gssoft_forward.18} parent=5 // pred_check_branch
      %152 = sbr.rel (%p150) target = $region28
    $region27: #{gssoft_forward.18} parent=5 // pred_region
      // Predicated region
      $region29: #{gssoft_forward.18} parent=27 // pred_check
        %p153 = pneg %p30
      $region30: #{gssoft_forward.18} parent=27 // pred_check_branch
        %155 = sbr.rel (%p153) target = $region32
      $region31: #{gssoft_forward.18} parent=27 // pred_region
        %s156 = smul.u32 8, %s10
        %p157 = scmp.lt.s32.totalorder %s156, 15
        %s158 = scalar_select %p157, %s156, 15
        %s159 = smul.addr %s158, 4
        %s160 = scalar_lea.vmem %s0, %s159
        %s161 = smul.u32 8, %s10
      $region32: #{gssoft_forward.18} parent=27 // pred_fallthru
        _
    $region28: #{gssoft_forward.18} parent=5 // pred_fallthru
      _
    %p162 = scmp.le.s32.totalorder 1, %s10
    %p163 = scmp.lt.s32.totalorder %s10, 3
    %p164 = pnand %p162, %p163
    %p165 = pneg %p164
    // Predicated region
    $region33: #{gssoft_forward.18} parent=5 // pred_check
      _
    $region34: #{gssoft_forward.18} parent=5 // pred_check_branch
      %167 = sbr.rel (%p164) target = $region36
    $region35: #{gssoft_forward.18} parent=5 // pred_region
      %s168 = ssub.s32 %s10, 1
      %s169 = smul.u32 8, %s15
      %p170 = scmp.lt.s32.totalorder %s169, 15
      %s171 = scalar_select %p170, %s169, 15
      %s172 = smul.addr %s171, 4
      %s173 = scalar_lea.vmem %s0, %s172
      %p174 = pneg %p36
      %p175 = pneg %p33
      %p176 = pneg %p57
      %p177 = pneg %p54
      %p178 = pneg %p78
      %p179 = pneg %p75
      %p180 = pneg %p99
      %p181 = pneg %p96
      %p182 = pneg %p125
      %p183 = pneg %p122
      %s184 = smul.u32 8, %s15
      %p185 = scmp.lt.s32.totalorder %s184, 15
      %s186 = scalar_select %p185, %s184, 15
      %s187 = smul.addr %s186, 4
      %s188 = scalar_lea.vmem %s4, %s187
      %s189 = smul.u32 8, %s15
      %p190 = scmp.lt.s32.totalorder %s189, 15
      %s191 = scalar_select %p190, %s189, 15
      %s192 = smul.addr %s191, 4
      %s193 = scalar_lea.vmem %s0, %s192
      %s194 = smul.u32 8, %s15
      %s195 = smul.u32 8, %s15
      %p196 = scmp.lt.s32.totalorder %s195, 15
      %s197 = scalar_select %p196, %s195, 15
      %s198 = smul.addr %s197, 4
      %s199 = scalar_lea.vmem %s4, %s198
      %s200 = smul.u32 8, %s15
      %v202 = vld [vmem:[%s193] sm:$0xf]
      %v203 = vld [vmem:[%s193 + $0x4] sm:$0xf]
      %v204 = vld [vmem:[%s193 + $0x8] sm:$0xf]
      %v205 = vld [vmem:[%s193 + $0xc] sm:$0xf]
      %v206 = vld [vmem:[%s193 + $0x10] sm:$0xf]
      %v207 = vld [vmem:[%s193 + $0x14] sm:$0xf]
      %v208 = vld [vmem:[%s193 + $0x18] sm:$0xf]
      %v209 = vld [vmem:[%s193 + $0x1c] sm:$0xf]
      %v210 = vld [vmem:[%s1] sm:$0xf]
      %v211 = vld [vmem:[%s1 + $0x4] sm:$0xf]
      %v212 = vld [vmem:[%s1 + $0x8] sm:$0xf]
      %v213 = vld [vmem:[%s1 + $0xc] sm:$0x3]
      %v222 = vunpack.c.l.b16 %v202
      %v223 = vunpack.c.l.b16 %v203
      %v224 = vunpack.c.l.b16 %v204
      %v225 = vunpack.c.l.b16 %v205
      %v226 = vunpack.c.l.b16 %v206
      %v227 = vunpack.c.l.b16 %v207
      %v228 = vunpack.c.l.b16 %v208
      %v229 = vunpack.c.l.b16 %v209
      %v230 = vpack.c.b16 %v223, %v222
      %v231 = vpack.c.b16 %v225, %v224
      %v232 = vpack.c.b16 %v227, %v226
      %v233 = vpack.c.b16 %v229, %v228
      %v238 = vunpack.c.l.b16 %v210
      %v239 = vunpack.c.l.b16 %v211
      %v240 = vunpack.c.l.b16 %v212
      %v241 = vunpack.c.l.b16 %v213
      %v242 = vpack.c.b16 %v239, %v238
      %v243 = vpack.c.b16 %v241, %v240
      %vm245 = vcmask 220160
      %v247 = vsel %vm245, %v230, 0
      %v250 = vsel %vm245, %v231, 0
      %v253 = vsel %vm245, %v232, 0
      %v256 = vsel %vm245, %v233, 0
      %vm258 = vcmask 1044480
      %vm259 = vcmask 1045504
      %v260 = vsel %vm258, 4294967295, 65535
      %v261 = vsel %vm259, %v260, 0
      %v263 = vand.u32 %v243, %v261
      %265 = vmatprep.subr.bf16.mxu0 0
      %266 = vmatpush1.bf16.msra.mxu0 %v242
      %267 = vmatprep.subr.bf16.mxu0 0
      %268 = vmatpush1.bf16.msra.mxu0 %v263
      %269 = vmatprep.subr.bf16.mxu0 0
      %270 = vmatpush1.bf16.msra.mxu0 0
      %271 = vmatprep.subr.bf16.mxu0 0
      %272 = vmatpush1.bf16.msra.mxu0 0
      %273 = vmatprep.subr.bf16.mxu0 0
      %274 = vmatpush1.bf16.msra.mxu0 0
      %275 = vmatprep.subr.bf16.mxu0 0
      %276 = vmatpush1.bf16.msra.mxu0 0
      %277 = vmatprep.subr.bf16.mxu0 0
      %278 = vmatpush1.bf16.msra.mxu0 0
      %279 = vmatprep.subr.bf16.mxu0 0
      %280 = vmatpush1.bf16.msra.mxu0 0
      %281 = vmatprep.subr.bf16.mxu0 0
      %282 = vmatpush1.bf16.msra.mxu0 0
      %283 = vmatprep.subr.bf16.mxu0 0
      %284 = vmatpush1.bf16.msra.mxu0 0
      %285 = vmatprep.subr.bf16.mxu0 0
      %286 = vmatpush1.bf16.msra.mxu0 0
      %287 = vmatprep.subr.bf16.mxu0 0
      %288 = vmatpush1.bf16.msra.mxu0 0
      %289 = vmatprep.subr.bf16.mxu0 0
      %290 = vmatpush1.bf16.msra.mxu0 0
      %291 = vmatprep.subr.bf16.mxu0 0
      %292 = vmatpush1.bf16.msra.mxu0 0
      %293 = vmatprep.subr.bf16.mxu0 0
      %294 = vmatpush1.bf16.msra.mxu0 0
      %295 = vmatprep.subr.bf16.mxu0 0
      %296 = vmatpush1.bf16.msra.mxu0 0
      %297 = vmatprep.mubr.bf16.mxu0 0
      %298 = vmatmul.mubr.bf16.gmra.mrb[0].mxu0 %v247
      %v299 = vpop.f32.mrb[0].mxu0
      %v300 = vadd.f32 0.0, %v299
      %v301 = vpop.f32.mrb[0].mxu0
      %v302 = vpop.f32.mrb[0].mxu0
      %v303 = vadd.f32 0.0, %v302
      %v304 = vpop.f32.mrb[0].mxu0
      %305 = vmatprep.mubr.bf16.mxu0 0
      %306 = vmatmul.mubr.bf16.gmra.mrb[0].mxu0 %v250
      %v307 = vpop.f32.mrb[0].mxu0
      %v308 = vadd.f32 0.0, %v307
      %v309 = vpop.f32.mrb[0].mxu0
      %v310 = vpop.f32.mrb[0].mxu0
      %v311 = vadd.f32 0.0, %v310
      %v312 = vpop.f32.mrb[0].mxu0
      %313 = vmatprep.mubr.bf16.mxu0 0
      %314 = vmatmul.mubr.bf16.gmra.mrb[0].mxu0 %v253
      %v315 = vpop.f32.mrb[0].mxu0
      %v316 = vadd.f32 0.0, %v315
      %v317 = vpop.f32.mrb[0].mxu0
      %v318 = vpop.f32.mrb[0].mxu0
      %v319 = vadd.f32 0.0, %v318
      %v320 = vpop.f32.mrb[0].mxu0
      %321 = vmatprep.mubr.bf16.mxu0 0
      %322 = vmatmul.mubr.bf16.gmra.mrb[0].mxu0 %v256
      %v323 = vpop.f32.mrb[0].mxu0
      %v324 = vadd.f32 0.0, %v323
      %v325 = vpop.f32.mrb[0].mxu0
      %v326 = vpop.f32.mrb[0].mxu0
      %v327 = vadd.f32 0.0, %v326
      %v328 = vpop.f32.mrb[0].mxu0
      %329 = vdwg.mxu0
      %v330 = vld [vmem:[%s2] sm:$0x1]
      %v332 = vlaneseq
      %v333 = vshrl.u32 %v332, 7
      %v334 = vsub.s32 0, %v333
      %v335 = vrot.slane %v330, %v334
      %v337 = vmul.f32 %v300, %v335
      %v338 = vmul.f32 %v303, %v335
      %v339 = vmul.f32 %v308, %v335
      %v340 = vmul.f32 %v311, %v335
      %v341 = vmul.f32 %v316, %v335
      %v342 = vmul.f32 %v319, %v335
      %v343 = vmul.f32 %v324, %v335
      %v344 = vmul.f32 %v327, %v335
      %v345 = vld [vmem:[%s3] sm:$0x1]
      %v347 = vlaneseq
      %v348 = vshrl.u32 %v347, 7
      %v349 = vsub.s32 0, %v348
      %v350 = vrot.slane %v345, %v349
      %v352 = vadd.f32 %v337, %v350
      %v353 = vadd.f32 %v338, %v350
      %v354 = vadd.f32 %v339, %v350
      %v355 = vadd.f32 %v340, %v350
      %v356 = vadd.f32 %v341, %v350
      %v357 = vadd.f32 %v342, %v350
      %v358 = vadd.f32 %v343, %v350
      %v359 = vadd.f32 %v344, %v350
      %v360 = vmax.f32 %v352, 0.0
      %v361 = vmax.f32 %v353, 0.0
      %v362 = vmax.f32 %v354, 0.0
      %v363 = vmax.f32 %v355, 0.0
      %v364 = vmax.f32 %v356, 0.0
      %v365 = vmax.f32 %v357, 0.0
      %v366 = vmax.f32 %v358, 0.0
      %v367 = vmax.f32 %v359, 0.0
      %v368 = vpack.c.bf16 %v361, %v360
      %v369 = vpack.c.bf16 %v363, %v362
      %v370 = vpack.c.bf16 %v365, %v364
      %v371 = vpack.c.bf16 %v367, %v366
      %v376 = vunpack.c.l.b16 %v368
      %v377 = vunpack.c.h.b16 %v368
      %v378 = vunpack.c.l.b16 %v369
      %v379 = vunpack.c.h.b16 %v369
      %v380 = vunpack.c.l.b16 %v370
      %v381 = vunpack.c.h.b16 %v370
      %v382 = vunpack.c.l.b16 %v371
      %v383 = vunpack.c.h.b16 %v371
      %v384 = vpack.c.b16 %v376, %v376
      %v385 = vpack.c.b16 %v377, %v377
      %v386 = vpack.c.b16 %v378, %v378
      %v387 = vpack.c.b16 %v379, %v379
      %v388 = vpack.c.b16 %v380, %v380
      %v389 = vpack.c.b16 %v381, %v381
      %v390 = vpack.c.b16 %v382, %v382
      %v391 = vpack.c.b16 %v383, %v383
      %vm400 = vcmask 93184
      %401 = vst.msk [vmem:[%s199] sm:$0xf] %vm400, %v384
      %402 = vst.msk [vmem:[%s199 + $0x4] sm:$0xf] %vm400, %v385
      %403 = vst.msk [vmem:[%s199 + $0x8] sm:$0xf] %vm400, %v386
      %404 = vst.msk [vmem:[%s199 + $0xc] sm:$0xf] %vm400, %v387
      %405 = vst.msk [vmem:[%s199 + $0x10] sm:$0xf] %vm400, %v388
      %406 = vst.msk [vmem:[%s199 + $0x14] sm:$0xf] %vm400, %v389
      %407 = vst.msk [vmem:[%s199 + $0x18] sm:$0xf] %vm400, %v390
      %408 = vst.msk [vmem:[%s199 + $0x1c] sm:$0xf] %vm400, %v391
      %s409 = smul.u32 8, %s15
      %p410 = scmp.lt.s32.totalorder %s409, 15
      %s411 = scalar_select %p410, %s409, 15
      %s412 = smul.addr %s411, 4
      %s413 = scalar_lea.vmem %s4, %s412
      // Predicated region
      $region37: #{gssoft_forward.18} parent=35 // pred_check
        %p414 = pneg %p122
      $region38: #{gssoft_forward.18} parent=35 // pred_check_branch
        %416 = sbr.rel (%p414) target = $region40
      $region39: #{gssoft_forward.18} parent=35 // pred_region
        %s417 = smul.u32 8, %s15
      $region40: #{gssoft_forward.18} parent=35 // pred_fallthru
        _
    $region36: #{gssoft_forward.18} parent=5 // pred_fallthru
      _
    %p418 = scmp.le.s32.totalorder 2, %s10
    // Predicated region
    $region41: #{gssoft_forward.18} parent=5 // pred_check
      %p419 = pneg %p418
    $region42: #{gssoft_forward.18} parent=5 // pred_check_branch
      %421 = sbr.rel (%p419) target = $region44
    $region43: #{gssoft_forward.18} parent=5 // pred_region
      %s422 = ssub.s32 %s10, 2
      // Predicated region
      $region45: #{gssoft_forward.18} parent=43 // pred_check
        %p423 = pneg %p128
      $region46: #{gssoft_forward.18} parent=43 // pred_check_branch
        %425 = sbr.rel (%p423) target = $region48
      $region47: #{gssoft_forward.18} parent=43 // pred_region
        %s426 = smul.u32 8, %s16
        %p427 = scmp.lt.s32.totalorder %s426, 15
        %s428 = scalar_select %p427, %s426, 15
        %s429 = smul.addr %s428, 4
        %s430 = scalar_lea.vmem %s4, %s429
      $region48: #{gssoft_forward.18} parent=43 // pred_fallthru
        _
    $region44: #{gssoft_forward.18} parent=5 // pred_fallthru
      _
  $region6: #{gssoft_forward.18} parent=0 // loop_footer
    %s14 = sadd.s32 1, %s10
  $region7: #{gssoft_forward.18} parent=0 // loop_footer_branch
    %9 = sbr.rel target = $region3
  $region8: #{gssoft_forward.18} parent=0 // loop_exit
    _

// kernel: gssoft_forward.19
$region0: #{gssoft_forward.19}
  #allocation0 [shape = 'u32[]', space=smem, size = 0x4, offset = 0x4, fixed_abs, tag = 'smem constant byte address 0x4 - core index']
  #allocation1 [shape = 'u32[144,128]{1,0:T(1,128)}', space=vmem, size = 0x12000, scoped, tag = 'internal scratch']
  %s0 = inlined_call_operand.vmem [shape: bf16[512,3], index: 0, kind: input, shape index: {}]
  %s1 = inlined_call_operand.vmem [shape: bf16[3,3], index: 1, kind: input, shape index: {}]
  %s2 = inlined_call_operand.vmem [shape: f32[1,3], index: 2, kind: input, shape index: {}]
  %s3 = inlined_call_operand.vmem [shape: f32[1,3], index: 3, kind: input, shape index: {}]
  %s4 = inlined_call_operand.vmem [shape: f32[512,3], index: 4, kind: output, shape index: {}]
  %s5 = sld [smem:[#allocation0]]
  $region49: #{gssoft_forward.19} parent=0
    _
  %s7 = ssub.s32 1, %s5
  %s8 = scalar_select 0, %s7, %s5
  loop: start=0, step=1, limit=4
  $region2: #{gssoft_forward.19} parent=0 // loop_pre_header
    _
  $region3: #{gssoft_forward.19} parent=0 // loop_header
    %s10 = sphi 0, %s14
    %p11 = scmp.ge.s32.totalorder %s10, 4
    %s20 = sphi 0, %s22
    %s23 = sphi 0, %s20
    %s24 = sphi 0, %s23
    %s40 = sphi 0, %s24
    %s44 = sphi 0, %s44
    %s46 = sphi 0, %s44
    %s47 = sphi 0, %s46
    %s61 = sphi 0, %s47
    %s65 = sphi 0, %s65
    %s67 = sphi 0, %s65
    %s68 = sphi 0, %s67
    %s82 = sphi 0, %s68
    %s86 = sphi 0, %s86
    %s88 = sphi 0, %s86
    %s89 = sphi 0, %s88
    %s103 = sphi 0, %s89
    %s109 = sphi 0, %s111
    %s112 = sphi 0, %s109
    %s113 = sphi 0, %s112
    %s129 = sphi 0, %s113
  $region4: #{gssoft_forward.19} parent=0 // loop_header_branch
    %13 = sbr.rel (%p11) target = $region8
  $region5: #{gssoft_forward.19} parent=0 // loop_body
    %s15 = ssub.s32 %s10, 1
    %s16 = ssub.s32 %s10, 2
    %s17 = sadd.s32 %s10, 1
    %s18 = ssub.s32 %s10, %s17
    %p19 = scmp.eq.s32.totalorder %s18, 0
    %s21 = sadd.s32 %s20, 1
    %s22 = scalar_select %p19, %s20, %s21
    %p25 = pneg %p19
    %p26 = scmp.eq.s32.totalorder %s10, 1
    %p27 = por %p25, %p26
    %p28 = scmp.ne.s32.totalorder %s20, %s23
    %p29 = scmp.eq.s32.totalorder %s10, 0
    %p30 = por %p28, %p29
    %p31 = scmp.ne.s32.totalorder %s20, %s23
    %p32 = scmp.eq.s32.totalorder %s15, 1
    %p33 = por %p31, %p32
    %p34 = scmp.ne.s32.totalorder %s23, %s24
    %p35 = scmp.eq.s32.totalorder %s15, 0
    %p36 = por %p34, %p35
    %p37 = scmp.ne.s32.totalorder %s23, %s24
    %p38 = scmp.eq.s32.totalorder %s16, 1
    %p39 = por %p37, %p38
    %p41 = scmp.ne.s32.totalorder %s24, %s40
    %p42 = scmp.eq.s32.totalorder %s16, 0
    %p43 = por %p41, %p42
    %s45 = sadd.s32 %s44, 1
    %p48 = scmp.eq.s32.totalorder %s10, 1
    %p49 = scmp.ne.s32.totalorder %s44, %s46
    %p50 = scmp.eq.s32.totalorder %s10, 0
    %p51 = por %p49, %p50
    %p52 = scmp.ne.s32.totalorder %s44, %s46
    %p53 = scmp.eq.s32.totalorder %s15, 1
    %p54 = por %p52, %p53
    %p55 = scmp.ne.s32.totalorder %s46, %s47
    %p56 = scmp.eq.s32.totalorder %s15, 0
    %p57 = por %p55, %p56
    %p58 = scmp.ne.s32.totalorder %s46, %s47
    %p59 = scmp.eq.s32.totalorder %s16, 1
    %p60 = por %p58, %p59
    %p62 = scmp.ne.s32.totalorder %s47, %s61
    %p63 = scmp.eq.s32.totalorder %s16, 0
    %p64 = por %p62, %p63
    %s66 = sadd.s32 %s65, 1
    %p69 = scmp.eq.s32.totalorder %s10, 1
    %p70 = scmp.ne.s32.totalorder %s65, %s67
    %p71 = scmp.eq.s32.totalorder %s10, 0
    %p72 = por %p70, %p71
    %p73 = scmp.ne.s32.totalorder %s65, %s67
    %p74 = scmp.eq.s32.totalorder %s15, 1
    %p75 = por %p73, %p74
    %p76 = scmp.ne.s32.totalorder %s67, %s68
    %p77 = scmp.eq.s32.totalorder %s15, 0
    %p78 = por %p76, %p77
    %p79 = scmp.ne.s32.totalorder %s67, %s68
    %p80 = scmp.eq.s32.totalorder %s16, 1
    %p81 = por %p79, %p80
    %p83 = scmp.ne.s32.totalorder %s68, %s82
    %p84 = scmp.eq.s32.totalorder %s16, 0
    %p85 = por %p83, %p84
    %s87 = sadd.s32 %s86, 1
    %p90 = scmp.eq.s32.totalorder %s10, 1
    %p91 = scmp.ne.s32.totalorder %s86, %s88
    %p92 = scmp.eq.s32.totalorder %s10, 0
    %p93 = por %p91, %p92
    %p94 = scmp.ne.s32.totalorder %s86, %s88
    %p95 = scmp.eq.s32.totalorder %s15, 1
    %p96 = por %p94, %p95
    %p97 = scmp.ne.s32.totalorder %s88, %s89
    %p98 = scmp.eq.s32.totalorder %s15, 0
    %p99 = por %p97, %p98
    %p100 = scmp.ne.s32.totalorder %s88, %s89
    %p101 = scmp.eq.s32.totalorder %s16, 1
    %p102 = por %p100, %p101
    %p104 = scmp.ne.s32.totalorder %s89, %s103
    %p105 = scmp.eq.s32.totalorder %s16, 0
    %p106 = por %p104, %p105
    %s107 = ssub.s32 %s10, %s17
    %p108 = scmp.eq.s32.totalorder %s107, 0
    %s110 = sadd.s32 %s109, 1
    %s111 = scalar_select %p108, %s109, %s110
    %p114 = pneg %p108
    %p115 = scmp.eq.s32.totalorder %s10, 1
    %p116 = por %p114, %p115
    %p117 = scmp.ne.s32.totalorder %s109, %s112
    %p118 = scmp.eq.s32.totalorder %s10, 0
    %p119 = por %p117, %p118
    %p120 = scmp.ne.s32.totalorder %s109, %s112
    %p121 = scmp.eq.s32.totalorder %s15, 1
    %p122 = por %p120, %p121
    %p123 = scmp.ne.s32.totalorder %s112, %s113
    %p124 = scmp.eq.s32.totalorder %s15, 0
    %p125 = por %p123, %p124
    %p126 = scmp.ne.s32.totalorder %s112, %s113
    %p127 = scmp.eq.s32.totalorder %s16, 1
    %p128 = por %p126, %p127
    %p130 = scmp.ne.s32.totalorder %s113, %s129
    %p131 = scmp.eq.s32.totalorder %s16, 0
    %p132 = por %p130, %p131
    %p133 = scmp.le.s32.totalorder 1, %s10
    %p134 = scmp.lt.s32.totalorder %s10, 3
    %p135 = pnand %p133, %p134
    %p136 = pneg %p135
    // Predicated region
    $region9: #{gssoft_forward.19} parent=5 // pred_check
      _
    $region10: #{gssoft_forward.19} parent=5 // pred_check_branch
      %138 = sbr.rel (%p135) target = $region12
    $region11: #{gssoft_forward.19} parent=5 // pred_region
      %s139 = ssub.s32 %s10, 1
      // Predicated region
      $region13: #{gssoft_forward.19} parent=11 // pred_check
        %p140 = pneg %p57
      $region14: #{gssoft_forward.19} parent=11 // pred_check_branch
        %142 = sbr.rel (%p140) target = $region16
      $region15: #{gssoft_forward.19} parent=11 // pred_region
        _
      $region16: #{gssoft_forward.19} parent=11 // pred_fallthru
        _
      // Predicated region
      $region17: #{gssoft_forward.19} parent=11 // pred_check
        %p143 = pneg %p78
      $region18: #{gssoft_forward.19} parent=11 // pred_check_branch
        %145 = sbr.rel (%p143) target = $region20
      $region19: #{gssoft_forward.19} parent=11 // pred_region
        _
      $region20: #{gssoft_forward.19} parent=11 // pred_fallthru
        _
      // Predicated region
      $region21: #{gssoft_forward.19} parent=11 // pred_check
        %p146 = pneg %p99
      $region22: #{gssoft_forward.19} parent=11 // pred_check_branch
        %148 = sbr.rel (%p146) target = $region24
      $region23: #{gssoft_forward.19} parent=11 // pred_region
        _
      $region24: #{gssoft_forward.19} parent=11 // pred_fallthru
        _
    $region12: #{gssoft_forward.19} parent=5 // pred_fallthru
      _
    %p149 = scmp.lt.s32.totalorder %s10, 2
    // Predicated region
    $region25: #{gssoft_forward.19} parent=5 // pred_check
      %p150 = pneg %p149
    $region26: #{gssoft_forward.19} parent=5 // pred_check_branch
      %152 = sbr.rel (%p150) target = $region28
    $region27: #{gssoft_forward.19} parent=5 // pred_region
      // Predicated region
      $region29: #{gssoft_forward.19} parent=27 // pred_check
        %p153 = pneg %p30
      $region30: #{gssoft_forward.19} parent=27 // pred_check_branch
        %155 = sbr.rel (%p153) target = $region32
      $region31: #{gssoft_forward.19} parent=27 // pred_region
        %s156 = smul.u32 32, %s10
        %p157 = scmp.lt.s32.totalorder %s156, 63
        %s158 = scalar_select %p157, %s156, 63
        %s159 = smul.addr %s158, 4
        %s160 = scalar_lea.vmem %s0, %s159
        %s161 = smul.u32 32, %s10
      $region32: #{gssoft_forward.19} parent=27 // pred_fallthru
        _
    $region28: #{gssoft_forward.19} parent=5 // pred_fallthru
      _
    %p162 = scmp.le.s32.totalorder 1, %s10
    %p163 = scmp.lt.s32.totalorder %s10, 3
    %p164 = pnand %p162, %p163
    %p165 = pneg %p164
    // Predicated region
    $region33: #{gssoft_forward.19} parent=5 // pred_check
      _
    $region34: #{gssoft_forward.19} parent=5 // pred_check_branch
      %167 = sbr.rel (%p164) target = $region36
    $region35: #{gssoft_forward.19} parent=5 // pred_region
      %s168 = ssub.s32 %s10, 1
      %s169 = smul.u32 32, %s15
      %p170 = scmp.lt.s32.totalorder %s169, 63
      %s171 = scalar_select %p170, %s169, 63
      %s172 = smul.addr %s171, 4
      %s173 = scalar_lea.vmem %s0, %s172
      %p174 = pneg %p36
      %p175 = pneg %p33
      %p176 = pneg %p57
      %p177 = pneg %p54
      %p178 = pneg %p78
      %p179 = pneg %p75
      %p180 = pneg %p99
      %p181 = pneg %p96
      %p182 = pneg %p125
      %p183 = pneg %p122
      %s184 = smul.u32 32, %s15
      %p185 = scmp.lt.s32.totalorder %s184, 63
      %s186 = scalar_select %p185, %s184, 63
      %s187 = smul.addr %s186, 8
      %s188 = scalar_lea.vmem %s4, %s187
      %s189 = smul.u32 32, %s15
      %p190 = scmp.lt.s32.totalorder %s189, 63
      %s191 = scalar_select %p190, %s189, 63
      %s192 = smul.addr %s191, 4
      %s193 = scalar_lea.vmem %s0, %s192
      %s194 = smul.u32 32, %s15
      %s195 = smul.u32 32, %s15
      %p196 = scmp.lt.s32.totalorder %s195, 63
      %s197 = scalar_select %p196, %s195, 63
      %s198 = smul.addr %s197, 8
      %s199 = scalar_lea.vmem %s4, %s198
      %s200 = smul.u32 32, %s15
      %v202 = vld [vmem:[%s193] sm:$0xf]
      %v203 = vld [vmem:[%s193 + $0x4] sm:$0xf]
      %v204 = vld [vmem:[%s193 + $0x8] sm:$0xf]
      %v205 = vld [vmem:[%s193 + $0xc] sm:$0xf]
      %v206 = vld [vmem:[%s193 + $0x10] sm:$0xf]
      %v207 = vld [vmem:[%s193 + $0x14] sm:$0xf]
      %v208 = vld [vmem:[%s193 + $0x18] sm:$0xf]
      %v209 = vld [vmem:[%s193 + $0x1c] sm:$0xf]
      %v210 = vld [vmem:[%s193 + $0x20] sm:$0xf]
      %v211 = vld [vmem:[%s193 + $0x24] sm:$0xf]
      %v212 = vld [vmem:[%s193 + $0x28] sm:$0xf]
      %v213 = vld [vmem:[%s193 + $0x2c] sm:$0xf]
      %v214 = vld [vmem:[%s193 + $0x30] sm:$0xf]
      %v215 = vld [vmem:[%s193 + $0x34] sm:$0xf]
      %v216 = vld [vmem:[%s193 + $0x38] sm:$0xf]
      %v217 = vld [vmem:[%s193 + $0x3c] sm:$0xf]
      %v218 = vld [vmem:[%s193 + $0x40] sm:$0xf]
      %v219 = vld [vmem:[%s193 + $0x44] sm:$0xf]
      %v220 = vld [vmem:[%s193 + $0x48] sm:$0xf]
      %v221 = vld [vmem:[%s193 + $0x4c] sm:$0xf]
      %v222 = vld [vmem:[%s193 + $0x50] sm:$0xf]
      %v223 = vld [vmem:[%s193 + $0x54] sm:$0xf]
      %v224 = vld [vmem:[%s193 + $0x58] sm:$0xf]
      %v225 = vld [vmem:[%s193 + $0x5c] sm:$0xf]
      %v226 = vld [vmem:[%s193 + $0x60] sm:$0xf]
      %v227 = vld [vmem:[%s193 + $0x64] sm:$0xf]
      %v228 = vld [vmem:[%s193 + $0x68] sm:$0xf]
      %v229 = vld [vmem:[%s193 + $0x6c] sm:$0xf]
      %v230 = vld [vmem:[%s193 + $0x70] sm:$0xf]
      %v231 = vld [vmem:[%s193 + $0x74] sm:$0xf]
      %v232 = vld [vmem:[%s193 + $0x78] sm:$0xf]
      %v233 = vld [vmem:[%s193 + $0x7c] sm:$0xf]
      %v234 = vld [vmem:[%s1] sm:$0x3]
      %v267 = vunpack.c.l.b16 %v202
      %v268 = vunpack.c.l.b16 %v203
      %v269 = vunpack.c.l.b16 %v204
      %v270 = vunpack.c.l.b16 %v205
      %v271 = vunpack.c.l.b16 %v206
      %v272 = vunpack.c.l.b16 %v207
      %v273 = vunpack.c.l.b16 %v208
      %v274 = vunpack.c.l.b16 %v209
      %v275 = vunpack.c.l.b16 %v210
      %v276 = vunpack.c.l.b16 %v211
      %v277 = vunpack.c.l.b16 %v212
      %v278 = vunpack.c.l.b16 %v213
      %v279 = vunpack.c.l.b16 %v214
      %v280 = vunpack.c.l.b16 %v215
      %v281 = vunpack.c.l.b16 %v216
      %v282 = vunpack.c.l.b16 %v217
      %v283 = vunpack.c.l.b16 %v218
      %v284 = vunpack.c.l.b16 %v219
      %v285 = vunpack.c.l.b16 %v220
      %v286 = vunpack.c.l.b16 %v221
      %v287 = vunpack.c.l.b16 %v222
      %v288 = vunpack.c.l.b16 %v223
      %v289 = vunpack.c.l.b16 %v224
      %v290 = vunpack.c.l.b16 %v225
      %v291 = vunpack.c.l.b16 %v226
      %v292 = vunpack.c.l.b16 %v227
      %v293 = vunpack.c.l.b16 %v228
      %v294 = vunpack.c.l.b16 %v229
      %v295 = vunpack.c.l.b16 %v230
      %v296 = vunpack.c.l.b16 %v231
      %v297 = vunpack.c.l.b16 %v232
      %v298 = vunpack.c.l.b16 %v233
      %v299 = vpack.c.b16 %v268, %v267
      %v300 = vpack.c.b16 %v270, %v269
      %v301 = vpack.c.b16 %v272, %v271
      %v302 = vpack.c.b16 %v274, %v273
      %v303 = vpack.c.b16 %v276, %v275
      %v304 = vpack.c.b16 %v278, %v277
      %v305 = vpack.c.b16 %v280, %v279
      %v306 = vpack.c.b16 %v282, %v281
      %v307 = vpack.c.b16 %v284, %v283
      %v308 = vpack.c.b16 %v286, %v285
      %v309 = vpack.c.b16 %v288, %v287
      %v310 = vpack.c.b16 %v290, %v289
      %v311 = vpack.c.b16 %v292, %v291
      %v312 = vpack.c.b16 %v294, %v293
      %v313 = vpack.c.b16 %v296, %v295
      %v314 = vpack.c.b16 %v298, %v297
      %vm315 = vcmask 23552
      %v317 = vsel %vm315, %v299, 0
      %v320 = vsel %vm315, %v300, 0
      %v323 = vsel %vm315, %v301, 0
      %v326 = vsel %vm315, %v302, 0
      %v329 = vsel %vm315, %v303, 0
      %v332 = vsel %vm315, %v304, 0
      %v335 = vsel %vm315, %v305, 0
      %v338 = vsel %vm315, %v306, 0
      %v341 = vsel %vm315, %v307, 0
      %v344 = vsel %vm315, %v308, 0
      %v347 = vsel %vm315, %v309, 0
      %v350 = vsel %vm315, %v310, 0
      %v353 = vsel %vm315, %v311, 0
      %v356 = vsel %vm315, %v312, 0
      %v359 = vsel %vm315, %v313, 0
      %v362 = vsel %vm315, %v314, 0
      %vm364 = vcmask 1040384
      %vm365 = vcmask 1041408
      %v366 = vsel %vm364, 4294967295, 65535
      %v367 = vsel %vm365, %v366, 0
      %v369 = vand.u32 %v234, %v367
      %371 = vmatprep.subr.bf16.mxu0 0
      %372 = vmatpush1.bf16.msra.mxu0 %v369
      %373 = vmatprep.subr.bf16.mxu0 0
      %374 = vmatpush1.bf16.msra.mxu0 0
      %375 = vmatprep.subr.bf16.mxu0 0
      %376 = vmatpush1.bf16.msra.mxu0 0
      %377 = vmatprep.subr.bf16.mxu0 0
      %378 = vmatpush1.bf16.msra.mxu0 0
      %379 = vmatprep.subr.bf16.mxu0 0
      %380 = vmatpush1.bf16.msra.mxu0 0
      %381 = vmatprep.subr.bf16.mxu0 0
      %382 = vmatpush1.bf16.msra.mxu0 0
      %383 = vmatprep.subr.bf16.mxu0 0
      %384 = vmatpush1.bf16.msra.mxu0 0
      %385 = vmatprep.subr.bf16.mxu0 0
      %386 = vmatpush1.bf16.msra.mxu0 0
      %387 = vmatprep.subr.bf16.mxu0 0
      %388 = vmatpush1.bf16.msra.mxu0 0
      %389 = vmatprep.subr.bf16.mxu0 0
      %390 = vmatpush1.bf16.msra.mxu0 0
      %391 = vmatprep.subr.bf16.mxu0 0
      %392 = vmatpush1.bf16.msra.mxu0 0
      %393 = vmatprep.subr.bf16.mxu0 0
      %394 = vmatpush1.bf16.msra.mxu0 0
      %395 = vmatprep.subr.bf16.mxu0 0
      %396 = vmatpush1.bf16.msra.mxu0 0
      %397 = vmatprep.subr.bf16.mxu0 0
      %398 = vmatpush1.bf16.msra.mxu0 0
      %399 = vmatprep.subr.bf16.mxu0 0
      %400 = vmatpush1.bf16.msra.mxu0 0
      %401 = vmatprep.subr.bf16.mxu0 0
      %402 = vmatpush1.bf16.msra.mxu0 0
      %403 = vmatprep.mubr.bf16.mxu0 0
      %404 = vmatmul.mubr.bf16.gmra.mrb[0].mxu0 %v317
      %v405 = vpop.f32.mrb[0].mxu0
      %v406 = vadd.f32 0.0, %v405
      %v407 = vpop.f32.mrb[0].mxu0
      %v408 = vpop.f32.mrb[0].mxu0
      %v409 = vadd.f32 0.0, %v408
      %v410 = vpop.f32.mrb[0].mxu0
      %411 = vmatprep.mubr.bf16.mxu0 0
      %412 = vmatmul.mubr.bf16.gmra.mrb[0].mxu0 %v320
      %v413 = vpop.f32.mrb[0].mxu0
      %v414 = vadd.f32 0.0, %v413
      %v415 = vpop.f32.mrb[0].mxu0
      %v416 = vpop.f32.mrb[0].mxu0
      %v417 = vadd.f32 0.0, %v416
      %v418 = vpop.f32.mrb[0].mxu0
      %419 = vmatprep.mubr.bf16.mxu0 0
      %420 = vmatmul.mubr.bf16.gmra.mrb[0].mxu0 %v323
      %v421 = vpop.f32.mrb[0].mxu0
      %v422 = vadd.f32 0.0, %v421
      %v423 = vpop.f32.mrb[0].mxu0
      %v424 = vpop.f32.mrb[0].mxu0
      %v425 = vadd.f32 0.0, %v424
      %v426 = vpop.f32.mrb[0].mxu0
      %427 = vmatprep.mubr.bf16.mxu0 0
      %428 = vmatmul.mubr.bf16.gmra.mrb[0].mxu0 %v326
      %v429 = vpop.f32.mrb[0].mxu0
      %v430 = vadd.f32 0.0, %v429
      %v431 = vpop.f32.mrb[0].mxu0
      %v432 = vpop.f32.mrb[0].mxu0
      %v433 = vadd.f32 0.0, %v432
      %v434 = vpop.f32.mrb[0].mxu0
      %435 = vmatprep.mubr.bf16.mxu0 0
      %436 = vmatmul.mubr.bf16.gmra.mrb[0].mxu0 %v329
      %v437 = vpop.f32.mrb[0].mxu0
      %v438 = vadd.f32 0.0, %v437
      %v439 = vpop.f32.mrb[0].mxu0
      %v440 = vpop.f32.mrb[0].mxu0
      %v441 = vadd.f32 0.0, %v440
      %v442 = vpop.f32.mrb[0].mxu0
      %443 = vmatprep.mubr.bf16.mxu0 0
      %444 = vmatmul.mubr.bf16.gmra.mrb[0].mxu0 %v332
      %v445 = vpop.f32.mrb[0].mxu0
      %v446 = vadd.f32 0.0, %v445
      %v447 = vpop.f32.mrb[0].mxu0
      %v448 = vpop.f32.mrb[0].mxu0
      %v449 = vadd.f32 0.0, %v448
      %v450 = vpop.f32.mrb[0].mxu0
      %451 = vmatprep.mubr.bf16.mxu0 0
      %452 = vmatmul.mubr.bf16.gmra.mrb[0].mxu0 %v335
      %v453 = vpop.f32.mrb[0].mxu0
      %v454 = vadd.f32 0.0, %v453
      %v455 = vpop.f32.mrb[0].mxu0
      %v456 = vpop.f32.mrb[0].mxu0
      %v457 = vadd.f32 0.0, %v456
      %v458 = vpop.f32.mrb[0].mxu0
      %459 = vmatprep.mubr.bf16.mxu0 0
      %460 = vmatmul.mubr.bf16.gmra.mrb[0].mxu0 %v338
      %v461 = vpop.f32.mrb[0].mxu0
      %v462 = vadd.f32 0.0, %v461
      %v463 = vpop.f32.mrb[0].mxu0
      %v464 = vpop.f32.mrb[0].mxu0
      %v465 = vadd.f32 0.0, %v464
      %v466 = vpop.f32.mrb[0].mxu0
      %467 = vmatprep.mubr.bf16.mxu0 0
      %468 = vmatmul.mubr.bf16.gmra.mrb[0].mxu0 %v341
      %v469 = vpop.f32.mrb[0].mxu0
      %v470 = vadd.f32 0.0, %v469
      %v471 = vpop.f32.mrb[0].mxu0
      %v472 = vpop.f32.mrb[0].mxu0
      %v473 = vadd.f32 0.0, %v472
      %v474 = vpop.f32.mrb[0].mxu0
      %475 = vmatprep.mubr.bf16.mxu0 0
      %476 = vmatmul.mubr.bf16.gmra.mrb[0].mxu0 %v344
      %v477 = vpop.f32.mrb[0].mxu0
      %v478 = vadd.f32 0.0, %v477
      %v479 = vpop.f32.mrb[0].mxu0
      %v480 = vpop.f32.mrb[0].mxu0
      %v481 = vadd.f32 0.0, %v480
      %v482 = vpop.f32.mrb[0].mxu0
      %483 = vmatprep.mubr.bf16.mxu0 0
      %484 = vmatmul.mubr.bf16.gmra.mrb[0].mxu0 %v347
      %v485 = vpop.f32.mrb[0].mxu0
      %v486 = vadd.f32 0.0, %v485
      %v487 = vpop.f32.mrb[0].mxu0
      %v488 = vpop.f32.mrb[0].mxu0
      %v489 = vadd.f32 0.0, %v488
      %v490 = vpop.f32.mrb[0].mxu0
      %491 = vmatprep.mubr.bf16.mxu0 0
      %492 = vmatmul.mubr.bf16.gmra.mrb[0].mxu0 %v350
      %v493 = vpop.f32.mrb[0].mxu0
      %v494 = vadd.f32 0.0, %v493
      %v495 = vpop.f32.mrb[0].mxu0
      %v496 = vpop.f32.mrb[0].mxu0
      %v497 = vadd.f32 0.0, %v496
      %v498 = vpop.f32.mrb[0].mxu0
      %499 = vmatprep.mubr.bf16.mxu0 0
      %500 = vmatmul.mubr.bf16.gmra.mrb[0].mxu0 %v353
      %v501 = vpop.f32.mrb[0].mxu0
      %v502 = vadd.f32 0.0, %v501
      %v503 = vpop.f32.mrb[0].mxu0
      %v504 = vpop.f32.mrb[0].mxu0
      %v505 = vadd.f32 0.0, %v504
      %v506 = vpop.f32.mrb[0].mxu0
      %507 = vmatprep.mubr.bf16.mxu0 0
      %508 = vmatmul.mubr.bf16.gmra.mrb[0].mxu0 %v356
      %v509 = vpop.f32.mrb[0].mxu0
      %v510 = vadd.f32 0.0, %v509
      %v511 = vpop.f32.mrb[0].mxu0
      %v512 = vpop.f32.mrb[0].mxu0
      %v513 = vadd.f32 0.0, %v512
      %v514 = vpop.f32.mrb[0].mxu0
      %515 = vmatprep.mubr.bf16.mxu0 0
      %516 = vmatmul.mubr.bf16.gmra.mrb[0].mxu0 %v359
      %v517 = vpop.f32.mrb[0].mxu0
      %v518 = vadd.f32 0.0, %v517
      %v519 = vpop.f32.mrb[0].mxu0
      %v520 = vpop.f32.mrb[0].mxu0
      %v521 = vadd.f32 0.0, %v520
      %v522 = vpop.f32.mrb[0].mxu0
      %523 = vmatprep.mubr.bf16.mxu0 0
      %524 = vmatmul.mubr.bf16.gmra.mrb[0].mxu0 %v362
      %v525 = vpop.f32.mrb[0].mxu0
      %v526 = vadd.f32 0.0, %v525
      %v527 = vpop.f32.mrb[0].mxu0
      %v528 = vpop.f32.mrb[0].mxu0
      %v529 = vadd.f32 0.0, %v528
      %v530 = vpop.f32.mrb[0].mxu0
      %531 = vdwg.mxu0
      %v532 = vld [vmem:[%s2] sm:$0x1]
      %v534 = vlaneseq
      %v535 = vshrl.u32 %v534, 7
      %v536 = vsub.s32 0, %v535
      %v537 = vrot.slane %v532, %v536
      %v539 = vmul.f32 %v406, %v537
      %v540 = vmul.f32 %v409, %v537
      %v541 = vmul.f32 %v414, %v537
      %v542 = vmul.f32 %v417, %v537
      %v543 = vmul.f32 %v422, %v537
      %v544 = vmul.f32 %v425, %v537
      %v545 = vmul.f32 %v430, %v537
      %v546 = vmul.f32 %v433, %v537
      %v547 = vmul.f32 %v438, %v537
      %v548 = vmul.f32 %v441, %v537
      %v549 = vmul.f32 %v446, %v537
      %v550 = vmul.f32 %v449, %v537
      %v551 = vmul.f32 %v454, %v537
      %v552 = vmul.f32 %v457, %v537
      %v553 = vmul.f32 %v462, %v537
      %v554 = vmul.f32 %v465, %v537
      %v555 = vmul.f32 %v470, %v537
      %v556 = vmul.f32 %v473, %v537
      %v557 = vmul.f32 %v478, %v537
      %v558 = vmul.f32 %v481, %v537
      %v559 = vmul.f32 %v486, %v537
      %v560 = vmul.f32 %v489, %v537
      %v561 = vmul.f32 %v494, %v537
      %v562 = vmul.f32 %v497, %v537
      %v563 = vmul.f32 %v502, %v537
      %v564 = vmul.f32 %v505, %v537
      %v565 = vmul.f32 %v510, %v537
      %v566 = vmul.f32 %v513, %v537
      %v567 = vmul.f32 %v518, %v537
      %v568 = vmul.f32 %v521, %v537
      %v569 = vmul.f32 %v526, %v537
      %v570 = vmul.f32 %v529, %v537
      %v571 = vld [vmem:[%s3] sm:$0x1]
      %v573 = vlaneseq
      %v574 = vshrl.u32 %v573, 7
      %v575 = vsub.s32 0, %v574
      %v576 = vrot.slane %v571, %v575
      %v578 = vadd.f32 %v539, %v576
      %v579 = vadd.f32 %v540, %v576
      %v580 = vadd.f32 %v541, %v576
      %v581 = vadd.f32 %v542, %v576
      %v582 = vadd.f32 %v543, %v576
      %v583 = vadd.f32 %v544, %v576
      %v584 = vadd.f32 %v545, %v576
      %v585 = vadd.f32 %v546, %v576
      %v586 = vadd.f32 %v547, %v576
      %v587 = vadd.f32 %v548, %v576
      %v588 = vadd.f32 %v549, %v576
      %v589 = vadd.f32 %v550, %v576
      %v590 = vadd.f32 %v551, %v576
      %v591 = vadd.f32 %v552, %v576
      %v592 = vadd.f32 %v553, %v576
      %v593 = vadd.f32 %v554, %v576
      %v594 = vadd.f32 %v555, %v576
      %v595 = vadd.f32 %v556, %v576
      %v596 = vadd.f32 %v557, %v576
      %v597 = vadd.f32 %v558, %v576
      %v598 = vadd.f32 %v559, %v576
      %v599 = vadd.f32 %v560, %v576
      %v600 = vadd.f32 %v561, %v576
      %v601 = vadd.f32 %v562, %v576
      %v602 = vadd.f32 %v563, %v576
      %v603 = vadd.f32 %v564, %v576
      %v604 = vadd.f32 %v565, %v576
      %v605 = vadd.f32 %v566, %v576
      %v606 = vadd.f32 %v567, %v576
      %v607 = vadd.f32 %v568, %v576
      %v608 = vadd.f32 %v569, %v576
      %v609 = vadd.f32 %v570, %v576
      %610 = vst.msk [vmem:[%s199] sm:$0xff] %vm315, %v578
      %611 = vst.msk [vmem:[%s199 + $0x8] sm:$0xff] %vm315, %v579
      %612 = vst.msk [vmem:[%s199 + $0x10] sm:$0xff] %vm315, %v580
      %613 = vst.msk [vmem:[%s199 + $0x18] sm:$0xff] %vm315, %v581
      %614 = vst.msk [vmem:[%s199 + $0x20] sm:$0xff] %vm315, %v582
      %615 = vst.msk [vmem:[%s199 + $0x28] sm:$0xff] %vm315, %v583
      %616 = vst.msk [vmem:[%s199 + $0x30] sm:$0xff] %vm315, %v584
      %617 = vst.msk [vmem:[%s199 + $0x38] sm:$0xff] %vm315, %v585
      %618 = vst.msk [vmem:[%s199 + $0x40] sm:$0xff] %vm315, %v586
      %619 = vst.msk [vmem:[%s199 + $0x48] sm:$0xff] %vm315, %v587
      %620 = vst.msk [vmem:[%s199 + $0x50] sm:$0xff] %vm315, %v588
      %621 = vst.msk [vmem:[%s199 + $0x58] sm:$0xff] %vm315, %v589
      %622 = vst.msk [vmem:[%s199 + $0x60] sm:$0xff] %vm315, %v590
      %623 = vst.msk [vmem:[%s199 + $0x68] sm:$0xff] %vm315, %v591
      %624 = vst.msk [vmem:[%s199 + $0x70] sm:$0xff] %vm315, %v592
      %625 = vst.msk [vmem:[%s199 + $0x78] sm:$0xff] %vm315, %v593
      %626 = vst.msk [vmem:[%s199 + $0x80] sm:$0xff] %vm315, %v594
      %627 = vst.msk [vmem:[%s199 + $0x88] sm:$0xff] %vm315, %v595
      %628 = vst.msk [vmem:[%s199 + $0x90] sm:$0xff] %vm315, %v596
      %629 = vst.msk [vmem:[%s199 + $0x98] sm:$0xff] %vm315, %v597
      %630 = vst.msk [vmem:[%s199 + $0xa0] sm:$0xff] %vm315, %v598
      %631 = vst.msk [vmem:[%s199 + $0xa8] sm:$0xff] %vm315, %v599
      %632 = vst.msk [vmem:[%s199 + $0xb0] sm:$0xff] %vm315, %v600
      %633 = vst.msk [vmem:[%s199 + $0xb8] sm:$0xff] %vm315, %v601
      %634 = vst.msk [vmem:[%s199 + $0xc0] sm:$0xff] %vm315, %v602
      %635 = vst.msk [vmem:[%s199 + $0xc8] sm:$0xff] %vm315, %v603
      %636 = vst.msk [vmem:[%s199 + $0xd0] sm:$0xff] %vm315, %v604
      %637 = vst.msk [vmem:[%s199 + $0xd8] sm:$0xff] %vm315, %v605
      %638 = vst.msk [vmem:[%s199 + $0xe0] sm:$0xff] %vm315, %v606
      %639 = vst.msk [vmem:[%s199 + $0xe8] sm:$0xff] %vm315, %v607
      %640 = vst.msk [vmem:[%s199 + $0xf0] sm:$0xff] %vm315, %v608
      %641 = vst.msk [vmem:[%s199 + $0xf8] sm:$0xff] %vm315, %v609
      %s642 = smul.u32 32, %s15
      %p643 = scmp.lt.s32.totalorder %s642, 63
      %s644 = scalar_select %p643, %s642, 63
      %s645 = smul.addr %s644, 8
      %s646 = scalar_lea.vmem %s4, %s645
      // Predicated region
      $region37: #{gssoft_forward.19} parent=35 // pred_check
        %p647 = pneg %p122
      $region38: #{gssoft_forward.19} parent=35 // pred_check_branch
        %649 = sbr.rel (%p647) target = $region40
      $region39: #{gssoft_forward.19} parent=35 // pred_region
        %s650 = smul.u32 32, %s15
      $region40: #{gssoft_forward.19} parent=35 // pred_fallthru
        _
    $region36: #{gssoft_forward.19} parent=5 // pred_fallthru
      _
    %p651 = scmp.le.s32.totalorder 2, %s10
    // Predicated region
    $region41: #{gssoft_forward.19} parent=5 // pred_check
      %p652 = pneg %p651
    $region42: #{gssoft_forward.19} parent=5 // pred_check_branch
      %654 = sbr.rel (%p652) target = $region44
    $region43: #{gssoft_forward.19} parent=5 // pred_region
      %s655 = ssub.s32 %s10, 2
      // Predicated region
      $region45: #{gssoft_forward.19} parent=43 // pred_check
        %p656 = pneg %p128
      $region46: #{gssoft_forward.19} parent=43 // pred_check_branch
        %658 = sbr.rel (%p656) target = $region48
      $region47: #{gssoft_forward.19} parent=43 // pred_region
        %s659 = smul.u32 32, %s16
        %p660 = scmp.lt.s32.totalorder %s659, 63
        %s661 = scalar_select %p660, %s659, 63
        %s662 = smul.addr %s661, 8
        %s663 = scalar_lea.vmem %s4, %s662
      $region48: #{gssoft_forward.19} parent=43 // pred_fallthru
        _
    $region44: #{gssoft_forward.19} parent=5 // pred_fallthru
      _
  $region6: #{gssoft_forward.19} parent=0 // loop_footer
    %s14 = sadd.s32 1, %s10
  $region7: #{gssoft_forward.19} parent=0 // loop_footer_branch
    %9 = sbr.rel target = $region3
  $region8: #{gssoft_forward.19} parent=0 // loop_exit
    _

</llo_original>
